<compile_context>
chip_gen: v7x
topology: tpu7x:2x2x1
jax: 0.10.0
libtpu: 0.0.40
codegen_flags: <defaults>
</compile_context>

<pallas_src>
import math
import jax
import jax.numpy as jnp
from jax.experimental import pallas as pl
from jax.experimental.pallas import tpu as pltpu

# ---- model config (consistent with the module's __init__) -------------------
D_MODEL     = 32      # cfg['model__input_dim']
N_HEADS     = 4       # cfg['model__num_heads'] (must divide D_MODEL)
FF_DIM      = 64      # cfg['model__ff_dim']
HIDDEN_DIM  = 32      # cfg['model__hidden_dim']
OUT_DIM     = 1       # cfg['model__threshold_output_dim']
NUM_LAYERS  = 2       # cfg['model__num_layers']
LN_EPS      = 1e-5

assert D_MODEL % N_HEADS == 0
HEAD_DIM = D_MODEL // N_HEADS

# TODO(synk): dropout (p > 0) has no effect at inference; implemented as identity.


def _layer_norm(x, gamma, beta):
    mu  = jnp.mean(x, axis=-1, keepdims=True)
    var = jnp.mean((x - mu) ** 2, axis=-1, keepdims=True)
    return (x - mu) * jax.lax.rsqrt(var + LN_EPS) * gamma + beta


# ---------------------------------------------------------------------------
# Fully-fused forward kernel: one grid step == one batch element through the
# whole network.  All per-layer weights are stacked along a leading layer axis
# and kept resident in VMEM (same block every grid step -> fetched once).
# ---------------------------------------------------------------------------
def fused_transformer_kernel(x_ref, pe_ref,
                             w_in_ref, b_in_ref, w_o_ref, b_o_ref,
                             w1_ref, b1_ref, w2_ref, b2_ref,
                             g1_ref, bt1_ref, g2_ref, bt2_ref,
                             wf1_ref, bf1_ref, wf2_ref, bf2_ref,
                             o_ref):
    x = x_ref[0] + pe_ref[0]                      # (S, D) f32, PE add fused in
    S, D = x.shape
    H, Dh = N_HEADS, HEAD_DIM
    scale = 1.0 / math.sqrt(Dh)

    def split_heads(t):                           # (S, D) -> (H, S, Dh)
        return jnp.stack([t[:, h * Dh:(h + 1) * Dh] for h in range(H)], axis=0)

    for l in range(NUM_LAYERS):                   # static unroll over layers
        # ---- multi-head self-attention --------------------------------------
        # fused in-projection, pre-transposed bf16 weight: (S, 3D)
        qkv = jnp.dot(x.astype(jnp.bfloat16), w_in_ref[l],
                      preferred_element_type=jnp.float32) + b_in_ref[l]
        q = qkv[:, 0 * D:1 * D]
        k = qkv[:, 1 * D:2 * D]
        v = qkv[:, 2 * D:3 * D]

        q3 = split_heads(q).astype(jnp.bfloat16)  # (H, S, Dh)
        k3 = split_heads(k).astype(jnp.bfloat16)
        v3 = split_heads(v).astype(jnp.bfloat16)

        # one batched MXU issue for QK^T, one for PV (head = leading batch dim)
        s = jnp.einsum('hqd,hkd->hqk', q3, k3,
                       preferred_element_type=jnp.float32) * scale          # (H, S, S)
        s = s - jnp.max(s, axis=-1, keepdims=True)
        p = jnp.exp(s)
        p = p * pl.reciprocal(jnp.sum(p, axis=-1, keepdims=True), approx=True)
        ctx3 = jnp.einsum('hqk,hkd->hqd', p.astype(jnp.bfloat16), v3,
                          preferred_element_type=jnp.float32)                # (H, S, Dh)
        ctx = jnp.concatenate([ctx3[h] for h in range(H)], axis=-1)          # (S, D)

        attn = jnp.dot(ctx.astype(jnp.bfloat16), w_o_ref[l],
                       preferred_element_type=jnp.float32) + b_o_ref[l]
        x = _layer_norm(x + attn, g1_ref[l], bt1_ref[l])

        # ---- feed-forward ----------------------------------------------------
        h1 = jnp.maximum(
            jnp.dot(x.astype(jnp.bfloat16), w1_ref[l],
                    preferred_element_type=jnp.float32) + b1_ref[l], 0.0)
        ff = jnp.dot(h1.astype(jnp.bfloat16), w2_ref[l],
                     preferred_element_type=jnp.float32) + b2_ref[l]
        x = _layer_norm(x + ff, g2_ref[l], bt2_ref[l])

    # ---- permute + AdaptiveAvgPool1d(1) == mean over seq, then fc head -------
    pooled = jnp.mean(x, axis=0, keepdims=True)                              # (1, D)
    hdn = jnp.maximum(
        jnp.dot(pooled.astype(jnp.bfloat16), wf1_ref[...],
                preferred_element_type=jnp.float32) + bf1_ref[...], 0.0)
    logits = jnp.dot(hdn.astype(jnp.bfloat16), wf2_ref[...],
                     preferred_element_type=jnp.float32) + bf2_ref[...]      # (1, OUT)
    o_ref[0] = jax.nn.sigmoid(logits)


def transformer_forward(x, pe, stacked, fc):
    B, S, D = x.shape

    weights = [stacked[k] for k in ("w_in", "b_in", "w_o", "b_o",
                                    "w1", "b1", "w2", "b2",
                                    "g1", "bt1", "g2", "bt2")]
    weights += [fc[k] for k in ("wf1", "bf1", "wf2", "bf2")]

    def rep(arr):                                  # full-array block, same every step
        nd = arr.ndim
        return pl.BlockSpec(arr.shape, lambda b, _n=nd: (0,) * _n)

    out = pl.pallas_call(
        fused_transformer_kernel,
        out_shape=jax.ShapeDtypeStruct((B, 1, OUT_DIM), jnp.float32),
        grid=(B,),
        in_specs=[pl.BlockSpec((1, S, D), lambda b: (b, 0, 0)),   # x
                  pl.BlockSpec((1, S, D), lambda b: (0, 0, 0))]   # PE table
                 + [rep(w) for w in weights],
        out_specs=pl.BlockSpec((1, 1, OUT_DIM), lambda b: (b, 0, 0)),
        compiler_params=pltpu.CompilerParams(dimension_semantics=("parallel",)),
    )(x, pe, *weights)
    return out.reshape(B, OUT_DIM)


# ---------------------------------------------------------------------------
# Host-side: PE table (computed once), parameter init (pre-transposed, stacked)
# ---------------------------------------------------------------------------
def positional_encoding(seq_len, d_model):
    position = jnp.arange(seq_len, dtype=jnp.float32)[:, None]
    div_term = jnp.exp(jnp.arange(0, d_model, 2, dtype=jnp.float32)
                       * (-math.log(10000.0) / d_model))
    pe = jnp.zeros((seq_len, d_model), dtype=jnp.float32)
    pe = pe.at[:, 0::2].set(jnp.sin(position * div_term))
    pe = pe.at[:, 1::2].set(jnp.cos(position * div_term))
    return pe[None]                                 # (1, S, D)


def init_params(key):
    def dense_t(k, out_dim, in_dim, scale=0.05):
        # PyTorch nn.Linear stores (out, in); pre-transpose host-side to (in, out)
        # and cast to bf16 so the kernel does x @ W with no in-kernel transpose.
        w = scale * jax.random.normal(k, (out_dim, in_dim), jnp.float32)
        return w.T.astype(jnp.bfloat16)

    acc = {k: [] for k in ("w_in", "b_in", "w_o", "b_o", "w1", "b1", "w2", "b2",
                           "g1", "bt1", "g2", "bt2")}
    for _ in range(NUM_LAYERS):
        key, k0, k1, k2, k3 = jax.random.split(key, 5)
        acc["w_in"].append(dense_t(k0, 3 * D_MODEL, D_MODEL))
        acc["b_in"].append(jnp.zeros((1, 3 * D_MODEL), jnp.float32))
        acc["w_o"].append(dense_t(k1, D_MODEL, D_MODEL))
        acc["b_o"].append(jnp.zeros((1, D_MODEL), jnp.float32))
        acc["w1"].append(dense_t(k2, FF_DIM, D_MODEL))
        acc["b1"].append(jnp.zeros((1, FF_DIM), jnp.float32))
        acc["w2"].append(dense_t(k3, D_MODEL, FF_DIM))
        acc["b2"].append(jnp.zeros((1, D_MODEL), jnp.float32))
        acc["g1"].append(jnp.ones((1, D_MODEL), jnp.float32))
        acc["bt1"].append(jnp.zeros((1, D_MODEL), jnp.float32))
        acc["g2"].append(jnp.ones((1, D_MODEL), jnp.float32))
        acc["bt2"].append(jnp.zeros((1, D_MODEL), jnp.float32))
    stacked = {k: jnp.stack(v, axis=0) for k, v in acc.items()}   # leading layer axis

    key, kf1, kf2 = jax.random.split(key, 3)
    fc = dict(
        wf1=dense_t(kf1, HIDDEN_DIM, D_MODEL),
        bf1=jnp.zeros((1, HIDDEN_DIM), jnp.float32),
        wf2=dense_t(kf2, OUT_DIM, HIDDEN_DIM),
        bf2=jnp.zeros((1, OUT_DIM), jnp.float32),
    )
    return stacked, fc


if __name__ == "__main__":
    key = jax.random.PRNGKey(0)
    k_x, k_p = jax.random.split(key)
    B, S = 2, 8
    x = jax.random.normal(k_x, (B, S, D_MODEL), jnp.float32)

    pe = positional_encoding(S, D_MODEL)            # precomputed once (constant)
    stacked, fc = init_params(k_p)

    out = transformer_forward(x, pe, stacked, fc)
    out = jax.block_until_ready(out)

    assert out.shape == (B, OUT_DIM)
    assert bool(jnp.all(jnp.isfinite(out)))
    assert bool(jnp.all((out >= 0.0) & (out <= 1.0)))   # sigmoid output range
    print("KERNEL_OK")
</pallas_src>

<mosaic_0001>
module attributes {stable_mosaic.version = 11 : i64} {
  func.func @fused_transformer_kernel(%arg0: i32, %arg1: memref<1x8x32xf32, #tpu.memory_space<vmem>>, %arg2: memref<1x8x32xf32, #tpu.memory_space<vmem>>, %arg3: memref<2x32x96xbf16, #tpu.memory_space<vmem>>, %arg4: memref<2x1x96xf32, #tpu.memory_space<vmem>>, %arg5: memref<2x32x32xbf16, #tpu.memory_space<vmem>>, %arg6: memref<2x1x32xf32, #tpu.memory_space<vmem>>, %arg7: memref<2x32x64xbf16, #tpu.memory_space<vmem>>, %arg8: memref<2x1x64xf32, #tpu.memory_space<vmem>>, %arg9: memref<2x64x32xbf16, #tpu.memory_space<vmem>>, %arg10: memref<2x1x32xf32, #tpu.memory_space<vmem>>, %arg11: memref<2x1x32xf32, #tpu.memory_space<vmem>>, %arg12: memref<2x1x32xf32, #tpu.memory_space<vmem>>, %arg13: memref<2x1x32xf32, #tpu.memory_space<vmem>>, %arg14: memref<2x1x32xf32, #tpu.memory_space<vmem>>, %arg15: memref<32x32xbf16, #tpu.memory_space<vmem>>, %arg16: memref<1x32xf32, #tpu.memory_space<vmem>>, %arg17: memref<32x1xbf16, #tpu.memory_space<vmem>>, %arg18: memref<1x1xf32, #tpu.memory_space<vmem>>, %arg19: memref<1x1x1xf32, #tpu.memory_space<vmem>>) attributes {dimension_semantics = [#tpu.dimension_semantics<parallel>], iteration_bounds = array<i64: 2>, scalar_prefetch = 0 : i64, scratch_operands = 0 : i64, tpu.core_type = #tpu.core_type<tc>, window_params = [{transform_indices = @transform_0, window_bounds = array<i64: 1, 8, 32>}, {pipeline_mode = #tpu.pipeline_mode<synchronous>, transform_indices = @transform_1, window_bounds = array<i64: 1, 8, 32>}, {pipeline_mode = #tpu.pipeline_mode<synchronous>, transform_indices = @transform_2, window_bounds = array<i64: 2, 32, 96>}, {pipeline_mode = #tpu.pipeline_mode<synchronous>, transform_indices = @transform_3, window_bounds = array<i64: 2, 1, 96>}, {pipeline_mode = #tpu.pipeline_mode<synchronous>, transform_indices = @transform_4, window_bounds = array<i64: 2, 32, 32>}, {pipeline_mode = #tpu.pipeline_mode<synchronous>, transform_indices = @transform_5, window_bounds = array<i64: 2, 1, 32>}, {pipeline_mode = #tpu.pipeline_mode<synchronous>, transform_indices = @transform_6, window_bounds = array<i64: 2, 32, 64>}, {pipeline_mode = #tpu.pipeline_mode<synchronous>, transform_indices = @transform_7, window_bounds = array<i64: 2, 1, 64>}, {pipeline_mode = #tpu.pipeline_mode<synchronous>, transform_indices = @transform_8, window_bounds = array<i64: 2, 64, 32>}, {pipeline_mode = #tpu.pipeline_mode<synchronous>, transform_indices = @transform_9, window_bounds = array<i64: 2, 1, 32>}, {pipeline_mode = #tpu.pipeline_mode<synchronous>, transform_indices = @transform_10, window_bounds = array<i64: 2, 1, 32>}, {pipeline_mode = #tpu.pipeline_mode<synchronous>, transform_indices = @transform_11, window_bounds = array<i64: 2, 1, 32>}, {pipeline_mode = #tpu.pipeline_mode<synchronous>, transform_indices = @transform_12, window_bounds = array<i64: 2, 1, 32>}, {pipeline_mode = #tpu.pipeline_mode<synchronous>, transform_indices = @transform_13, window_bounds = array<i64: 2, 1, 32>}, {pipeline_mode = #tpu.pipeline_mode<synchronous>, transform_indices = @transform_14, window_bounds = array<i64: 32, 32>}, {pipeline_mode = #tpu.pipeline_mode<synchronous>, transform_indices = @transform_15, window_bounds = array<i64: 1, 32>}, {pipeline_mode = #tpu.pipeline_mode<synchronous>, transform_indices = @transform_16, window_bounds = array<i64: 32, 1>}, {pipeline_mode = #tpu.pipeline_mode<synchronous>, transform_indices = @transform_17, window_bounds = array<i64: 1, 1>}, {transform_indices = @transform_18, window_bounds = array<i64: 1, 1, 1>}]} {
    %c0 = arith.constant 0 : index
    %c0_0 = arith.constant 0 : index
    %c0_1 = arith.constant 0 : index
    %0 = vector.load %arg1[%c0, %c0_0, %c0_1] : memref<1x8x32xf32, #tpu.memory_space<vmem>>, vector<1x8x32xf32>
    %1 = vector.shape_cast %0 : vector<1x8x32xf32> to vector<8x32xf32>
    %c0_2 = arith.constant 0 : index
    %c0_3 = arith.constant 0 : index
    %c0_4 = arith.constant 0 : index
    %2 = vector.load %arg2[%c0_2, %c0_3, %c0_4] : memref<1x8x32xf32, #tpu.memory_space<vmem>>, vector<1x8x32xf32>
    %3 = vector.shape_cast %2 : vector<1x8x32xf32> to vector<8x32xf32>
    %4 = arith.addf %1, %3 : vector<8x32xf32>
    %5 = arith.truncf %4 : vector<8x32xf32> to vector<8x32xbf16>
    %c0_5 = arith.constant 0 : index
    %c0_6 = arith.constant 0 : index
    %c0_7 = arith.constant 0 : index
    %6 = vector.load %arg3[%c0_5, %c0_6, %c0_7] : memref<2x32x96xbf16, #tpu.memory_space<vmem>>, vector<1x32x96xbf16>
    %7 = vector.shape_cast %6 : vector<1x32x96xbf16> to vector<32x96xbf16>
    %cst = arith.constant dense<0.000000e+00> : vector<8x96xf32>
    %8 = tpu.matmul %5, %7, %cst {dimension_numbers = #tpu.dot_dimension_numbers<[1], [0], [0], [1], [0, 0, 1, 1], [], []>} : vector<8x32xbf16>, vector<32x96xbf16>, vector<8x96xf32> -> vector<8x96xf32>
    %c0_8 = arith.constant 0 : index
    %c0_9 = arith.constant 0 : index
    %c0_10 = arith.constant 0 : index
    %9 = vector.load %arg4[%c0_8, %c0_9, %c0_10] : memref<2x1x96xf32, #tpu.memory_space<vmem>>, vector<1x1x96xf32>
    %10 = vector.shape_cast %9 : vector<1x1x96xf32> to vector<1x96xf32>
    %11 = vector.broadcast %10 : vector<1x96xf32> to vector<8x96xf32>
    %12 = arith.addf %8, %11 : vector<8x96xf32>
    %13 = vector.extract_strided_slice %12 {offsets = [0, 0], sizes = [8, 32], strides = [1, 1]} : vector<8x96xf32> to vector<8x32xf32>
    %14 = vector.extract_strided_slice %12 {offsets = [0, 32], sizes = [8, 32], strides = [1, 1]} : vector<8x96xf32> to vector<8x32xf32>
    %15 = vector.extract_strided_slice %12 {offsets = [0, 64], sizes = [8, 32], strides = [1, 1]} : vector<8x96xf32> to vector<8x32xf32>
    %16 = vector.extract_strided_slice %13 {offsets = [0, 0], sizes = [8, 8], strides = [1, 1]} : vector<8x32xf32> to vector<8x8xf32>
    %17 = vector.extract_strided_slice %13 {offsets = [0, 8], sizes = [8, 8], strides = [1, 1]} : vector<8x32xf32> to vector<8x8xf32>
    %18 = vector.extract_strided_slice %13 {offsets = [0, 16], sizes = [8, 8], strides = [1, 1]} : vector<8x32xf32> to vector<8x8xf32>
    %19 = vector.extract_strided_slice %13 {offsets = [0, 24], sizes = [8, 8], strides = [1, 1]} : vector<8x32xf32> to vector<8x8xf32>
    %20 = vector.shape_cast %16 : vector<8x8xf32> to vector<1x8x8xf32>
    %21 = vector.shape_cast %17 : vector<8x8xf32> to vector<1x8x8xf32>
    %22 = vector.shape_cast %18 : vector<8x8xf32> to vector<1x8x8xf32>
    %23 = vector.shape_cast %19 : vector<8x8xf32> to vector<1x8x8xf32>
    %24 = tpu.concatenate %20, %21, %22, %23 in 0 : vector<1x8x8xf32>, vector<1x8x8xf32>, vector<1x8x8xf32>, vector<1x8x8xf32> -> vector<4x8x8xf32>
    %25 = arith.truncf %24 : vector<4x8x8xf32> to vector<4x8x8xbf16>
    %26 = vector.extract_strided_slice %14 {offsets = [0, 0], sizes = [8, 8], strides = [1, 1]} : vector<8x32xf32> to vector<8x8xf32>
    %27 = vector.extract_strided_slice %14 {offsets = [0, 8], sizes = [8, 8], strides = [1, 1]} : vector<8x32xf32> to vector<8x8xf32>
    %28 = vector.extract_strided_slice %14 {offsets = [0, 16], sizes = [8, 8], strides = [1, 1]} : vector<8x32xf32> to vector<8x8xf32>
    %29 = vector.extract_strided_slice %14 {offsets = [0, 24], sizes = [8, 8], strides = [1, 1]} : vector<8x32xf32> to vector<8x8xf32>
    %30 = vector.shape_cast %26 : vector<8x8xf32> to vector<1x8x8xf32>
    %31 = vector.shape_cast %27 : vector<8x8xf32> to vector<1x8x8xf32>
    %32 = vector.shape_cast %28 : vector<8x8xf32> to vector<1x8x8xf32>
    %33 = vector.shape_cast %29 : vector<8x8xf32> to vector<1x8x8xf32>
    %34 = tpu.concatenate %30, %31, %32, %33 in 0 : vector<1x8x8xf32>, vector<1x8x8xf32>, vector<1x8x8xf32>, vector<1x8x8xf32> -> vector<4x8x8xf32>
    %35 = arith.truncf %34 : vector<4x8x8xf32> to vector<4x8x8xbf16>
    %36 = vector.extract_strided_slice %15 {offsets = [0, 0], sizes = [8, 8], strides = [1, 1]} : vector<8x32xf32> to vector<8x8xf32>
    %37 = vector.extract_strided_slice %15 {offsets = [0, 8], sizes = [8, 8], strides = [1, 1]} : vector<8x32xf32> to vector<8x8xf32>
    %38 = vector.extract_strided_slice %15 {offsets = [0, 16], sizes = [8, 8], strides = [1, 1]} : vector<8x32xf32> to vector<8x8xf32>
    %39 = vector.extract_strided_slice %15 {offsets = [0, 24], sizes = [8, 8], strides = [1, 1]} : vector<8x32xf32> to vector<8x8xf32>
    %40 = vector.shape_cast %36 : vector<8x8xf32> to vector<1x8x8xf32>
    %41 = vector.shape_cast %37 : vector<8x8xf32> to vector<1x8x8xf32>
    %42 = vector.shape_cast %38 : vector<8x8xf32> to vector<1x8x8xf32>
    %43 = vector.shape_cast %39 : vector<8x8xf32> to vector<1x8x8xf32>
    %44 = tpu.concatenate %40, %41, %42, %43 in 0 : vector<1x8x8xf32>, vector<1x8x8xf32>, vector<1x8x8xf32>, vector<1x8x8xf32> -> vector<4x8x8xf32>
    %45 = arith.truncf %44 : vector<4x8x8xf32> to vector<4x8x8xbf16>
    "tpu.trace_start"() <{level = 10 : i32, message = "hqd,hkd->hqk"}> : () -> ()
    %cst_11 = arith.constant dense<0.000000e+00> : vector<4x8x8xf32>
    %46 = tpu.matmul %25, %35, %cst_11 {dimension_numbers = #tpu.dot_dimension_numbers<[2], [2], [1], [1], [0, 0, 0, 1, 1, 1], [0], [0]>} : vector<4x8x8xbf16>, vector<4x8x8xbf16>, vector<4x8x8xf32> -> vector<4x8x8xf32>
    "tpu.trace_stop"() : () -> ()
    %cst_12 = arith.constant 0.353553385 : f32
    %47 = vector.broadcast %cst_12 : f32 to vector<4x8x8xf32>
    %48 = arith.mulf %46, %47 : vector<4x8x8xf32>
    %cst_13 = arith.constant dense<0xFF800000> : vector<4x8xf32>
    %49 = vector.multi_reduction <maximumf>, %48, %cst_13 [2] : vector<4x8x8xf32> to vector<4x8xf32>
    %50 = vector.shape_cast %49 : vector<4x8xf32> to vector<4x8x1xf32>
    %51 = vector.broadcast %50 : vector<4x8x1xf32> to vector<4x8x8xf32>
    %52 = arith.subf %48, %51 : vector<4x8x8xf32>
    %53 = math.exp %52 : vector<4x8x8xf32>
    %cst_14 = arith.constant dense<0.000000e+00> : vector<4x8xf32>
    %54 = vector.multi_reduction <add>, %53, %cst_14 [2] : vector<4x8x8xf32> to vector<4x8xf32>
    %55 = vector.shape_cast %54 : vector<4x8xf32> to vector<4x8x1xf32>
    %56 = tpu.reciprocal %55 {approx = true} : vector<4x8x1xf32> -> vector<4x8x1xf32>
    %57 = vector.broadcast %56 : vector<4x8x1xf32> to vector<4x8x8xf32>
    %58 = arith.mulf %53, %57 : vector<4x8x8xf32>
    %59 = arith.truncf %58 : vector<4x8x8xf32> to vector<4x8x8xbf16>
    "tpu.trace_start"() <{level = 10 : i32, message = "hqk,hkd->hqd"}> : () -> ()
    %cst_15 = arith.constant dense<0.000000e+00> : vector<4x8x8xf32>
    %60 = tpu.matmul %59, %45, %cst_15 {dimension_numbers = #tpu.dot_dimension_numbers<[2], [1], [1], [2], [0, 0, 0, 1, 1, 2], [0], [0]>} : vector<4x8x8xbf16>, vector<4x8x8xbf16>, vector<4x8x8xf32> -> vector<4x8x8xf32>
    "tpu.trace_stop"() : () -> ()
    %61 = vector.extract_strided_slice %60 {offsets = [0, 0, 0], sizes = [1, 8, 8], strides = [1, 1, 1]} : vector<4x8x8xf32> to vector<1x8x8xf32>
    %62 = vector.shape_cast %61 : vector<1x8x8xf32> to vector<8x8xf32>
    %63 = vector.extract_strided_slice %60 {offsets = [1, 0, 0], sizes = [1, 8, 8], strides = [1, 1, 1]} : vector<4x8x8xf32> to vector<1x8x8xf32>
    %64 = vector.shape_cast %63 : vector<1x8x8xf32> to vector<8x8xf32>
    %65 = vector.extract_strided_slice %60 {offsets = [2, 0, 0], sizes = [1, 8, 8], strides = [1, 1, 1]} : vector<4x8x8xf32> to vector<1x8x8xf32>
    %66 = vector.shape_cast %65 : vector<1x8x8xf32> to vector<8x8xf32>
    %67 = vector.extract_strided_slice %60 {offsets = [3, 0, 0], sizes = [1, 8, 8], strides = [1, 1, 1]} : vector<4x8x8xf32> to vector<1x8x8xf32>
    %68 = vector.shape_cast %67 : vector<1x8x8xf32> to vector<8x8xf32>
    %69 = tpu.concatenate %62, %64, %66, %68 in 1 : vector<8x8xf32>, vector<8x8xf32>, vector<8x8xf32>, vector<8x8xf32> -> vector<8x32xf32>
    %70 = arith.truncf %69 : vector<8x32xf32> to vector<8x32xbf16>
    %c0_16 = arith.constant 0 : index
    %c0_17 = arith.constant 0 : index
    %c0_18 = arith.constant 0 : index
    %71 = vector.load %arg5[%c0_16, %c0_17, %c0_18] : memref<2x32x32xbf16, #tpu.memory_space<vmem>>, vector<1x32x32xbf16>
    %72 = vector.shape_cast %71 : vector<1x32x32xbf16> to vector<32x32xbf16>
    %cst_19 = arith.constant dense<0.000000e+00> : vector<8x32xf32>
    %73 = tpu.matmul %70, %72, %cst_19 {dimension_numbers = #tpu.dot_dimension_numbers<[1], [0], [0], [1], [0, 0, 1, 1], [], []>} : vector<8x32xbf16>, vector<32x32xbf16>, vector<8x32xf32> -> vector<8x32xf32>
    %c0_20 = arith.constant 0 : index
    %c0_21 = arith.constant 0 : index
    %c0_22 = arith.constant 0 : index
    %74 = vector.load %arg6[%c0_20, %c0_21, %c0_22] : memref<2x1x32xf32, #tpu.memory_space<vmem>>, vector<1x1x32xf32>
    %75 = vector.shape_cast %74 : vector<1x1x32xf32> to vector<1x32xf32>
    %76 = vector.broadcast %75 : vector<1x32xf32> to vector<8x32xf32>
    %77 = arith.addf %73, %76 : vector<8x32xf32>
    %78 = arith.addf %4, %77 : vector<8x32xf32>
    %c0_23 = arith.constant 0 : index
    %c0_24 = arith.constant 0 : index
    %c0_25 = arith.constant 0 : index
    %79 = vector.load %arg11[%c0_23, %c0_24, %c0_25] : memref<2x1x32xf32, #tpu.memory_space<vmem>>, vector<1x1x32xf32>
    %80 = vector.shape_cast %79 : vector<1x1x32xf32> to vector<1x32xf32>
    %c0_26 = arith.constant 0 : index
    %c0_27 = arith.constant 0 : index
    %c0_28 = arith.constant 0 : index
    %81 = vector.load %arg12[%c0_26, %c0_27, %c0_28] : memref<2x1x32xf32, #tpu.memory_space<vmem>>, vector<1x1x32xf32>
    %82 = vector.shape_cast %81 : vector<1x1x32xf32> to vector<1x32xf32>
    %cst_29 = arith.constant dense<0.000000e+00> : vector<8xf32>
    %83 = vector.multi_reduction <add>, %78, %cst_29 [1] : vector<8x32xf32> to vector<8xf32>
    %84 = vector.shape_cast %83 : vector<8xf32> to vector<8x1xf32>
    %cst_30 = arith.constant 3.200000e+01 : f32
    %85 = vector.broadcast %cst_30 : f32 to vector<8x1xf32>
    %86 = arith.divf %84, %85 : vector<8x1xf32>
    %87 = vector.broadcast %86 : vector<8x1xf32> to vector<8x32xf32>
    %88 = arith.subf %78, %87 : vector<8x32xf32>
    %89 = arith.mulf %88, %88 : vector<8x32xf32>
    %cst_31 = arith.constant dense<0.000000e+00> : vector<8xf32>
    %90 = vector.multi_reduction <add>, %89, %cst_31 [1] : vector<8x32xf32> to vector<8xf32>
    %91 = vector.shape_cast %90 : vector<8xf32> to vector<8x1xf32>
    %cst_32 = arith.constant 3.200000e+01 : f32
    %92 = vector.broadcast %cst_32 : f32 to vector<8x1xf32>
    %93 = arith.divf %91, %92 : vector<8x1xf32>
    %94 = vector.broadcast %86 : vector<8x1xf32> to vector<8x32xf32>
    %95 = arith.subf %78, %94 : vector<8x32xf32>
    %cst_33 = arith.constant 9.99999974E-6 : f32
    %96 = vector.broadcast %cst_33 : f32 to vector<8x1xf32>
    %97 = arith.addf %93, %96 : vector<8x1xf32>
    %98 = math.rsqrt %97 : vector<8x1xf32>
    %99 = vector.broadcast %98 : vector<8x1xf32> to vector<8x32xf32>
    %100 = arith.mulf %95, %99 : vector<8x32xf32>
    %101 = vector.broadcast %80 : vector<1x32xf32> to vector<8x32xf32>
    %102 = arith.mulf %100, %101 : vector<8x32xf32>
    %103 = vector.broadcast %82 : vector<1x32xf32> to vector<8x32xf32>
    %104 = arith.addf %102, %103 : vector<8x32xf32>
    %105 = arith.truncf %104 : vector<8x32xf32> to vector<8x32xbf16>
    %c0_34 = arith.constant 0 : index
    %c0_35 = arith.constant 0 : index
    %c0_36 = arith.constant 0 : index
    %106 = vector.load %arg7[%c0_34, %c0_35, %c0_36] : memref<2x32x64xbf16, #tpu.memory_space<vmem>>, vector<1x32x64xbf16>
    %107 = vector.shape_cast %106 : vector<1x32x64xbf16> to vector<32x64xbf16>
    %cst_37 = arith.constant dense<0.000000e+00> : vector<8x64xf32>
    %108 = tpu.matmul %105, %107, %cst_37 {dimension_numbers = #tpu.dot_dimension_numbers<[1], [0], [0], [1], [0, 0, 1, 1], [], []>} : vector<8x32xbf16>, vector<32x64xbf16>, vector<8x64xf32> -> vector<8x64xf32>
    %c0_38 = arith.constant 0 : index
    %c0_39 = arith.constant 0 : index
    %c0_40 = arith.constant 0 : index
    %109 = vector.load %arg8[%c0_38, %c0_39, %c0_40] : memref<2x1x64xf32, #tpu.memory_space<vmem>>, vector<1x1x64xf32>
    %110 = vector.shape_cast %109 : vector<1x1x64xf32> to vector<1x64xf32>
    %111 = vector.broadcast %110 : vector<1x64xf32> to vector<8x64xf32>
    %112 = arith.addf %108, %111 : vector<8x64xf32>
    %cst_41 = arith.constant 0.000000e+00 : f32
    %113 = vector.broadcast %cst_41 : f32 to vector<8x64xf32>
    %114 = arith.maximumf %112, %113 : vector<8x64xf32>
    %115 = arith.truncf %114 : vector<8x64xf32> to vector<8x64xbf16>
    %c0_42 = arith.constant 0 : index
    %c0_43 = arith.constant 0 : index
    %c0_44 = arith.constant 0 : index
    %116 = vector.load %arg9[%c0_42, %c0_43, %c0_44] : memref<2x64x32xbf16, #tpu.memory_space<vmem>>, vector<1x64x32xbf16>
    %117 = vector.shape_cast %116 : vector<1x64x32xbf16> to vector<64x32xbf16>
    %cst_45 = arith.constant dense<0.000000e+00> : vector<8x32xf32>
    %118 = tpu.matmul %115, %117, %cst_45 {dimension_numbers = #tpu.dot_dimension_numbers<[1], [0], [0], [1], [0, 0, 1, 1], [], []>} : vector<8x64xbf16>, vector<64x32xbf16>, vector<8x32xf32> -> vector<8x32xf32>
    %c0_46 = arith.constant 0 : index
    %c0_47 = arith.constant 0 : index
    %c0_48 = arith.constant 0 : index
    %119 = vector.load %arg10[%c0_46, %c0_47, %c0_48] : memref<2x1x32xf32, #tpu.memory_space<vmem>>, vector<1x1x32xf32>
    %120 = vector.shape_cast %119 : vector<1x1x32xf32> to vector<1x32xf32>
    %121 = vector.broadcast %120 : vector<1x32xf32> to vector<8x32xf32>
    %122 = arith.addf %118, %121 : vector<8x32xf32>
    %123 = arith.addf %104, %122 : vector<8x32xf32>
    %c0_49 = arith.constant 0 : index
    %c0_50 = arith.constant 0 : index
    %c0_51 = arith.constant 0 : index
    %124 = vector.load %arg13[%c0_49, %c0_50, %c0_51] : memref<2x1x32xf32, #tpu.memory_space<vmem>>, vector<1x1x32xf32>
    %125 = vector.shape_cast %124 : vector<1x1x32xf32> to vector<1x32xf32>
    %c0_52 = arith.constant 0 : index
    %c0_53 = arith.constant 0 : index
    %c0_54 = arith.constant 0 : index
    %126 = vector.load %arg14[%c0_52, %c0_53, %c0_54] : memref<2x1x32xf32, #tpu.memory_space<vmem>>, vector<1x1x32xf32>
    %127 = vector.shape_cast %126 : vector<1x1x32xf32> to vector<1x32xf32>
    %cst_55 = arith.constant dense<0.000000e+00> : vector<8xf32>
    %128 = vector.multi_reduction <add>, %123, %cst_55 [1] : vector<8x32xf32> to vector<8xf32>
    %129 = vector.shape_cast %128 : vector<8xf32> to vector<8x1xf32>
    %cst_56 = arith.constant 3.200000e+01 : f32
    %130 = vector.broadcast %cst_56 : f32 to vector<8x1xf32>
    %131 = arith.divf %129, %130 : vector<8x1xf32>
    %132 = vector.broadcast %131 : vector<8x1xf32> to vector<8x32xf32>
    %133 = arith.subf %123, %132 : vector<8x32xf32>
    %134 = arith.mulf %133, %133 : vector<8x32xf32>
    %cst_57 = arith.constant dense<0.000000e+00> : vector<8xf32>
    %135 = vector.multi_reduction <add>, %134, %cst_57 [1] : vector<8x32xf32> to vector<8xf32>
    %136 = vector.shape_cast %135 : vector<8xf32> to vector<8x1xf32>
    %cst_58 = arith.constant 3.200000e+01 : f32
    %137 = vector.broadcast %cst_58 : f32 to vector<8x1xf32>
    %138 = arith.divf %136, %137 : vector<8x1xf32>
    %139 = vector.broadcast %131 : vector<8x1xf32> to vector<8x32xf32>
    %140 = arith.subf %123, %139 : vector<8x32xf32>
    %cst_59 = arith.constant 9.99999974E-6 : f32
    %141 = vector.broadcast %cst_59 : f32 to vector<8x1xf32>
    %142 = arith.addf %138, %141 : vector<8x1xf32>
    %143 = math.rsqrt %142 : vector<8x1xf32>
    %144 = vector.broadcast %143 : vector<8x1xf32> to vector<8x32xf32>
    %145 = arith.mulf %140, %144 : vector<8x32xf32>
    %146 = vector.broadcast %125 : vector<1x32xf32> to vector<8x32xf32>
    %147 = arith.mulf %145, %146 : vector<8x32xf32>
    %148 = vector.broadcast %127 : vector<1x32xf32> to vector<8x32xf32>
    %149 = arith.addf %147, %148 : vector<8x32xf32>
    %150 = arith.truncf %149 : vector<8x32xf32> to vector<8x32xbf16>
    %c1 = arith.constant 1 : index
    %c0_60 = arith.constant 0 : index
    %c0_61 = arith.constant 0 : index
    %151 = vector.load %arg3[%c1, %c0_60, %c0_61] : memref<2x32x96xbf16, #tpu.memory_space<vmem>>, vector<1x32x96xbf16>
    %152 = vector.shape_cast %151 : vector<1x32x96xbf16> to vector<32x96xbf16>
    %cst_62 = arith.constant dense<0.000000e+00> : vector<8x96xf32>
    %153 = tpu.matmul %150, %152, %cst_62 {dimension_numbers = #tpu.dot_dimension_numbers<[1], [0], [0], [1], [0, 0, 1, 1], [], []>} : vector<8x32xbf16>, vector<32x96xbf16>, vector<8x96xf32> -> vector<8x96xf32>
    %c1_63 = arith.constant 1 : index
    %c0_64 = arith.constant 0 : index
    %c0_65 = arith.constant 0 : index
    %154 = vector.load %arg4[%c1_63, %c0_64, %c0_65] : memref<2x1x96xf32, #tpu.memory_space<vmem>>, vector<1x1x96xf32>
    %155 = vector.shape_cast %154 : vector<1x1x96xf32> to vector<1x96xf32>
    %156 = vector.broadcast %155 : vector<1x96xf32> to vector<8x96xf32>
    %157 = arith.addf %153, %156 : vector<8x96xf32>
    %158 = vector.extract_strided_slice %157 {offsets = [0, 0], sizes = [8, 32], strides = [1, 1]} : vector<8x96xf32> to vector<8x32xf32>
    %159 = vector.extract_strided_slice %157 {offsets = [0, 32], sizes = [8, 32], strides = [1, 1]} : vector<8x96xf32> to vector<8x32xf32>
    %160 = vector.extract_strided_slice %157 {offsets = [0, 64], sizes = [8, 32], strides = [1, 1]} : vector<8x96xf32> to vector<8x32xf32>
    %161 = vector.extract_strided_slice %158 {offsets = [0, 0], sizes = [8, 8], strides = [1, 1]} : vector<8x32xf32> to vector<8x8xf32>
    %162 = vector.extract_strided_slice %158 {offsets = [0, 8], sizes = [8, 8], strides = [1, 1]} : vector<8x32xf32> to vector<8x8xf32>
    %163 = vector.extract_strided_slice %158 {offsets = [0, 16], sizes = [8, 8], strides = [1, 1]} : vector<8x32xf32> to vector<8x8xf32>
    %164 = vector.extract_strided_slice %158 {offsets = [0, 24], sizes = [8, 8], strides = [1, 1]} : vector<8x32xf32> to vector<8x8xf32>
    %165 = vector.shape_cast %161 : vector<8x8xf32> to vector<1x8x8xf32>
    %166 = vector.shape_cast %162 : vector<8x8xf32> to vector<1x8x8xf32>
    %167 = vector.shape_cast %163 : vector<8x8xf32> to vector<1x8x8xf32>
    %168 = vector.shape_cast %164 : vector<8x8xf32> to vector<1x8x8xf32>
    %169 = tpu.concatenate %165, %166, %167, %168 in 0 : vector<1x8x8xf32>, vector<1x8x8xf32>, vector<1x8x8xf32>, vector<1x8x8xf32> -> vector<4x8x8xf32>
    %170 = arith.truncf %169 : vector<4x8x8xf32> to vector<4x8x8xbf16>
    %171 = vector.extract_strided_slice %159 {offsets = [0, 0], sizes = [8, 8], strides = [1, 1]} : vector<8x32xf32> to vector<8x8xf32>
    %172 = vector.extract_strided_slice %159 {offsets = [0, 8], sizes = [8, 8], strides = [1, 1]} : vector<8x32xf32> to vector<8x8xf32>
    %173 = vector.extract_strided_slice %159 {offsets = [0, 16], sizes = [8, 8], strides = [1, 1]} : vector<8x32xf32> to vector<8x8xf32>
    %174 = vector.extract_strided_slice %159 {offsets = [0, 24], sizes = [8, 8], strides = [1, 1]} : vector<8x32xf32> to vector<8x8xf32>
    %175 = vector.shape_cast %171 : vector<8x8xf32> to vector<1x8x8xf32>
    %176 = vector.shape_cast %172 : vector<8x8xf32> to vector<1x8x8xf32>
    %177 = vector.shape_cast %173 : vector<8x8xf32> to vector<1x8x8xf32>
    %178 = vector.shape_cast %174 : vector<8x8xf32> to vector<1x8x8xf32>
    %179 = tpu.concatenate %175, %176, %177, %178 in 0 : vector<1x8x8xf32>, vector<1x8x8xf32>, vector<1x8x8xf32>, vector<1x8x8xf32> -> vector<4x8x8xf32>
    %180 = arith.truncf %179 : vector<4x8x8xf32> to vector<4x8x8xbf16>
    %181 = vector.extract_strided_slice %160 {offsets = [0, 0], sizes = [8, 8], strides = [1, 1]} : vector<8x32xf32> to vector<8x8xf32>
    %182 = vector.extract_strided_slice %160 {offsets = [0, 8], sizes = [8, 8], strides = [1, 1]} : vector<8x32xf32> to vector<8x8xf32>
    %183 = vector.extract_strided_slice %160 {offsets = [0, 16], sizes = [8, 8], strides = [1, 1]} : vector<8x32xf32> to vector<8x8xf32>
    %184 = vector.extract_strided_slice %160 {offsets = [0, 24], sizes = [8, 8], strides = [1, 1]} : vector<8x32xf32> to vector<8x8xf32>
    %185 = vector.shape_cast %181 : vector<8x8xf32> to vector<1x8x8xf32>
    %186 = vector.shape_cast %182 : vector<8x8xf32> to vector<1x8x8xf32>
    %187 = vector.shape_cast %183 : vector<8x8xf32> to vector<1x8x8xf32>
    %188 = vector.shape_cast %184 : vector<8x8xf32> to vector<1x8x8xf32>
    %189 = tpu.concatenate %185, %186, %187, %188 in 0 : vector<1x8x8xf32>, vector<1x8x8xf32>, vector<1x8x8xf32>, vector<1x8x8xf32> -> vector<4x8x8xf32>
    %190 = arith.truncf %189 : vector<4x8x8xf32> to vector<4x8x8xbf16>
    "tpu.trace_start"() <{level = 10 : i32, message = "hqd,hkd->hqk"}> : () -> ()
    %cst_66 = arith.constant dense<0.000000e+00> : vector<4x8x8xf32>
    %191 = tpu.matmul %170, %180, %cst_66 {dimension_numbers = #tpu.dot_dimension_numbers<[2], [2], [1], [1], [0, 0, 0, 1, 1, 1], [0], [0]>} : vector<4x8x8xbf16>, vector<4x8x8xbf16>, vector<4x8x8xf32> -> vector<4x8x8xf32>
    "tpu.trace_stop"() : () -> ()
    %cst_67 = arith.constant 0.353553385 : f32
    %192 = vector.broadcast %cst_67 : f32 to vector<4x8x8xf32>
    %193 = arith.mulf %191, %192 : vector<4x8x8xf32>
    %cst_68 = arith.constant dense<0xFF800000> : vector<4x8xf32>
    %194 = vector.multi_reduction <maximumf>, %193, %cst_68 [2] : vector<4x8x8xf32> to vector<4x8xf32>
    %195 = vector.shape_cast %194 : vector<4x8xf32> to vector<4x8x1xf32>
    %196 = vector.broadcast %195 : vector<4x8x1xf32> to vector<4x8x8xf32>
    %197 = arith.subf %193, %196 : vector<4x8x8xf32>
    %198 = math.exp %197 : vector<4x8x8xf32>
    %cst_69 = arith.constant dense<0.000000e+00> : vector<4x8xf32>
    %199 = vector.multi_reduction <add>, %198, %cst_69 [2] : vector<4x8x8xf32> to vector<4x8xf32>
    %200 = vector.shape_cast %199 : vector<4x8xf32> to vector<4x8x1xf32>
    %201 = tpu.reciprocal %200 {approx = true} : vector<4x8x1xf32> -> vector<4x8x1xf32>
    %202 = vector.broadcast %201 : vector<4x8x1xf32> to vector<4x8x8xf32>
    %203 = arith.mulf %198, %202 : vector<4x8x8xf32>
    %204 = arith.truncf %203 : vector<4x8x8xf32> to vector<4x8x8xbf16>
    "tpu.trace_start"() <{level = 10 : i32, message = "hqk,hkd->hqd"}> : () -> ()
    %cst_70 = arith.constant dense<0.000000e+00> : vector<4x8x8xf32>
    %205 = tpu.matmul %204, %190, %cst_70 {dimension_numbers = #tpu.dot_dimension_numbers<[2], [1], [1], [2], [0, 0, 0, 1, 1, 2], [0], [0]>} : vector<4x8x8xbf16>, vector<4x8x8xbf16>, vector<4x8x8xf32> -> vector<4x8x8xf32>
    "tpu.trace_stop"() : () -> ()
    %206 = vector.extract_strided_slice %205 {offsets = [0, 0, 0], sizes = [1, 8, 8], strides = [1, 1, 1]} : vector<4x8x8xf32> to vector<1x8x8xf32>
    %207 = vector.shape_cast %206 : vector<1x8x8xf32> to vector<8x8xf32>
    %208 = vector.extract_strided_slice %205 {offsets = [1, 0, 0], sizes = [1, 8, 8], strides = [1, 1, 1]} : vector<4x8x8xf32> to vector<1x8x8xf32>
    %209 = vector.shape_cast %208 : vector<1x8x8xf32> to vector<8x8xf32>
    %210 = vector.extract_strided_slice %205 {offsets = [2, 0, 0], sizes = [1, 8, 8], strides = [1, 1, 1]} : vector<4x8x8xf32> to vector<1x8x8xf32>
    %211 = vector.shape_cast %210 : vector<1x8x8xf32> to vector<8x8xf32>
    %212 = vector.extract_strided_slice %205 {offsets = [3, 0, 0], sizes = [1, 8, 8], strides = [1, 1, 1]} : vector<4x8x8xf32> to vector<1x8x8xf32>
    %213 = vector.shape_cast %212 : vector<1x8x8xf32> to vector<8x8xf32>
    %214 = tpu.concatenate %207, %209, %211, %213 in 1 : vector<8x8xf32>, vector<8x8xf32>, vector<8x8xf32>, vector<8x8xf32> -> vector<8x32xf32>
    %215 = arith.truncf %214 : vector<8x32xf32> to vector<8x32xbf16>
    %c1_71 = arith.constant 1 : index
    %c0_72 = arith.constant 0 : index
    %c0_73 = arith.constant 0 : index
    %216 = vector.load %arg5[%c1_71, %c0_72, %c0_73] : memref<2x32x32xbf16, #tpu.memory_space<vmem>>, vector<1x32x32xbf16>
    %217 = vector.shape_cast %216 : vector<1x32x32xbf16> to vector<32x32xbf16>
    %cst_74 = arith.constant dense<0.000000e+00> : vector<8x32xf32>
    %218 = tpu.matmul %215, %217, %cst_74 {dimension_numbers = #tpu.dot_dimension_numbers<[1], [0], [0], [1], [0, 0, 1, 1], [], []>} : vector<8x32xbf16>, vector<32x32xbf16>, vector<8x32xf32> -> vector<8x32xf32>
    %c1_75 = arith.constant 1 : index
    %c0_76 = arith.constant 0 : index
    %c0_77 = arith.constant 0 : index
    %219 = vector.load %arg6[%c1_75, %c0_76, %c0_77] : memref<2x1x32xf32, #tpu.memory_space<vmem>>, vector<1x1x32xf32>
    %220 = vector.shape_cast %219 : vector<1x1x32xf32> to vector<1x32xf32>
    %221 = vector.broadcast %220 : vector<1x32xf32> to vector<8x32xf32>
    %222 = arith.addf %218, %221 : vector<8x32xf32>
    %223 = arith.addf %149, %222 : vector<8x32xf32>
    %c1_78 = arith.constant 1 : index
    %c0_79 = arith.constant 0 : index
    %c0_80 = arith.constant 0 : index
    %224 = vector.load %arg11[%c1_78, %c0_79, %c0_80] : memref<2x1x32xf32, #tpu.memory_space<vmem>>, vector<1x1x32xf32>
    %225 = vector.shape_cast %224 : vector<1x1x32xf32> to vector<1x32xf32>
    %c1_81 = arith.constant 1 : index
    %c0_82 = arith.constant 0 : index
    %c0_83 = arith.constant 0 : index
    %226 = vector.load %arg12[%c1_81, %c0_82, %c0_83] : memref<2x1x32xf32, #tpu.memory_space<vmem>>, vector<1x1x32xf32>
    %227 = vector.shape_cast %226 : vector<1x1x32xf32> to vector<1x32xf32>
    %cst_84 = arith.constant dense<0.000000e+00> : vector<8xf32>
    %228 = vector.multi_reduction <add>, %223, %cst_84 [1] : vector<8x32xf32> to vector<8xf32>
    %229 = vector.shape_cast %228 : vector<8xf32> to vector<8x1xf32>
    %cst_85 = arith.constant 3.200000e+01 : f32
    %230 = vector.broadcast %cst_85 : f32 to vector<8x1xf32>
    %231 = arith.divf %229, %230 : vector<8x1xf32>
    %232 = vector.broadcast %231 : vector<8x1xf32> to vector<8x32xf32>
    %233 = arith.subf %223, %232 : vector<8x32xf32>
    %234 = arith.mulf %233, %233 : vector<8x32xf32>
    %cst_86 = arith.constant dense<0.000000e+00> : vector<8xf32>
    %235 = vector.multi_reduction <add>, %234, %cst_86 [1] : vector<8x32xf32> to vector<8xf32>
    %236 = vector.shape_cast %235 : vector<8xf32> to vector<8x1xf32>
    %cst_87 = arith.constant 3.200000e+01 : f32
    %237 = vector.broadcast %cst_87 : f32 to vector<8x1xf32>
    %238 = arith.divf %236, %237 : vector<8x1xf32>
    %239 = vector.broadcast %231 : vector<8x1xf32> to vector<8x32xf32>
    %240 = arith.subf %223, %239 : vector<8x32xf32>
    %cst_88 = arith.constant 9.99999974E-6 : f32
    %241 = vector.broadcast %cst_88 : f32 to vector<8x1xf32>
    %242 = arith.addf %238, %241 : vector<8x1xf32>
    %243 = math.rsqrt %242 : vector<8x1xf32>
    %244 = vector.broadcast %243 : vector<8x1xf32> to vector<8x32xf32>
    %245 = arith.mulf %240, %244 : vector<8x32xf32>
    %246 = vector.broadcast %225 : vector<1x32xf32> to vector<8x32xf32>
    %247 = arith.mulf %245, %246 : vector<8x32xf32>
    %248 = vector.broadcast %227 : vector<1x32xf32> to vector<8x32xf32>
    %249 = arith.addf %247, %248 : vector<8x32xf32>
    %250 = arith.truncf %249 : vector<8x32xf32> to vector<8x32xbf16>
    %c1_89 = arith.constant 1 : index
    %c0_90 = arith.constant 0 : index
    %c0_91 = arith.constant 0 : index
    %251 = vector.load %arg7[%c1_89, %c0_90, %c0_91] : memref<2x32x64xbf16, #tpu.memory_space<vmem>>, vector<1x32x64xbf16>
    %252 = vector.shape_cast %251 : vector<1x32x64xbf16> to vector<32x64xbf16>
    %cst_92 = arith.constant dense<0.000000e+00> : vector<8x64xf32>
    %253 = tpu.matmul %250, %252, %cst_92 {dimension_numbers = #tpu.dot_dimension_numbers<[1], [0], [0], [1], [0, 0, 1, 1], [], []>} : vector<8x32xbf16>, vector<32x64xbf16>, vector<8x64xf32> -> vector<8x64xf32>
    %c1_93 = arith.constant 1 : index
    %c0_94 = arith.constant 0 : index
    %c0_95 = arith.constant 0 : index
    %254 = vector.load %arg8[%c1_93, %c0_94, %c0_95] : memref<2x1x64xf32, #tpu.memory_space<vmem>>, vector<1x1x64xf32>
    %255 = vector.shape_cast %254 : vector<1x1x64xf32> to vector<1x64xf32>
    %256 = vector.broadcast %255 : vector<1x64xf32> to vector<8x64xf32>
    %257 = arith.addf %253, %256 : vector<8x64xf32>
    %cst_96 = arith.constant 0.000000e+00 : f32
    %258 = vector.broadcast %cst_96 : f32 to vector<8x64xf32>
    %259 = arith.maximumf %257, %258 : vector<8x64xf32>
    %260 = arith.truncf %259 : vector<8x64xf32> to vector<8x64xbf16>
    %c1_97 = arith.constant 1 : index
    %c0_98 = arith.constant 0 : index
    %c0_99 = arith.constant 0 : index
    %261 = vector.load %arg9[%c1_97, %c0_98, %c0_99] : memref<2x64x32xbf16, #tpu.memory_space<vmem>>, vector<1x64x32xbf16>
    %262 = vector.shape_cast %261 : vector<1x64x32xbf16> to vector<64x32xbf16>
    %cst_100 = arith.constant dense<0.000000e+00> : vector<8x32xf32>
    %263 = tpu.matmul %260, %262, %cst_100 {dimension_numbers = #tpu.dot_dimension_numbers<[1], [0], [0], [1], [0, 0, 1, 1], [], []>} : vector<8x64xbf16>, vector<64x32xbf16>, vector<8x32xf32> -> vector<8x32xf32>
    %c1_101 = arith.constant 1 : index
    %c0_102 = arith.constant 0 : index
    %c0_103 = arith.constant 0 : index
    %264 = vector.load %arg10[%c1_101, %c0_102, %c0_103] : memref<2x1x32xf32, #tpu.memory_space<vmem>>, vector<1x1x32xf32>
    %265 = vector.shape_cast %264 : vector<1x1x32xf32> to vector<1x32xf32>
    %266 = vector.broadcast %265 : vector<1x32xf32> to vector<8x32xf32>
    %267 = arith.addf %263, %266 : vector<8x32xf32>
    %268 = arith.addf %249, %267 : vector<8x32xf32>
    %c1_104 = arith.constant 1 : index
    %c0_105 = arith.constant 0 : index
    %c0_106 = arith.constant 0 : index
    %269 = vector.load %arg13[%c1_104, %c0_105, %c0_106] : memref<2x1x32xf32, #tpu.memory_space<vmem>>, vector<1x1x32xf32>
    %270 = vector.shape_cast %269 : vector<1x1x32xf32> to vector<1x32xf32>
    %c1_107 = arith.constant 1 : index
    %c0_108 = arith.constant 0 : index
    %c0_109 = arith.constant 0 : index
    %271 = vector.load %arg14[%c1_107, %c0_108, %c0_109] : memref<2x1x32xf32, #tpu.memory_space<vmem>>, vector<1x1x32xf32>
    %272 = vector.shape_cast %271 : vector<1x1x32xf32> to vector<1x32xf32>
    %cst_110 = arith.constant dense<0.000000e+00> : vector<8xf32>
    %273 = vector.multi_reduction <add>, %268, %cst_110 [1] : vector<8x32xf32> to vector<8xf32>
    %274 = vector.shape_cast %273 : vector<8xf32> to vector<8x1xf32>
    %cst_111 = arith.constant 3.200000e+01 : f32
    %275 = vector.broadcast %cst_111 : f32 to vector<8x1xf32>
    %276 = arith.divf %274, %275 : vector<8x1xf32>
    %277 = vector.broadcast %276 : vector<8x1xf32> to vector<8x32xf32>
    %278 = arith.subf %268, %277 : vector<8x32xf32>
    %279 = arith.mulf %278, %278 : vector<8x32xf32>
    %cst_112 = arith.constant dense<0.000000e+00> : vector<8xf32>
    %280 = vector.multi_reduction <add>, %279, %cst_112 [1] : vector<8x32xf32> to vector<8xf32>
    %281 = vector.shape_cast %280 : vector<8xf32> to vector<8x1xf32>
    %cst_113 = arith.constant 3.200000e+01 : f32
    %282 = vector.broadcast %cst_113 : f32 to vector<8x1xf32>
    %283 = arith.divf %281, %282 : vector<8x1xf32>
    %284 = vector.broadcast %276 : vector<8x1xf32> to vector<8x32xf32>
    %285 = arith.subf %268, %284 : vector<8x32xf32>
    %cst_114 = arith.constant 9.99999974E-6 : f32
    %286 = vector.broadcast %cst_114 : f32 to vector<8x1xf32>
    %287 = arith.addf %283, %286 : vector<8x1xf32>
    %288 = math.rsqrt %287 : vector<8x1xf32>
    %289 = vector.broadcast %288 : vector<8x1xf32> to vector<8x32xf32>
    %290 = arith.mulf %285, %289 : vector<8x32xf32>
    %291 = vector.broadcast %270 : vector<1x32xf32> to vector<8x32xf32>
    %292 = arith.mulf %290, %291 : vector<8x32xf32>
    %293 = vector.broadcast %272 : vector<1x32xf32> to vector<8x32xf32>
    %294 = arith.addf %292, %293 : vector<8x32xf32>
    %cst_115 = arith.constant dense<0.000000e+00> : vector<32xf32>
    %295 = vector.multi_reduction <add>, %294, %cst_115 [0] : vector<8x32xf32> to vector<32xf32>
    %296 = vector.shape_cast %295 : vector<32xf32> to vector<1x32xf32>
    %cst_116 = arith.constant 8.000000e+00 : f32
    %297 = vector.broadcast %cst_116 : f32 to vector<1x32xf32>
    %298 = arith.divf %296, %297 : vector<1x32xf32>
    %299 = arith.truncf %298 : vector<1x32xf32> to vector<1x32xbf16>
    %c0_117 = arith.constant 0 : index
    %c0_118 = arith.constant 0 : index
    %300 = vector.load %arg15[%c0_117, %c0_118] : memref<32x32xbf16, #tpu.memory_space<vmem>>, vector<32x32xbf16>
    %cst_119 = arith.constant dense<0.000000e+00> : vector<1x32xf32>
    %301 = tpu.matmul %299, %300, %cst_119 {dimension_numbers = #tpu.dot_dimension_numbers<[1], [0], [0], [1], [0, 0, 1, 1], [], []>} : vector<1x32xbf16>, vector<32x32xbf16>, vector<1x32xf32> -> vector<1x32xf32>
    %c0_120 = arith.constant 0 : index
    %c0_121 = arith.constant 0 : index
    %302 = vector.load %arg16[%c0_120, %c0_121] : memref<1x32xf32, #tpu.memory_space<vmem>>, vector<1x32xf32>
    %303 = arith.addf %301, %302 : vector<1x32xf32>
    %cst_122 = arith.constant 0.000000e+00 : f32
    %304 = vector.broadcast %cst_122 : f32 to vector<1x32xf32>
    %305 = arith.maximumf %303, %304 : vector<1x32xf32>
    %306 = arith.truncf %305 : vector<1x32xf32> to vector<1x32xbf16>
    %c0_123 = arith.constant 0 : index
    %c0_124 = arith.constant 0 : index
    %307 = vector.load %arg17[%c0_123, %c0_124] : memref<32x1xbf16, #tpu.memory_space<vmem>>, vector<32x1xbf16>
    %cst_125 = arith.constant dense<0.000000e+00> : vector<1x1xf32>
    %308 = tpu.matmul %306, %307, %cst_125 {dimension_numbers = #tpu.dot_dimension_numbers<[1], [0], [0], [1], [0, 0, 1, 1], [], []>} : vector<1x32xbf16>, vector<32x1xbf16>, vector<1x1xf32> -> vector<1x1xf32>
    %c0_126 = arith.constant 0 : index
    %c0_127 = arith.constant 0 : index
    %309 = vector.load %arg18[%c0_126, %c0_127] : memref<1x1xf32, #tpu.memory_space<vmem>>, vector<1x1xf32>
    %310 = arith.addf %308, %309 : vector<1x1xf32>
    %311 = arith.negf %310 : vector<1x1xf32>
    %312 = math.exp %311 : vector<1x1xf32>
    %cst_128 = arith.constant 1.000000e+00 : f32
    %313 = vector.broadcast %cst_128 : f32 to vector<1x1xf32>
    %314 = arith.addf %313, %312 : vector<1x1xf32>
    %315 = arith.divf %313, %314 : vector<1x1xf32>
    %c0_129 = arith.constant 0 : index
    %c0_130 = arith.constant 0 : index
    %c0_131 = arith.constant 0 : index
    %316 = vector.load %arg19[%c0_129, %c0_130, %c0_131] : memref<1x1x1xf32, #tpu.memory_space<vmem>>, vector<1x1x1xf32>
    %317 = vector.shape_cast %316 : vector<1x1x1xf32> to vector<1x1xf32>
    %318 = vector.shape_cast %315 : vector<1x1xf32> to vector<1x1x1xf32>
    tpu.vector_store %arg19[%c0_129, %c0_130, %c0_131], %318 {strides = array<i32>} : memref<1x1x1xf32, #tpu.memory_space<vmem>>, vector<1x1x1xf32>,
    return
  }
  func.func @transform_0(%arg0: i32) -> (i32, i32, i32) {
    %c0_i32 = arith.constant 0 : i32
    %c0_i32_0 = arith.constant 0 : i32
    %c0_i32_1 = arith.constant 0 : i32
    return %arg0, %c0_i32, %c0_i32_0 : i32, i32, i32
  }
  func.func @transform_1(%arg0: i32) -> (i32, i32, i32) {
    %c0_i32 = arith.constant 0 : i32
    %c0_i32_0 = arith.constant 0 : i32
    %c0_i32_1 = arith.constant 0 : i32
    %c0_i32_2 = arith.constant 0 : i32
    return %c0_i32, %c0_i32_0, %c0_i32_1 : i32, i32, i32
  }
  func.func @transform_2(%arg0: i32) -> (i32, i32, i32) {
    %c0_i32 = arith.constant 0 : i32
    %c0_i32_0 = arith.constant 0 : i32
    %c0_i32_1 = arith.constant 0 : i32
    %c0_i32_2 = arith.constant 0 : i32
    return %c0_i32, %c0_i32_0, %c0_i32_1 : i32, i32, i32
  }
  func.func @transform_3(%arg0: i32) -> (i32, i32, i32) {
    %c0_i32 = arith.constant 0 : i32
    %c0_i32_0 = arith.constant 0 : i32
    %c0_i32_1 = arith.constant 0 : i32
    %c0_i32_2 = arith.constant 0 : i32
    return %c0_i32, %c0_i32_0, %c0_i32_1 : i32, i32, i32
  }
  func.func @transform_4(%arg0: i32) -> (i32, i32, i32) {
    %c0_i32 = arith.constant 0 : i32
    %c0_i32_0 = arith.constant 0 : i32
    %c0_i32_1 = arith.constant 0 : i32
    %c0_i32_2 = arith.constant 0 : i32
    return %c0_i32, %c0_i32_0, %c0_i32_1 : i32, i32, i32
  }
  func.func @transform_5(%arg0: i32) -> (i32, i32, i32) {
    %c0_i32 = arith.constant 0 : i32
    %c0_i32_0 = arith.constant 0 : i32
    %c0_i32_1 = arith.constant 0 : i32
    %c0_i32_2 = arith.constant 0 : i32
    return %c0_i32, %c0_i32_0, %c0_i32_1 : i32, i32, i32
  }
  func.func @transform_6(%arg0: i32) -> (i32, i32, i32) {
    %c0_i32 = arith.constant 0 : i32
    %c0_i32_0 = arith.constant 0 : i32
    %c0_i32_1 = arith.constant 0 : i32
    %c0_i32_2 = arith.constant 0 : i32
    return %c0_i32, %c0_i32_0, %c0_i32_1 : i32, i32, i32
  }
  func.func @transform_7(%arg0: i32) -> (i32, i32, i32) {
    %c0_i32 = arith.constant 0 : i32
    %c0_i32_0 = arith.constant 0 : i32
    %c0_i32_1 = arith.constant 0 : i32
    %c0_i32_2 = arith.constant 0 : i32
    return %c0_i32, %c0_i32_0, %c0_i32_1 : i32, i32, i32
  }
  func.func @transform_8(%arg0: i32) -> (i32, i32, i32) {
    %c0_i32 = arith.constant 0 : i32
    %c0_i32_0 = arith.constant 0 : i32
    %c0_i32_1 = arith.constant 0 : i32
    %c0_i32_2 = arith.constant 0 : i32
    return %c0_i32, %c0_i32_0, %c0_i32_1 : i32, i32, i32
  }
  func.func @transform_9(%arg0: i32) -> (i32, i32, i32) {
    %c0_i32 = arith.constant 0 : i32
    %c0_i32_0 = arith.constant 0 : i32
    %c0_i32_1 = arith.constant 0 : i32
    %c0_i32_2 = arith.constant 0 : i32
    return %c0_i32, %c0_i32_0, %c0_i32_1 : i32, i32, i32
  }
  func.func @transform_10(%arg0: i32) -> (i32, i32, i32) {
    %c0_i32 = arith.constant 0 : i32
    %c0_i32_0 = arith.constant 0 : i32
    %c0_i32_1 = arith.constant 0 : i32
    %c0_i32_2 = arith.constant 0 : i32
    return %c0_i32, %c0_i32_0, %c0_i32_1 : i32, i32, i32
  }
  func.func @transform_11(%arg0: i32) -> (i32, i32, i32) {
    %c0_i32 = arith.constant 0 : i32
    %c0_i32_0 = arith.constant 0 : i32
    %c0_i32_1 = arith.constant 0 : i32
    %c0_i32_2 = arith.constant 0 : i32
    return %c0_i32, %c0_i32_0, %c0_i32_1 : i32, i32, i32
  }
  func.func @transform_12(%arg0: i32) -> (i32, i32, i32) {
    %c0_i32 = arith.constant 0 : i32
    %c0_i32_0 = arith.constant 0 : i32
    %c0_i32_1 = arith.constant 0 : i32
    %c0_i32_2 = arith.constant 0 : i32
    return %c0_i32, %c0_i32_0, %c0_i32_1 : i32, i32, i32
  }
  func.func @transform_13(%arg0: i32) -> (i32, i32, i32) {
    %c0_i32 = arith.constant 0 : i32
    %c0_i32_0 = arith.constant 0 : i32
    %c0_i32_1 = arith.constant 0 : i32
    %c0_i32_2 = arith.constant 0 : i32
    return %c0_i32, %c0_i32_0, %c0_i32_1 : i32, i32, i32
  }
  func.func @transform_14(%arg0: i32) -> (i32, i32) {
    %c0_i32 = arith.constant 0 : i32
    %c0_i32_0 = arith.constant 0 : i32
    %c0_i32_1 = arith.constant 0 : i32
    return %c0_i32, %c0_i32_0 : i32, i32
  }
  func.func @transform_15(%arg0: i32) -> (i32, i32) {
    %c0_i32 = arith.constant 0 : i32
    %c0_i32_0 = arith.constant 0 : i32
    %c0_i32_1 = arith.constant 0 : i32
    return %c0_i32, %c0_i32_0 : i32, i32
  }
  func.func @transform_16(%arg0: i32) -> (i32, i32) {
    %c0_i32 = arith.constant 0 : i32
    %c0_i32_0 = arith.constant 0 : i32
    %c0_i32_1 = arith.constant 0 : i32
    return %c0_i32, %c0_i32_0 : i32, i32
  }
  func.func @transform_17(%arg0: i32) -> (i32, i32) {
    %c0_i32 = arith.constant 0 : i32
    %c0_i32_0 = arith.constant 0 : i32
    %c0_i32_1 = arith.constant 0 : i32
    return %c0_i32, %c0_i32_0 : i32, i32
  }
  func.func @transform_18(%arg0: i32) -> (i32, i32, i32) {
    %c0_i32 = arith.constant 0 : i32
    %c0_i32_0 = arith.constant 0 : i32
    %c0_i32_1 = arith.constant 0 : i32
    return %arg0, %c0_i32, %c0_i32_0 : i32, i32, i32
  }
}

</mosaic_0001>

<llo_original>
// kernel: tpu_custom_call.1
$region0: #{tpu_custom_call.1}
  #allocation0 [shape = 'u32[]', space=smem, size = 0x4, offset = 0x4, fixed_abs, tag = 'smem constant byte address 0x4 - core index']
  #allocation1 [shape = 'u32[144,128]{1,0:T(1,128)}', space=vmem, size = 0x12000, scoped, tag = 'internal scratch']
  #allocation2 [shape = 'f32[1,1]{1,0:T(1,128)S(1)}', space=vmem, size = 0x200, scoped, tag = 'scoped memory for tpu_custom_call.1']
  %s0 = inlined_call_operand.vmem [shape: f32[2,8,32], index: 0, kind: input, shape index: {}]
  %s1 = inlined_call_operand.hbm [shape: f32[1,8,32], index: 1, kind: input, shape index: {}]
  %s2 = inlined_call_operand.vmem [shape: bf16[2,32,96], index: 2, kind: input, shape index: {}]
  %s3 = inlined_call_operand.vmem [shape: f32[2,1,96], index: 3, kind: input, shape index: {}]
  %s4 = inlined_call_operand.vmem [shape: bf16[2,32,32], index: 4, kind: input, shape index: {}]
  %s5 = inlined_call_operand.hbm [shape: f32[2,1,32], index: 5, kind: input, shape index: {}]
  %s6 = inlined_call_operand.vmem [shape: bf16[2,32,64], index: 6, kind: input, shape index: {}]
  %s7 = inlined_call_operand.hbm [shape: f32[2,1,64], index: 7, kind: input, shape index: {}]
  %s8 = inlined_call_operand.vmem [shape: bf16[2,64,32], index: 8, kind: input, shape index: {}]
  %s9 = inlined_call_operand.hbm [shape: f32[2,1,32], index: 9, kind: input, shape index: {}]
  %s10 = inlined_call_operand.hbm [shape: f32[2,1,32], index: 10, kind: input, shape index: {}]
  %s11 = inlined_call_operand.hbm [shape: f32[2,1,32], index: 11, kind: input, shape index: {}]
  %s12 = inlined_call_operand.hbm [shape: f32[2,1,32], index: 12, kind: input, shape index: {}]
  %s13 = inlined_call_operand.vmem [shape: f32[2,1,32], index: 13, kind: input, shape index: {}]
  %s14 = inlined_call_operand.vmem [shape: bf16[32,32], index: 14, kind: input, shape index: {}]
  %s15 = inlined_call_operand.vmem [shape: f32[1,32], index: 15, kind: input, shape index: {}]
  %s16 = inlined_call_operand.vmem [shape: bf16[32,1], index: 16, kind: input, shape index: {}]
  %s17 = inlined_call_operand.<no memory space> [shape: f32[1,1], index: 17, kind: input, shape index: {}]
  %s18 = inlined_call_operand.vmem [shape: f32[2,1,1], index: 18, kind: output, shape index: {}]
  %s19 = sld [smem:[#allocation0]]
  $region133: #{tpu_custom_call.1} parent=0
    _
  %s21 = ssub.s32 1, %s19
  %s22 = scalar_select 0, %s21, %s19
  %v23 = vstv %s17
  %24 = vst [vmem:[#allocation2] sm:$0x1] %v23
  $region1: #{tpu_custom_call.1} parent=0
    #allocation3 [shape = 'u8[4096]{0}', space=vmem, size = 0x1000, scoped, tag = 'input window, operand 1, single buffered']
    #allocation4 [shape = 's32[2]{0}', space=sflag, size = 0x8, scoped, tag = 'scoped memory for tpu_custom_call.1']
    #allocation5 [shape = 'u8[1024]{0}', space=vmem, size = 0x400, scoped, tag = 'input window, operand 5, single buffered']
    #allocation6 [shape = 's32[1]{0}', space=sflag, size = 0x4, scoped, tag = 'scoped memory for tpu_custom_call.1']
    #allocation7 [shape = 'u8[1024]{0}', space=vmem, size = 0x400, scoped, tag = 'input window, operand 7, single buffered']
    #allocation8 [shape = 'u8[1024]{0}', space=vmem, size = 0x400, scoped, tag = 'input window, operand 9, single buffered']
    #allocation9 [shape = 's32[1]{0}', space=sflag, size = 0x4, scoped, tag = 'scoped memory for tpu_custom_call.1']
    #allocation10 [shape = 'u8[1024]{0}', space=vmem, size = 0x400, scoped, tag = 'input window, operand 10, single buffered']
    #allocation11 [shape = 'u8[1024]{0}', space=vmem, size = 0x400, scoped, tag = 'input window, operand 11, single buffered']
    #allocation12 [shape = 's32[1]{0}', space=sflag, size = 0x4, scoped, tag = 'scoped memory for tpu_custom_call.1']
    #allocation13 [shape = 'u8[1024]{0}', space=vmem, size = 0x400, scoped, tag = 'input window, operand 12, single buffered']
    %25 = vsyncpa [#allocation4], 0
    %26 = vsyncpa [#allocation6], 0
    %27 = vsyncpa [#allocation9], 0
    %28 = vsyncpa [#allocation12], 0
    loop: start=0, step=1, limit=4
    $region2: #{tpu_custom_call.1} parent=1 // loop_pre_header
      _
    $region3: #{tpu_custom_call.1} parent=1 // loop_header
      %s30 = sphi 0, %s34
      %p31 = scmp.ge.s32.totalorder %s30, 4
      %s40 = sphi 0, %s42
      %s43 = sphi 0, %s40
      %s44 = sphi 0, %s43
      %s60 = sphi 0, %s44
      %s64 = sphi 0, %s64
      %s66 = sphi 0, %s64
      %s67 = sphi 0, %s66
      %s81 = sphi 0, %s67
      %s85 = sphi 0, %s85
      %s87 = sphi 0, %s85
      %s88 = sphi 0, %s87
      %s102 = sphi 0, %s88
      %s106 = sphi 0, %s106
      %s108 = sphi 0, %s106
      %s109 = sphi 0, %s108
      %s123 = sphi 0, %s109
      %s127 = sphi 0, %s127
      %s129 = sphi 0, %s127
      %s130 = sphi 0, %s129
      %s144 = sphi 0, %s130
      %s148 = sphi 0, %s148
      %s150 = sphi 0, %s148
      %s151 = sphi 0, %s150
      %s165 = sphi 0, %s151
      %s169 = sphi 0, %s169
      %s171 = sphi 0, %s169
      %s172 = sphi 0, %s171
      %s186 = sphi 0, %s172
      %s190 = sphi 0, %s190
      %s192 = sphi 0, %s190
      %s193 = sphi 0, %s192
      %s207 = sphi 0, %s193
      %s211 = sphi 0, %s211
      %s213 = sphi 0, %s211
      %s214 = sphi 0, %s213
      %s228 = sphi 0, %s214
      %s232 = sphi 0, %s232
      %s234 = sphi 0, %s232
      %s235 = sphi 0, %s234
      %s249 = sphi 0, %s235
      %s253 = sphi 0, %s253
      %s255 = sphi 0, %s253
      %s256 = sphi 0, %s255
      %s270 = sphi 0, %s256
      %s274 = sphi 0, %s274
      %s276 = sphi 0, %s274
      %s277 = sphi 0, %s276
      %s291 = sphi 0, %s277
      %s295 = sphi 0, %s295
      %s297 = sphi 0, %s295
      %s298 = sphi 0, %s297
      %s312 = sphi 0, %s298
      %s316 = sphi 0, %s316
      %s318 = sphi 0, %s316
      %s319 = sphi 0, %s318
      %s333 = sphi 0, %s319
      %s337 = sphi 0, %s337
      %s339 = sphi 0, %s337
      %s340 = sphi 0, %s339
      %s354 = sphi 0, %s340
      %s358 = sphi 0, %s358
      %s360 = sphi 0, %s358
      %s361 = sphi 0, %s360
      %s375 = sphi 0, %s361
      %s379 = sphi 0, %s379
      %s381 = sphi 0, %s379
      %s382 = sphi 0, %s381
      %s396 = sphi 0, %s382
      %s400 = sphi 0, %s400
      %s402 = sphi 0, %s400
      %s403 = sphi 0, %s402
      %s417 = sphi 0, %s403
      %s423 = sphi 0, %s425
      %s426 = sphi 0, %s423
      %s427 = sphi 0, %s426
      %s443 = sphi 0, %s427
    $region4: #{tpu_custom_call.1} parent=1 // loop_header_branch
      %33 = sbr.rel (%p31) target = $region8
    $region5: #{tpu_custom_call.1} parent=1 // loop_body
      %s35 = ssub.s32 %s30, 1
      %s36 = ssub.s32 %s30, 2
      %s37 = sadd.s32 %s30, 1
      %s38 = ssub.s32 %s30, %s37
      %p39 = scmp.eq.s32.totalorder %s38, 0
      %s41 = sadd.s32 %s40, 1
      %s42 = scalar_select %p39, %s40, %s41
      %p45 = pneg %p39
      %p46 = scmp.eq.s32.totalorder %s30, 1
      %p47 = por %p45, %p46
      %p48 = scmp.ne.s32.totalorder %s40, %s43
      %p49 = scmp.eq.s32.totalorder %s30, 0
      %p50 = por %p48, %p49
      %p51 = scmp.ne.s32.totalorder %s40, %s43
      %p52 = scmp.eq.s32.totalorder %s35, 1
      %p53 = por %p51, %p52
      %p54 = scmp.ne.s32.totalorder %s43, %s44
      %p55 = scmp.eq.s32.totalorder %s35, 0
      %p56 = por %p54, %p55
      %p57 = scmp.ne.s32.totalorder %s43, %s44
      %p58 = scmp.eq.s32.totalorder %s36, 1
      %p59 = por %p57, %p58
      %p61 = scmp.ne.s32.totalorder %s44, %s60
      %p62 = scmp.eq.s32.totalorder %s36, 0
      %p63 = por %p61, %p62
      %s65 = sadd.s32 %s64, 1
      %p68 = scmp.eq.s32.totalorder %s30, 1
      %p69 = scmp.ne.s32.totalorder %s64, %s66
      %p70 = scmp.eq.s32.totalorder %s30, 0
      %p71 = por %p69, %p70
      %p72 = scmp.ne.s32.totalorder %s64, %s66
      %p73 = scmp.eq.s32.totalorder %s35, 1
      %p74 = por %p72, %p73
      %p75 = scmp.ne.s32.totalorder %s66, %s67
      %p76 = scmp.eq.s32.totalorder %s35, 0
      %p77 = por %p75, %p76
      %p78 = scmp.ne.s32.totalorder %s66, %s67
      %p79 = scmp.eq.s32.totalorder %s36, 1
      %p80 = por %p78, %p79
      %p82 = scmp.ne.s32.totalorder %s67, %s81
      %p83 = scmp.eq.s32.totalorder %s36, 0
      %p84 = por %p82, %p83
      %s86 = sadd.s32 %s85, 1
      %p89 = scmp.eq.s32.totalorder %s30, 1
      %p90 = scmp.ne.s32.totalorder %s85, %s87
      %p91 = scmp.eq.s32.totalorder %s30, 0
      %p92 = por %p90, %p91
      %p93 = scmp.ne.s32.totalorder %s85, %s87
      %p94 = scmp.eq.s32.totalorder %s35, 1
      %p95 = por %p93, %p94
      %p96 = scmp.ne.s32.totalorder %s87, %s88
      %p97 = scmp.eq.s32.totalorder %s35, 0
      %p98 = por %p96, %p97
      %p99 = scmp.ne.s32.totalorder %s87, %s88
      %p100 = scmp.eq.s32.totalorder %s36, 1
      %p101 = por %p99, %p100
      %p103 = scmp.ne.s32.totalorder %s88, %s102
      %p104 = scmp.eq.s32.totalorder %s36, 0
      %p105 = por %p103, %p104
      %s107 = sadd.s32 %s106, 1
      %p110 = scmp.eq.s32.totalorder %s30, 1
      %p111 = scmp.ne.s32.totalorder %s106, %s108
      %p112 = scmp.eq.s32.totalorder %s30, 0
      %p113 = por %p111, %p112
      %p114 = scmp.ne.s32.totalorder %s106, %s108
      %p115 = scmp.eq.s32.totalorder %s35, 1
      %p116 = por %p114, %p115
      %p117 = scmp.ne.s32.totalorder %s108, %s109
      %p118 = scmp.eq.s32.totalorder %s35, 0
      %p119 = por %p117, %p118
      %p120 = scmp.ne.s32.totalorder %s108, %s109
      %p121 = scmp.eq.s32.totalorder %s36, 1
      %p122 = por %p120, %p121
      %p124 = scmp.ne.s32.totalorder %s109, %s123
      %p125 = scmp.eq.s32.totalorder %s36, 0
      %p126 = por %p124, %p125
      %s128 = sadd.s32 %s127, 1
      %p131 = scmp.eq.s32.totalorder %s30, 1
      %p132 = scmp.ne.s32.totalorder %s127, %s129
      %p133 = scmp.eq.s32.totalorder %s30, 0
      %p134 = por %p132, %p133
      %p135 = scmp.ne.s32.totalorder %s127, %s129
      %p136 = scmp.eq.s32.totalorder %s35, 1
      %p137 = por %p135, %p136
      %p138 = scmp.ne.s32.totalorder %s129, %s130
      %p139 = scmp.eq.s32.totalorder %s35, 0
      %p140 = por %p138, %p139
      %p141 = scmp.ne.s32.totalorder %s129, %s130
      %p142 = scmp.eq.s32.totalorder %s36, 1
      %p143 = por %p141, %p142
      %p145 = scmp.ne.s32.totalorder %s130, %s144
      %p146 = scmp.eq.s32.totalorder %s36, 0
      %p147 = por %p145, %p146
      %s149 = sadd.s32 %s148, 1
      %p152 = scmp.eq.s32.totalorder %s30, 1
      %p153 = scmp.ne.s32.totalorder %s148, %s150
      %p154 = scmp.eq.s32.totalorder %s30, 0
      %p155 = por %p153, %p154
      %p156 = scmp.ne.s32.totalorder %s148, %s150
      %p157 = scmp.eq.s32.totalorder %s35, 1
      %p158 = por %p156, %p157
      %p159 = scmp.ne.s32.totalorder %s150, %s151
      %p160 = scmp.eq.s32.totalorder %s35, 0
      %p161 = por %p159, %p160
      %p162 = scmp.ne.s32.totalorder %s150, %s151
      %p163 = scmp.eq.s32.totalorder %s36, 1
      %p164 = por %p162, %p163
      %p166 = scmp.ne.s32.totalorder %s151, %s165
      %p167 = scmp.eq.s32.totalorder %s36, 0
      %p168 = por %p166, %p167
      %s170 = sadd.s32 %s169, 1
      %p173 = scmp.eq.s32.totalorder %s30, 1
      %p174 = scmp.ne.s32.totalorder %s169, %s171
      %p175 = scmp.eq.s32.totalorder %s30, 0
      %p176 = por %p174, %p175
      %p177 = scmp.ne.s32.totalorder %s169, %s171
      %p178 = scmp.eq.s32.totalorder %s35, 1
      %p179 = por %p177, %p178
      %p180 = scmp.ne.s32.totalorder %s171, %s172
      %p181 = scmp.eq.s32.totalorder %s35, 0
      %p182 = por %p180, %p181
      %p183 = scmp.ne.s32.totalorder %s171, %s172
      %p184 = scmp.eq.s32.totalorder %s36, 1
      %p185 = por %p183, %p184
      %p187 = scmp.ne.s32.totalorder %s172, %s186
      %p188 = scmp.eq.s32.totalorder %s36, 0
      %p189 = por %p187, %p188
      %s191 = sadd.s32 %s190, 1
      %p194 = scmp.eq.s32.totalorder %s30, 1
      %p195 = scmp.ne.s32.totalorder %s190, %s192
      %p196 = scmp.eq.s32.totalorder %s30, 0
      %p197 = por %p195, %p196
      %p198 = scmp.ne.s32.totalorder %s190, %s192
      %p199 = scmp.eq.s32.totalorder %s35, 1
      %p200 = por %p198, %p199
      %p201 = scmp.ne.s32.totalorder %s192, %s193
      %p202 = scmp.eq.s32.totalorder %s35, 0
      %p203 = por %p201, %p202
      %p204 = scmp.ne.s32.totalorder %s192, %s193
      %p205 = scmp.eq.s32.totalorder %s36, 1
      %p206 = por %p204, %p205
      %p208 = scmp.ne.s32.totalorder %s193, %s207
      %p209 = scmp.eq.s32.totalorder %s36, 0
      %p210 = por %p208, %p209
      %s212 = sadd.s32 %s211, 1
      %p215 = scmp.eq.s32.totalorder %s30, 1
      %p216 = scmp.ne.s32.totalorder %s211, %s213
      %p217 = scmp.eq.s32.totalorder %s30, 0
      %p218 = por %p216, %p217
      %p219 = scmp.ne.s32.totalorder %s211, %s213
      %p220 = scmp.eq.s32.totalorder %s35, 1
      %p221 = por %p219, %p220
      %p222 = scmp.ne.s32.totalorder %s213, %s214
      %p223 = scmp.eq.s32.totalorder %s35, 0
      %p224 = por %p222, %p223
      %p225 = scmp.ne.s32.totalorder %s213, %s214
      %p226 = scmp.eq.s32.totalorder %s36, 1
      %p227 = por %p225, %p226
      %p229 = scmp.ne.s32.totalorder %s214, %s228
      %p230 = scmp.eq.s32.totalorder %s36, 0
      %p231 = por %p229, %p230
      %s233 = sadd.s32 %s232, 1
      %p236 = scmp.eq.s32.totalorder %s30, 1
      %p237 = scmp.ne.s32.totalorder %s232, %s234
      %p238 = scmp.eq.s32.totalorder %s30, 0
      %p239 = por %p237, %p238
      %p240 = scmp.ne.s32.totalorder %s232, %s234
      %p241 = scmp.eq.s32.totalorder %s35, 1
      %p242 = por %p240, %p241
      %p243 = scmp.ne.s32.totalorder %s234, %s235
      %p244 = scmp.eq.s32.totalorder %s35, 0
      %p245 = por %p243, %p244
      %p246 = scmp.ne.s32.totalorder %s234, %s235
      %p247 = scmp.eq.s32.totalorder %s36, 1
      %p248 = por %p246, %p247
      %p250 = scmp.ne.s32.totalorder %s235, %s249
      %p251 = scmp.eq.s32.totalorder %s36, 0
      %p252 = por %p250, %p251
      %s254 = sadd.s32 %s253, 1
      %p257 = scmp.eq.s32.totalorder %s30, 1
      %p258 = scmp.ne.s32.totalorder %s253, %s255
      %p259 = scmp.eq.s32.totalorder %s30, 0
      %p260 = por %p258, %p259
      %p261 = scmp.ne.s32.totalorder %s253, %s255
      %p262 = scmp.eq.s32.totalorder %s35, 1
      %p263 = por %p261, %p262
      %p264 = scmp.ne.s32.totalorder %s255, %s256
      %p265 = scmp.eq.s32.totalorder %s35, 0
      %p266 = por %p264, %p265
      %p267 = scmp.ne.s32.totalorder %s255, %s256
      %p268 = scmp.eq.s32.totalorder %s36, 1
      %p269 = por %p267, %p268
      %p271 = scmp.ne.s32.totalorder %s256, %s270
      %p272 = scmp.eq.s32.totalorder %s36, 0
      %p273 = por %p271, %p272
      %s275 = sadd.s32 %s274, 1
      %p278 = scmp.eq.s32.totalorder %s30, 1
      %p279 = scmp.ne.s32.totalorder %s274, %s276
      %p280 = scmp.eq.s32.totalorder %s30, 0
      %p281 = por %p279, %p280
      %p282 = scmp.ne.s32.totalorder %s274, %s276
      %p283 = scmp.eq.s32.totalorder %s35, 1
      %p284 = por %p282, %p283
      %p285 = scmp.ne.s32.totalorder %s276, %s277
      %p286 = scmp.eq.s32.totalorder %s35, 0
      %p287 = por %p285, %p286
      %p288 = scmp.ne.s32.totalorder %s276, %s277
      %p289 = scmp.eq.s32.totalorder %s36, 1
      %p290 = por %p288, %p289
      %p292 = scmp.ne.s32.totalorder %s277, %s291
      %p293 = scmp.eq.s32.totalorder %s36, 0
      %p294 = por %p292, %p293
      %s296 = sadd.s32 %s295, 1
      %p299 = scmp.eq.s32.totalorder %s30, 1
      %p300 = scmp.ne.s32.totalorder %s295, %s297
      %p301 = scmp.eq.s32.totalorder %s30, 0
      %p302 = por %p300, %p301
      %p303 = scmp.ne.s32.totalorder %s295, %s297
      %p304 = scmp.eq.s32.totalorder %s35, 1
      %p305 = por %p303, %p304
      %p306 = scmp.ne.s32.totalorder %s297, %s298
      %p307 = scmp.eq.s32.totalorder %s35, 0
      %p308 = por %p306, %p307
      %p309 = scmp.ne.s32.totalorder %s297, %s298
      %p310 = scmp.eq.s32.totalorder %s36, 1
      %p311 = por %p309, %p310
      %p313 = scmp.ne.s32.totalorder %s298, %s312
      %p314 = scmp.eq.s32.totalorder %s36, 0
      %p315 = por %p313, %p314
      %s317 = sadd.s32 %s316, 1
      %p320 = scmp.eq.s32.totalorder %s30, 1
      %p321 = scmp.ne.s32.totalorder %s316, %s318
      %p322 = scmp.eq.s32.totalorder %s30, 0
      %p323 = por %p321, %p322
      %p324 = scmp.ne.s32.totalorder %s316, %s318
      %p325 = scmp.eq.s32.totalorder %s35, 1
      %p326 = por %p324, %p325
      %p327 = scmp.ne.s32.totalorder %s318, %s319
      %p328 = scmp.eq.s32.totalorder %s35, 0
      %p329 = por %p327, %p328
      %p330 = scmp.ne.s32.totalorder %s318, %s319
      %p331 = scmp.eq.s32.totalorder %s36, 1
      %p332 = por %p330, %p331
      %p334 = scmp.ne.s32.totalorder %s319, %s333
      %p335 = scmp.eq.s32.totalorder %s36, 0
      %p336 = por %p334, %p335
      %s338 = sadd.s32 %s337, 1
      %p341 = scmp.eq.s32.totalorder %s30, 1
      %p342 = scmp.ne.s32.totalorder %s337, %s339
      %p343 = scmp.eq.s32.totalorder %s30, 0
      %p344 = por %p342, %p343
      %p345 = scmp.ne.s32.totalorder %s337, %s339
      %p346 = scmp.eq.s32.totalorder %s35, 1
      %p347 = por %p345, %p346
      %p348 = scmp.ne.s32.totalorder %s339, %s340
      %p349 = scmp.eq.s32.totalorder %s35, 0
      %p350 = por %p348, %p349
      %p351 = scmp.ne.s32.totalorder %s339, %s340
      %p352 = scmp.eq.s32.totalorder %s36, 1
      %p353 = por %p351, %p352
      %p355 = scmp.ne.s32.totalorder %s340, %s354
      %p356 = scmp.eq.s32.totalorder %s36, 0
      %p357 = por %p355, %p356
      %s359 = sadd.s32 %s358, 1
      %p362 = scmp.eq.s32.totalorder %s30, 1
      %p363 = scmp.ne.s32.totalorder %s358, %s360
      %p364 = scmp.eq.s32.totalorder %s30, 0
      %p365 = por %p363, %p364
      %p366 = scmp.ne.s32.totalorder %s358, %s360
      %p367 = scmp.eq.s32.totalorder %s35, 1
      %p368 = por %p366, %p367
      %p369 = scmp.ne.s32.totalorder %s360, %s361
      %p370 = scmp.eq.s32.totalorder %s35, 0
      %p371 = por %p369, %p370
      %p372 = scmp.ne.s32.totalorder %s360, %s361
      %p373 = scmp.eq.s32.totalorder %s36, 1
      %p374 = por %p372, %p373
      %p376 = scmp.ne.s32.totalorder %s361, %s375
      %p377 = scmp.eq.s32.totalorder %s36, 0
      %p378 = por %p376, %p377
      %s380 = sadd.s32 %s379, 1
      %p383 = scmp.eq.s32.totalorder %s30, 1
      %p384 = scmp.ne.s32.totalorder %s379, %s381
      %p385 = scmp.eq.s32.totalorder %s30, 0
      %p386 = por %p384, %p385
      %p387 = scmp.ne.s32.totalorder %s379, %s381
      %p388 = scmp.eq.s32.totalorder %s35, 1
      %p389 = por %p387, %p388
      %p390 = scmp.ne.s32.totalorder %s381, %s382
      %p391 = scmp.eq.s32.totalorder %s35, 0
      %p392 = por %p390, %p391
      %p393 = scmp.ne.s32.totalorder %s381, %s382
      %p394 = scmp.eq.s32.totalorder %s36, 1
      %p395 = por %p393, %p394
      %p397 = scmp.ne.s32.totalorder %s382, %s396
      %p398 = scmp.eq.s32.totalorder %s36, 0
      %p399 = por %p397, %p398
      %s401 = sadd.s32 %s400, 1
      %p404 = scmp.eq.s32.totalorder %s30, 1
      %p405 = scmp.ne.s32.totalorder %s400, %s402
      %p406 = scmp.eq.s32.totalorder %s30, 0
      %p407 = por %p405, %p406
      %p408 = scmp.ne.s32.totalorder %s400, %s402
      %p409 = scmp.eq.s32.totalorder %s35, 1
      %p410 = por %p408, %p409
      %p411 = scmp.ne.s32.totalorder %s402, %s403
      %p412 = scmp.eq.s32.totalorder %s35, 0
      %p413 = por %p411, %p412
      %p414 = scmp.ne.s32.totalorder %s402, %s403
      %p415 = scmp.eq.s32.totalorder %s36, 1
      %p416 = por %p414, %p415
      %p418 = scmp.ne.s32.totalorder %s403, %s417
      %p419 = scmp.eq.s32.totalorder %s36, 0
      %p420 = por %p418, %p419
      %s421 = ssub.s32 %s30, %s37
      %p422 = scmp.eq.s32.totalorder %s421, 0
      %s424 = sadd.s32 %s423, 1
      %s425 = scalar_select %p422, %s423, %s424
      %p428 = pneg %p422
      %p429 = scmp.eq.s32.totalorder %s30, 1
      %p430 = por %p428, %p429
      %p431 = scmp.ne.s32.totalorder %s423, %s426
      %p432 = scmp.eq.s32.totalorder %s30, 0
      %p433 = por %p431, %p432
      %p434 = scmp.ne.s32.totalorder %s423, %s426
      %p435 = scmp.eq.s32.totalorder %s35, 1
      %p436 = por %p434, %p435
      %p437 = scmp.ne.s32.totalorder %s426, %s427
      %p438 = scmp.eq.s32.totalorder %s35, 0
      %p439 = por %p437, %p438
      %p440 = scmp.ne.s32.totalorder %s426, %s427
      %p441 = scmp.eq.s32.totalorder %s36, 1
      %p442 = por %p440, %p441
      %p444 = scmp.ne.s32.totalorder %s427, %s443
      %p445 = scmp.eq.s32.totalorder %s36, 0
      %p446 = por %p444, %p445
      %p447 = scmp.le.s32.totalorder 1, %s30
      %p448 = scmp.lt.s32.totalorder %s30, 3
      %p449 = pnand %p447, %p448
      %p450 = pneg %p449
      // Predicated region
      $region9: #{tpu_custom_call.1} parent=5 // pred_check
        _
      $region10: #{tpu_custom_call.1} parent=5 // pred_check_branch
        %452 = sbr.rel (%p449) target = $region12
      $region11: #{tpu_custom_call.1} parent=5 // pred_region
        %s453 = ssub.s32 %s30, 1
        // Predicated region
        $region13: #{tpu_custom_call.1} parent=11 // pred_check
          %p454 = pneg %p77
        $region14: #{tpu_custom_call.1} parent=11 // pred_check_branch
          %456 = sbr.rel (%p454) target = $region16
        $region15: #{tpu_custom_call.1} parent=11 // pred_region
          %s458 = ssub.s32 128, 128
          %459 = vsyncadd [#allocation4], %s458
          %s461 = sshll.u32 [#allocation3], 4
          %s462 = int_to_ptr.vmem [resolvable:$true] %s461
          %464 = dma.hbm_to_vmem [thread:$0]  %s1, 128, %s462, [#allocation4]
        $region16: #{tpu_custom_call.1} parent=11 // pred_fallthru
          _
        // Predicated region
        $region17: #{tpu_custom_call.1} parent=11 // pred_check
          %p465 = pneg %p98
        $region18: #{tpu_custom_call.1} parent=11 // pred_check_branch
          %467 = sbr.rel (%p465) target = $region20
        $region19: #{tpu_custom_call.1} parent=11 // pred_region
          _
        $region20: #{tpu_custom_call.1} parent=11 // pred_fallthru
          _
        // Predicated region
        $region21: #{tpu_custom_call.1} parent=11 // pred_check
          %p468 = pneg %p119
        $region22: #{tpu_custom_call.1} parent=11 // pred_check_branch
          %470 = sbr.rel (%p468) target = $region24
        $region23: #{tpu_custom_call.1} parent=11 // pred_region
          _
        $region24: #{tpu_custom_call.1} parent=11 // pred_fallthru
          _
        // Predicated region
        $region25: #{tpu_custom_call.1} parent=11 // pred_check
          %p471 = pneg %p140
        $region26: #{tpu_custom_call.1} parent=11 // pred_check_branch
          %473 = sbr.rel (%p471) target = $region28
        $region27: #{tpu_custom_call.1} parent=11 // pred_region
          _
        $region28: #{tpu_custom_call.1} parent=11 // pred_fallthru
          _
        // Predicated region
        $region29: #{tpu_custom_call.1} parent=11 // pred_check
          %p474 = pneg %p161
        $region30: #{tpu_custom_call.1} parent=11 // pred_check_branch
          %476 = sbr.rel (%p474) target = $region32
        $region31: #{tpu_custom_call.1} parent=11 // pred_region
          %s478 = ssub.s32 32, 32
          %479 = vsyncadd [#allocation6], %s478
          %s480 = sshll.u32 [#allocation5], 4
          %s481 = int_to_ptr.vmem [resolvable:$true] %s480
          %486 = dma.hbm_to_vmem [thread:$0]  %s5, 32, %s481, [#allocation6], 16, 16, 1
        $region32: #{tpu_custom_call.1} parent=11 // pred_fallthru
          _
        // Predicated region
        $region33: #{tpu_custom_call.1} parent=11 // pred_check
          %p487 = pneg %p182
        $region34: #{tpu_custom_call.1} parent=11 // pred_check_branch
          %489 = sbr.rel (%p487) target = $region36
        $region35: #{tpu_custom_call.1} parent=11 // pred_region
          _
        $region36: #{tpu_custom_call.1} parent=11 // pred_fallthru
          _
        // Predicated region
        $region37: #{tpu_custom_call.1} parent=11 // pred_check
          %p490 = pneg %p203
        $region38: #{tpu_custom_call.1} parent=11 // pred_check_branch
          %492 = sbr.rel (%p490) target = $region40
        $region39: #{tpu_custom_call.1} parent=11 // pred_region
          %s494 = ssub.s32 32, 32
          %495 = vsyncadd [#allocation6], %s494
          %s496 = sshll.u32 [#allocation7], 4
          %s497 = int_to_ptr.vmem [resolvable:$true] %s496
          %502 = dma.hbm_to_vmem [thread:$0]  %s7, 32, %s497, [#allocation6], 16, 16, 1
        $region40: #{tpu_custom_call.1} parent=11 // pred_fallthru
          _
        // Predicated region
        $region41: #{tpu_custom_call.1} parent=11 // pred_check
          %p503 = pneg %p224
        $region42: #{tpu_custom_call.1} parent=11 // pred_check_branch
          %505 = sbr.rel (%p503) target = $region44
        $region43: #{tpu_custom_call.1} parent=11 // pred_region
          _
        $region44: #{tpu_custom_call.1} parent=11 // pred_fallthru
          _
        // Predicated region
        $region45: #{tpu_custom_call.1} parent=11 // pred_check
          %p506 = pneg %p245
        $region46: #{tpu_custom_call.1} parent=11 // pred_check_branch
          %508 = sbr.rel (%p506) target = $region48
        $region47: #{tpu_custom_call.1} parent=11 // pred_region
          %s510 = ssub.s32 32, 32
          %511 = vsyncadd [#allocation9], %s510
          %s512 = sshll.u32 [#allocation8], 4
          %s513 = int_to_ptr.vmem [resolvable:$true] %s512
          %518 = dma.hbm_to_vmem [thread:$0]  %s9, 32, %s513, [#allocation9], 16, 16, 1
        $region48: #{tpu_custom_call.1} parent=11 // pred_fallthru
          _
        // Predicated region
        $region49: #{tpu_custom_call.1} parent=11 // pred_check
          %p519 = pneg %p266
        $region50: #{tpu_custom_call.1} parent=11 // pred_check_branch
          %521 = sbr.rel (%p519) target = $region52
        $region51: #{tpu_custom_call.1} parent=11 // pred_region
          %s523 = ssub.s32 32, 32
          %524 = vsyncadd [#allocation9], %s523
          %s525 = sshll.u32 [#allocation10], 4
          %s526 = int_to_ptr.vmem [resolvable:$true] %s525
          %531 = dma.hbm_to_vmem [thread:$0]  %s10, 32, %s526, [#allocation9], 16, 16, 1
        $region52: #{tpu_custom_call.1} parent=11 // pred_fallthru
          _
        // Predicated region
        $region53: #{tpu_custom_call.1} parent=11 // pred_check
          %p532 = pneg %p287
        $region54: #{tpu_custom_call.1} parent=11 // pred_check_branch
          %534 = sbr.rel (%p532) target = $region56
        $region55: #{tpu_custom_call.1} parent=11 // pred_region
          %s536 = ssub.s32 32, 32
          %537 = vsyncadd [#allocation12], %s536
          %s538 = sshll.u32 [#allocation11], 4
          %s539 = int_to_ptr.vmem [resolvable:$true] %s538
          %544 = dma.hbm_to_vmem [thread:$0]  %s11, 32, %s539, [#allocation12], 16, 16, 1
        $region56: #{tpu_custom_call.1} parent=11 // pred_fallthru
          _
        // Predicated region
        $region57: #{tpu_custom_call.1} parent=11 // pred_check
          %p545 = pneg %p308
        $region58: #{tpu_custom_call.1} parent=11 // pred_check_branch
          %547 = sbr.rel (%p545) target = $region60
        $region59: #{tpu_custom_call.1} parent=11 // pred_region
          %s549 = ssub.s32 32, 32
          %550 = vsyncadd [#allocation12], %s549
          %s551 = sshll.u32 [#allocation13], 4
          %s552 = int_to_ptr.vmem [resolvable:$true] %s551
          %557 = dma.hbm_to_vmem [thread:$0]  %s12, 32, %s552, [#allocation12], 16, 16, 1
        $region60: #{tpu_custom_call.1} parent=11 // pred_fallthru
          _
        // Predicated region
        $region61: #{tpu_custom_call.1} parent=11 // pred_check
          %p558 = pneg %p329
        $region62: #{tpu_custom_call.1} parent=11 // pred_check_branch
          %560 = sbr.rel (%p558) target = $region64
        $region63: #{tpu_custom_call.1} parent=11 // pred_region
          _
        $region64: #{tpu_custom_call.1} parent=11 // pred_fallthru
          _
        // Predicated region
        $region65: #{tpu_custom_call.1} parent=11 // pred_check
          %p561 = pneg %p350
        $region66: #{tpu_custom_call.1} parent=11 // pred_check_branch
          %563 = sbr.rel (%p561) target = $region68
        $region67: #{tpu_custom_call.1} parent=11 // pred_region
          _
        $region68: #{tpu_custom_call.1} parent=11 // pred_fallthru
          _
        // Predicated region
        $region69: #{tpu_custom_call.1} parent=11 // pred_check
          %p564 = pneg %p371
        $region70: #{tpu_custom_call.1} parent=11 // pred_check_branch
          %566 = sbr.rel (%p564) target = $region72
        $region71: #{tpu_custom_call.1} parent=11 // pred_region
          _
        $region72: #{tpu_custom_call.1} parent=11 // pred_fallthru
          _
        // Predicated region
        $region73: #{tpu_custom_call.1} parent=11 // pred_check
          %p567 = pneg %p392
        $region74: #{tpu_custom_call.1} parent=11 // pred_check_branch
          %569 = sbr.rel (%p567) target = $region76
        $region75: #{tpu_custom_call.1} parent=11 // pred_region
          _
        $region76: #{tpu_custom_call.1} parent=11 // pred_fallthru
          _
        // Predicated region
        $region77: #{tpu_custom_call.1} parent=11 // pred_check
          %p570 = pneg %p413
        $region78: #{tpu_custom_call.1} parent=11 // pred_check_branch
          %572 = sbr.rel (%p570) target = $region80
        $region79: #{tpu_custom_call.1} parent=11 // pred_region
          _
        $region80: #{tpu_custom_call.1} parent=11 // pred_fallthru
          _
      $region12: #{tpu_custom_call.1} parent=5 // pred_fallthru
        _
      %p573 = scmp.lt.s32.totalorder %s30, 2
      // Predicated region
      $region81: #{tpu_custom_call.1} parent=5 // pred_check
        %p574 = pneg %p573
      $region82: #{tpu_custom_call.1} parent=5 // pred_check_branch
        %576 = sbr.rel (%p574) target = $region84
      $region83: #{tpu_custom_call.1} parent=5 // pred_region
        // Predicated region
        $region85: #{tpu_custom_call.1} parent=83 // pred_check
          %p577 = pneg %p50
        $region86: #{tpu_custom_call.1} parent=83 // pred_check_branch
          %579 = sbr.rel (%p577) target = $region88
        $region87: #{tpu_custom_call.1} parent=83 // pred_region
          %p580 = scmp.lt.s32.totalorder %s30, 1
          %s581 = scalar_select %p580, %s30, 1
          %s582 = smul.addr %s581, 8
          %s583 = scalar_lea.vmem %s0, %s582
        $region88: #{tpu_custom_call.1} parent=83 // pred_fallthru
          _
      $region84: #{tpu_custom_call.1} parent=5 // pred_fallthru
        _
      %p584 = scmp.le.s32.totalorder 1, %s30
      %p585 = scmp.lt.s32.totalorder %s30, 3
      %p586 = pnand %p584, %p585
      %p587 = pneg %p586
      // Predicated region
      $region89: #{tpu_custom_call.1} parent=5 // pred_check
        _
      $region90: #{tpu_custom_call.1} parent=5 // pred_check_branch
        %589 = sbr.rel (%p586) target = $region92
      $region91: #{tpu_custom_call.1} parent=5 // pred_region
        %s590 = ssub.s32 %s30, 1
        // Predicated region
        $region93: #{tpu_custom_call.1} parent=91 // pred_check
          %p591 = pneg %p77
        $region94: #{tpu_custom_call.1} parent=91 // pred_check_branch
          %593 = sbr.rel (%p591) target = $region96
        $region95: #{tpu_custom_call.1} parent=91 // pred_region
          %594 = dma.done [#allocation4], 128
        $region96: #{tpu_custom_call.1} parent=91 // pred_fallthru
          _
        // Predicated region
        $region97: #{tpu_custom_call.1} parent=91 // pred_check
          %p595 = pneg %p161
        $region98: #{tpu_custom_call.1} parent=91 // pred_check_branch
          %597 = sbr.rel (%p595) target = $region100
        $region99: #{tpu_custom_call.1} parent=91 // pred_region
          %598 = dma.done [#allocation6], 32
        $region100: #{tpu_custom_call.1} parent=91 // pred_fallthru
          _
        // Predicated region
        $region101: #{tpu_custom_call.1} parent=91 // pred_check
          %p599 = pneg %p203
        $region102: #{tpu_custom_call.1} parent=91 // pred_check_branch
          %601 = sbr.rel (%p599) target = $region104
        $region103: #{tpu_custom_call.1} parent=91 // pred_region
          %602 = dma.done [#allocation6], 32
        $region104: #{tpu_custom_call.1} parent=91 // pred_fallthru
          _
        // Predicated region
        $region105: #{tpu_custom_call.1} parent=91 // pred_check
          %p603 = pneg %p245
        $region106: #{tpu_custom_call.1} parent=91 // pred_check_branch
          %605 = sbr.rel (%p603) target = $region108
        $region107: #{tpu_custom_call.1} parent=91 // pred_region
          %606 = dma.done [#allocation9], 32
        $region108: #{tpu_custom_call.1} parent=91 // pred_fallthru
          _
        // Predicated region
        $region109: #{tpu_custom_call.1} parent=91 // pred_check
          %p607 = pneg %p266
        $region110: #{tpu_custom_call.1} parent=91 // pred_check_branch
          %609 = sbr.rel (%p607) target = $region112
        $region111: #{tpu_custom_call.1} parent=91 // pred_region
          %610 = dma.done [#allocation9], 32
        $region112: #{tpu_custom_call.1} parent=91 // pred_fallthru
          _
        // Predicated region
        $region113: #{tpu_custom_call.1} parent=91 // pred_check
          %p611 = pneg %p287
        $region114: #{tpu_custom_call.1} parent=91 // pred_check_branch
          %613 = sbr.rel (%p611) target = $region116
        $region115: #{tpu_custom_call.1} parent=91 // pred_region
          %614 = dma.done [#allocation12], 32
        $region116: #{tpu_custom_call.1} parent=91 // pred_fallthru
          _
        // Predicated region
        $region117: #{tpu_custom_call.1} parent=91 // pred_check
          %p615 = pneg %p308
        $region118: #{tpu_custom_call.1} parent=91 // pred_check_branch
          %617 = sbr.rel (%p615) target = $region120
        $region119: #{tpu_custom_call.1} parent=91 // pred_region
          %618 = dma.done [#allocation12], 32
        $region120: #{tpu_custom_call.1} parent=91 // pred_fallthru
          _
        %p619 = scmp.lt.s32.totalorder %s35, 1
        %s620 = scalar_select %p619, %s35, 1
        %s621 = smul.addr %s620, 8
        %s622 = scalar_lea.vmem %s0, %s621
        %p623 = pneg %p56
        %p624 = pneg %p53
        %p625 = pneg %p77
        %p626 = pneg %p74
        %p627 = pneg %p98
        %p628 = pneg %p95
        %p629 = pneg %p119
        %p630 = pneg %p116
        %p631 = pneg %p140
        %p632 = pneg %p137
        %p633 = pneg %p161
        %p634 = pneg %p158
        %p635 = pneg %p182
        %p636 = pneg %p179
        %p637 = pneg %p203
        %p638 = pneg %p200
        %p639 = pneg %p224
        %p640 = pneg %p221
        %p641 = pneg %p245
        %p642 = pneg %p242
        %p643 = pneg %p266
        %p644 = pneg %p263
        %p645 = pneg %p287
        %p646 = pneg %p284
        %p647 = pneg %p308
        %p648 = pneg %p305
        %p649 = pneg %p329
        %p650 = pneg %p326
        %p651 = pneg %p350
        %p652 = pneg %p347
        %p653 = pneg %p371
        %p654 = pneg %p368
        %p655 = pneg %p392
        %p656 = pneg %p389
        %p657 = pneg %p413
        %p658 = pneg %p410
        %p659 = pneg %p439
        %p660 = pneg %p436
        %p661 = scmp.lt.s32.totalorder %s35, 1
        %s662 = scalar_select %p661, %s35, 1
        %s663 = scalar_lea.vmem %s18, %s662
        %p664 = scmp.lt.s32.totalorder %s35, 1
        %s665 = scalar_select %p664, %s35, 1
        %s666 = smul.addr %s665, 8
        %s667 = scalar_lea.vmem %s0, %s666
        %p668 = scmp.lt.s32.totalorder %s35, 1
        %s669 = scalar_select %p668, %s35, 1
        %s670 = scalar_lea.vmem %s18, %s669
        %v672 = vld [vmem:[%s667] sm:$0xff]
        %v673 = vld [vmem:[#allocation3] sm:$0xff]
        %v674 = vadd.f32 %v672, %v673
        %v675 = vpack.c.bf16 %v674, %v674
        %v676 = vld [vmem:[%s2] sm:$0xf]
        %v677 = vld [vmem:[%s2 + $0x4] sm:$0xf]
        %v678 = vld [vmem:[%s2 + $0x8] sm:$0xf]
        %v679 = vld [vmem:[%s2 + $0xc] sm:$0xf]
        %v680 = vld [vmem:[%s3] sm:$0x1]
        %v682 = vlaneseq
        %v683 = vshrl.u32 %v682, 7
        %v684 = vsub.s32 0, %v683
        %v685 = vrot.slane %v680, %v684
        %v691 = vunpack.c.l.b16 %v676
        %v692 = vunpack.c.l.b16 %v677
        %v693 = vunpack.c.l.b16 %v678
        %v694 = vunpack.c.l.b16 %v679
        %v695 = vpack.c.b16 %v692, %v691
        %v696 = vpack.c.b16 %v694, %v693
        %vm699 = vcmask 261120
        %v701 = vsel %vm699, %v675, 0
        %703 = vmatprep.subr.bf16.mxu0 0
        %704 = vmatpush1.bf16.msra.mxu0 %v695
        %705 = vmatprep.subr.bf16.mxu0 0
        %706 = vmatpush1.bf16.msra.mxu0 %v696
        %707 = vmatprep.subr.bf16.mxu0 0
        %708 = vmatpush1.bf16.msra.mxu0 0
        %709 = vmatprep.subr.bf16.mxu0 0
        %710 = vmatpush1.bf16.msra.mxu0 0
        %711 = vmatprep.subr.bf16.mxu0 0
        %712 = vmatpush1.bf16.msra.mxu0 0
        %713 = vmatprep.subr.bf16.mxu0 0
        %714 = vmatpush1.bf16.msra.mxu0 0
        %715 = vmatprep.subr.bf16.mxu0 0
        %716 = vmatpush1.bf16.msra.mxu0 0
        %717 = vmatprep.subr.bf16.mxu0 0
        %718 = vmatpush1.bf16.msra.mxu0 0
        %719 = vmatprep.subr.bf16.mxu0 0
        %720 = vmatpush1.bf16.msra.mxu0 0
        %721 = vmatprep.subr.bf16.mxu0 0
        %722 = vmatpush1.bf16.msra.mxu0 0
        %723 = vmatprep.subr.bf16.mxu0 0
        %724 = vmatpush1.bf16.msra.mxu0 0
        %725 = vmatprep.subr.bf16.mxu0 0
        %726 = vmatpush1.bf16.msra.mxu0 0
        %727 = vmatprep.subr.bf16.mxu0 0
        %728 = vmatpush1.bf16.msra.mxu0 0
        %729 = vmatprep.subr.bf16.mxu0 0
        %730 = vmatpush1.bf16.msra.mxu0 0
        %731 = vmatprep.subr.bf16.mxu0 0
        %732 = vmatpush1.bf16.msra.mxu0 0
        %733 = vmatprep.subr.bf16.mxu0 0
        %734 = vmatpush1.bf16.msra.mxu0 0
        %735 = vmatprep.mubr.bf16.mxu0 0
        %736 = vmatmul.mubr.bf16.gmra.mrb[0].mxu0 %v701
        %v737 = vpop.f32.mrb[0].mxu0
        %v738 = vadd.f32 %v685, %v737
        %v739 = vpop.f32.mrb[0].mxu0
        %v740 = vpop.f32.mrb[0].mxu0
        %v741 = vpop.f32.mrb[0].mxu0
        %742 = vdwg.mxu0
        %744 = vrot.lane.b32.xlu0 %v738, 120
        %v745 = vpop.permute.xlu0 %744
        %747 = vrot.lane.b32.xlu0 %v738, 112
        %v748 = vpop.permute.xlu0 %747
        %750 = vrot.lane.b32.xlu0 %v738, 104
        %v751 = vpop.permute.xlu0 %750
        %v753 = vpack.c.bf16 %v738, %v738
        %v754 = vpack.c.bf16 %v745, %v745
        %v755 = vpack.c.bf16 %v748, %v748
        %v756 = vpack.c.bf16 %v751, %v751
        %758 = vrot.lane.b32.xlu0 %v753, 96
        %v759 = vpop.permute.xlu0 %758
        %vm760 = vcmask 64512
        %v762 = vsel %vm760, %v753, 0
        %v765 = vsel %vm760, %v759, 0
        %767 = vmatprep.subr.bf16.mxu0 0
        %768 = vmatpush1.bf16.xpose.msra.mxu0 %v765
        %769 = vmatprep.subr.bf16.mxu0 0
        %770 = vmatpush1.bf16.xpose.msra.mxu0 0
        %771 = vmatprep.subr.bf16.mxu0 0
        %772 = vmatpush1.bf16.xpose.msra.mxu0 0
        %773 = vmatprep.subr.bf16.mxu0 0
        %774 = vmatpush1.bf16.xpose.msra.mxu0 0
        %775 = vmatprep.subr.bf16.mxu0 0
        %776 = vmatpush1.bf16.xpose.msra.mxu0 0
        %777 = vmatprep.subr.bf16.mxu0 0
        %778 = vmatpush1.bf16.xpose.msra.mxu0 0
        %779 = vmatprep.subr.bf16.mxu0 0
        %780 = vmatpush1.bf16.xpose.msra.mxu0 0
        %781 = vmatprep.subr.bf16.mxu0 0
        %782 = vmatpush1.bf16.xpose.msra.mxu0 0
        %783 = vmatprep.subr.bf16.mxu0 0
        %784 = vmatpush1.bf16.xpose.msra.mxu0 0
        %785 = vmatprep.subr.bf16.mxu0 0
        %786 = vmatpush1.bf16.xpose.msra.mxu0 0
        %787 = vmatprep.subr.bf16.mxu0 0
        %788 = vmatpush1.bf16.xpose.msra.mxu0 0
        %789 = vmatprep.subr.bf16.mxu0 0
        %790 = vmatpush1.bf16.xpose.msra.mxu0 0
        %791 = vmatprep.subr.bf16.mxu0 0
        %792 = vmatpush1.bf16.xpose.msra.mxu0 0
        %793 = vmatprep.subr.bf16.mxu0 0
        %794 = vmatpush1.bf16.xpose.msra.mxu0 0
        %795 = vmatprep.subr.bf16.mxu0 0
        %796 = vmatpush1.bf16.xpose.msra.mxu0 0
        %797 = vmatprep.subr.bf16.mxu0 0
        %798 = vmatpush1.bf16.xpose.msra.mxu0 0
        %799 = vmatprep.mubr.bf16.mxu0 0
        %800 = vmatmul.mubr.bf16.gmra.mrb[0].mxu0 %v762
        %v801 = vpop.f32.mrb[0].mxu0
        %v802 = vadd.f32 0.0, %v801
        %v803 = vpop.f32.mrb[0].mxu0
        %v804 = vpop.f32.mrb[0].mxu0
        %v805 = vpop.f32.mrb[0].mxu0
        %806 = vdwg.mxu0
        %808 = vrot.lane.b32.xlu0 %v754, 96
        %v809 = vpop.permute.xlu0 %808
        %v811 = vsel %vm760, %v754, 0
        %v814 = vsel %vm760, %v809, 0
        %816 = vmatprep.subr.bf16.mxu0 0
        %817 = vmatpush1.bf16.xpose.msra.mxu0 %v814
        %818 = vmatprep.subr.bf16.mxu0 0
        %819 = vmatpush1.bf16.xpose.msra.mxu0 0
        %820 = vmatprep.subr.bf16.mxu0 0
        %821 = vmatpush1.bf16.xpose.msra.mxu0 0
        %822 = vmatprep.subr.bf16.mxu0 0
        %823 = vmatpush1.bf16.xpose.msra.mxu0 0
        %824 = vmatprep.subr.bf16.mxu0 0
        %825 = vmatpush1.bf16.xpose.msra.mxu0 0
        %826 = vmatprep.subr.bf16.mxu0 0
        %827 = vmatpush1.bf16.xpose.msra.mxu0 0
        %828 = vmatprep.subr.bf16.mxu0 0
        %829 = vmatpush1.bf16.xpose.msra.mxu0 0
        %830 = vmatprep.subr.bf16.mxu0 0
        %831 = vmatpush1.bf16.xpose.msra.mxu0 0
        %832 = vmatprep.subr.bf16.mxu0 0
        %833 = vmatpush1.bf16.xpose.msra.mxu0 0
        %834 = vmatprep.subr.bf16.mxu0 0
        %835 = vmatpush1.bf16.xpose.msra.mxu0 0
        %836 = vmatprep.subr.bf16.mxu0 0
        %837 = vmatpush1.bf16.xpose.msra.mxu0 0
        %838 = vmatprep.subr.bf16.mxu0 0
        %839 = vmatpush1.bf16.xpose.msra.mxu0 0
        %840 = vmatprep.subr.bf16.mxu0 0
        %841 = vmatpush1.bf16.xpose.msra.mxu0 0
        %842 = vmatprep.subr.bf16.mxu0 0
        %843 = vmatpush1.bf16.xpose.msra.mxu0 0
        %844 = vmatprep.subr.bf16.mxu0 0
        %845 = vmatpush1.bf16.xpose.msra.mxu0 0
        %846 = vmatprep.subr.bf16.mxu0 0
        %847 = vmatpush1.bf16.xpose.msra.mxu0 0
        %848 = vmatprep.mubr.bf16.mxu0 0
        %849 = vmatmul.mubr.bf16.gmra.mrb[0].mxu0 %v811
        %v850 = vpop.f32.mrb[0].mxu0
        %v851 = vadd.f32 0.0, %v850
        %v852 = vpop.f32.mrb[0].mxu0
        %v853 = vpop.f32.mrb[0].mxu0
        %v854 = vpop.f32.mrb[0].mxu0
        %855 = vdwg.mxu0
        %857 = vrot.lane.b32.xlu0 %v755, 96
        %v858 = vpop.permute.xlu0 %857
        %v860 = vsel %vm760, %v755, 0
        %v863 = vsel %vm760, %v858, 0
        %865 = vmatprep.subr.bf16.mxu0 0
        %866 = vmatpush1.bf16.xpose.msra.mxu0 %v863
        %867 = vmatprep.subr.bf16.mxu0 0
        %868 = vmatpush1.bf16.xpose.msra.mxu0 0
        %869 = vmatprep.subr.bf16.mxu0 0
        %870 = vmatpush1.bf16.xpose.msra.mxu0 0
        %871 = vmatprep.subr.bf16.mxu0 0
        %872 = vmatpush1.bf16.xpose.msra.mxu0 0
        %873 = vmatprep.subr.bf16.mxu0 0
        %874 = vmatpush1.bf16.xpose.msra.mxu0 0
        %875 = vmatprep.subr.bf16.mxu0 0
        %876 = vmatpush1.bf16.xpose.msra.mxu0 0
        %877 = vmatprep.subr.bf16.mxu0 0
        %878 = vmatpush1.bf16.xpose.msra.mxu0 0
        %879 = vmatprep.subr.bf16.mxu0 0
        %880 = vmatpush1.bf16.xpose.msra.mxu0 0
        %881 = vmatprep.subr.bf16.mxu0 0
        %882 = vmatpush1.bf16.xpose.msra.mxu0 0
        %883 = vmatprep.subr.bf16.mxu0 0
        %884 = vmatpush1.bf16.xpose.msra.mxu0 0
        %885 = vmatprep.subr.bf16.mxu0 0
        %886 = vmatpush1.bf16.xpose.msra.mxu0 0
        %887 = vmatprep.subr.bf16.mxu0 0
        %888 = vmatpush1.bf16.xpose.msra.mxu0 0
        %889 = vmatprep.subr.bf16.mxu0 0
        %890 = vmatpush1.bf16.xpose.msra.mxu0 0
        %891 = vmatprep.subr.bf16.mxu0 0
        %892 = vmatpush1.bf16.xpose.msra.mxu0 0
        %893 = vmatprep.subr.bf16.mxu0 0
        %894 = vmatpush1.bf16.xpose.msra.mxu0 0
        %895 = vmatprep.subr.bf16.mxu0 0
        %896 = vmatpush1.bf16.xpose.msra.mxu0 0
        %897 = vmatprep.mubr.bf16.mxu0 0
        %898 = vmatmul.mubr.bf16.gmra.mrb[0].mxu0 %v860
        %v899 = vpop.f32.mrb[0].mxu0
        %v900 = vadd.f32 0.0, %v899
        %v901 = vpop.f32.mrb[0].mxu0
        %v902 = vpop.f32.mrb[0].mxu0
        %v903 = vpop.f32.mrb[0].mxu0
        %904 = vdwg.mxu0
        %906 = vrot.lane.b32.xlu0 %v756, 96
        %v907 = vpop.permute.xlu0 %906
        %v909 = vsel %vm760, %v756, 0
        %v912 = vsel %vm760, %v907, 0
        %914 = vmatprep.subr.bf16.mxu0 0
        %915 = vmatpush1.bf16.xpose.msra.mxu0 %v912
        %916 = vmatprep.subr.bf16.mxu0 0
        %917 = vmatpush1.bf16.xpose.msra.mxu0 0
        %918 = vmatprep.subr.bf16.mxu0 0
        %919 = vmatpush1.bf16.xpose.msra.mxu0 0
        %920 = vmatprep.subr.bf16.mxu0 0
        %921 = vmatpush1.bf16.xpose.msra.mxu0 0
        %922 = vmatprep.subr.bf16.mxu0 0
        %923 = vmatpush1.bf16.xpose.msra.mxu0 0
        %924 = vmatprep.subr.bf16.mxu0 0
        %925 = vmatpush1.bf16.xpose.msra.mxu0 0
        %926 = vmatprep.subr.bf16.mxu0 0
        %927 = vmatpush1.bf16.xpose.msra.mxu0 0
        %928 = vmatprep.subr.bf16.mxu0 0
        %929 = vmatpush1.bf16.xpose.msra.mxu0 0
        %930 = vmatprep.subr.bf16.mxu0 0
        %931 = vmatpush1.bf16.xpose.msra.mxu0 0
        %932 = vmatprep.subr.bf16.mxu0 0
        %933 = vmatpush1.bf16.xpose.msra.mxu0 0
        %934 = vmatprep.subr.bf16.mxu0 0
        %935 = vmatpush1.bf16.xpose.msra.mxu0 0
        %936 = vmatprep.subr.bf16.mxu0 0
        %937 = vmatpush1.bf16.xpose.msra.mxu0 0
        %938 = vmatprep.subr.bf16.mxu0 0
        %939 = vmatpush1.bf16.xpose.msra.mxu0 0
        %940 = vmatprep.subr.bf16.mxu0 0
        %941 = vmatpush1.bf16.xpose.msra.mxu0 0
        %942 = vmatprep.subr.bf16.mxu0 0
        %943 = vmatpush1.bf16.xpose.msra.mxu0 0
        %944 = vmatprep.subr.bf16.mxu0 0
        %945 = vmatpush1.bf16.xpose.msra.mxu0 0
        %946 = vmatprep.mubr.bf16.mxu0 0
        %947 = vmatmul.mubr.bf16.gmra.mrb[0].mxu0 %v909
        %v948 = vpop.f32.mrb[0].mxu0
        %v949 = vadd.f32 0.0, %v948
        %v950 = vpop.f32.mrb[0].mxu0
        %v951 = vpop.f32.mrb[0].mxu0
        %v952 = vpop.f32.mrb[0].mxu0
        %953 = vdwg.mxu0
        %v954 = vmul.f32 %v802, 0.35355338
        %v955 = vmul.f32 %v851, 0.35355338
        %v956 = vmul.f32 %v900, 0.35355338
        %v957 = vmul.f32 %v949, 0.35355338
        %v958 = vsel %vm760, %v954, -inf
        %959 = vmax.xlane.f32.xlu0 %v958
        %v960 = vpop.xlane.xlu0 %959
        %v961 = vsel %vm760, %v955, -inf
        %962 = vmax.xlane.f32.xlu0 %v961
        %v963 = vpop.xlane.xlu0 %962
        %v964 = vsel %vm760, %v956, -inf
        %965 = vmax.xlane.f32.xlu0 %v964
        %v966 = vpop.xlane.xlu0 %965
        %v967 = vsel %vm760, %v957, -inf
        %968 = vmax.xlane.f32.xlu0 %v967
        %v969 = vpop.xlane.xlu0 %968
        %v970 = vsub.f32 %v954, %v960
        %v971 = vsub.f32 %v955, %v963
        %v972 = vsub.f32 %v956, %v966
        %v973 = vsub.f32 %v957, %v969
        %v974 = vmul.f32 %v970, 1.442695
        %v975 = vpow.pop %v974
        %v976 = vmul.f32 %v971, 1.442695
        %v977 = vpow.pop %v976
        %v978 = vmul.f32 %v972, 1.442695
        %v979 = vpow.pop %v978
        %v980 = vmul.f32 %v973, 1.442695
        %v981 = vpow.pop %v980
        %v982 = vsel %vm760, %v975, 0.0
        %983 = vadd.xlane.f32.xlu0 %v982
        %v984 = vpop.xlane.xlu0 %983
        %v985 = vsel %vm760, %v977, 0.0
        %986 = vadd.xlane.f32.xlu0 %v985
        %v987 = vpop.xlane.xlu0 %986
        %v988 = vsel %vm760, %v979, 0.0
        %989 = vadd.xlane.f32.xlu0 %v988
        %v990 = vpop.xlane.xlu0 %989
        %v991 = vsel %vm760, %v981, 0.0
        %992 = vadd.xlane.f32.xlu0 %v991
        %v993 = vpop.xlane.xlu0 %992
        %v994 = vrcp.pop %v984
        %v995 = vrcp.pop %v987
        %v996 = vrcp.pop %v990
        %v997 = vrcp.pop %v993
        %v998 = vmul.f32 %v975, %v994
        %v999 = vmul.f32 %v977, %v995
        %v1000 = vmul.f32 %v979, %v996
        %v1001 = vmul.f32 %v981, %v997
        %v1002 = vpack.c.bf16 %v998, %v998
        %v1003 = vpack.c.bf16 %v999, %v999
        %v1004 = vpack.c.bf16 %v1000, %v1000
        %v1005 = vpack.c.bf16 %v1001, %v1001
        %1006 = vrot.lane.b32.xlu0 %v753, 64
        %v1007 = vpop.permute.xlu0 %1006
        %v1009 = vsel %vm760, %v1002, 0
        %vm1011 = vcmask 1043456
        %v1013 = vsel %vm1011, %v1007, 0
        %1015 = vmatprep.subr.bf16.mxu0 0
        %1016 = vmatpush1.bf16.msra.mxu0 %v1013
        %1017 = vmatprep.subr.bf16.mxu0 0
        %1018 = vmatpush1.bf16.msra.mxu0 0
        %1019 = vmatprep.subr.bf16.mxu0 0
        %1020 = vmatpush1.bf16.msra.mxu0 0
        %1021 = vmatprep.subr.bf16.mxu0 0
        %1022 = vmatpush1.bf16.msra.mxu0 0
        %1023 = vmatprep.subr.bf16.mxu0 0
        %1024 = vmatpush1.bf16.msra.mxu0 0
        %1025 = vmatprep.subr.bf16.mxu0 0
        %1026 = vmatpush1.bf16.msra.mxu0 0
        %1027 = vmatprep.subr.bf16.mxu0 0
        %1028 = vmatpush1.bf16.msra.mxu0 0
        %1029 = vmatprep.subr.bf16.mxu0 0
        %1030 = vmatpush1.bf16.msra.mxu0 0
        %1031 = vmatprep.subr.bf16.mxu0 0
        %1032 = vmatpush1.bf16.msra.mxu0 0
        %1033 = vmatprep.subr.bf16.mxu0 0
        %1034 = vmatpush1.bf16.msra.mxu0 0
        %1035 = vmatprep.subr.bf16.mxu0 0
        %1036 = vmatpush1.bf16.msra.mxu0 0
        %1037 = vmatprep.subr.bf16.mxu0 0
        %1038 = vmatpush1.bf16.msra.mxu0 0
        %1039 = vmatprep.subr.bf16.mxu0 0
        %1040 = vmatpush1.bf16.msra.mxu0 0
        %1041 = vmatprep.subr.bf16.mxu0 0
        %1042 = vmatpush1.bf16.msra.mxu0 0
        %1043 = vmatprep.subr.bf16.mxu0 0
        %1044 = vmatpush1.bf16.msra.mxu0 0
        %1045 = vmatprep.subr.bf16.mxu0 0
        %1046 = vmatpush1.bf16.msra.mxu0 0
        %1047 = vmatprep.mubr.bf16.mxu0 0
        %1048 = vmatmul.mubr.bf16.gmra.mrb[0].mxu0 %v1009
        %v1049 = vpop.f32.mrb[0].mxu0
        %v1050 = vadd.f32 0.0, %v1049
        %v1051 = vpop.f32.mrb[0].mxu0
        %v1052 = vpop.f32.mrb[0].mxu0
        %v1053 = vpop.f32.mrb[0].mxu0
        %1054 = vdwg.mxu0
        %1055 = vrot.lane.b32.xlu0 %v754, 64
        %v1056 = vpop.permute.xlu0 %1055
        %v1058 = vsel %vm760, %v1003, 0
        %v1061 = vsel %vm1011, %v1056, 0
        %1063 = vmatprep.subr.bf16.mxu0 0
        %1064 = vmatpush1.bf16.msra.mxu0 %v1061
        %1065 = vmatprep.subr.bf16.mxu0 0
        %1066 = vmatpush1.bf16.msra.mxu0 0
        %1067 = vmatprep.subr.bf16.mxu0 0
        %1068 = vmatpush1.bf16.msra.mxu0 0
        %1069 = vmatprep.subr.bf16.mxu0 0
        %1070 = vmatpush1.bf16.msra.mxu0 0
        %1071 = vmatprep.subr.bf16.mxu0 0
        %1072 = vmatpush1.bf16.msra.mxu0 0
        %1073 = vmatprep.subr.bf16.mxu0 0
        %1074 = vmatpush1.bf16.msra.mxu0 0
        %1075 = vmatprep.subr.bf16.mxu0 0
        %1076 = vmatpush1.bf16.msra.mxu0 0
        %1077 = vmatprep.subr.bf16.mxu0 0
        %1078 = vmatpush1.bf16.msra.mxu0 0
        %1079 = vmatprep.subr.bf16.mxu0 0
        %1080 = vmatpush1.bf16.msra.mxu0 0
        %1081 = vmatprep.subr.bf16.mxu0 0
        %1082 = vmatpush1.bf16.msra.mxu0 0
        %1083 = vmatprep.subr.bf16.mxu0 0
        %1084 = vmatpush1.bf16.msra.mxu0 0
        %1085 = vmatprep.subr.bf16.mxu0 0
        %1086 = vmatpush1.bf16.msra.mxu0 0
        %1087 = vmatprep.subr.bf16.mxu0 0
        %1088 = vmatpush1.bf16.msra.mxu0 0
        %1089 = vmatprep.subr.bf16.mxu0 0
        %1090 = vmatpush1.bf16.msra.mxu0 0
        %1091 = vmatprep.subr.bf16.mxu0 0
        %1092 = vmatpush1.bf16.msra.mxu0 0
        %1093 = vmatprep.subr.bf16.mxu0 0
        %1094 = vmatpush1.bf16.msra.mxu0 0
        %1095 = vmatprep.mubr.bf16.mxu0 0
        %1096 = vmatmul.mubr.bf16.gmra.mrb[0].mxu0 %v1058
        %v1097 = vpop.f32.mrb[0].mxu0
        %v1098 = vadd.f32 0.0, %v1097
        %v1099 = vpop.f32.mrb[0].mxu0
        %v1100 = vpop.f32.mrb[0].mxu0
        %v1101 = vpop.f32.mrb[0].mxu0
        %1102 = vdwg.mxu0
        %1103 = vrot.lane.b32.xlu0 %v755, 64
        %v1104 = vpop.permute.xlu0 %1103
        %v1106 = vsel %vm760, %v1004, 0
        %v1109 = vsel %vm1011, %v1104, 0
        %1111 = vmatprep.subr.bf16.mxu0 0
        %1112 = vmatpush1.bf16.msra.mxu0 %v1109
        %1113 = vmatprep.subr.bf16.mxu0 0
        %1114 = vmatpush1.bf16.msra.mxu0 0
        %1115 = vmatprep.subr.bf16.mxu0 0
        %1116 = vmatpush1.bf16.msra.mxu0 0
        %1117 = vmatprep.subr.bf16.mxu0 0
        %1118 = vmatpush1.bf16.msra.mxu0 0
        %1119 = vmatprep.subr.bf16.mxu0 0
        %1120 = vmatpush1.bf16.msra.mxu0 0
        %1121 = vmatprep.subr.bf16.mxu0 0
        %1122 = vmatpush1.bf16.msra.mxu0 0
        %1123 = vmatprep.subr.bf16.mxu0 0
        %1124 = vmatpush1.bf16.msra.mxu0 0
        %1125 = vmatprep.subr.bf16.mxu0 0
        %1126 = vmatpush1.bf16.msra.mxu0 0
        %1127 = vmatprep.subr.bf16.mxu0 0
        %1128 = vmatpush1.bf16.msra.mxu0 0
        %1129 = vmatprep.subr.bf16.mxu0 0
        %1130 = vmatpush1.bf16.msra.mxu0 0
        %1131 = vmatprep.subr.bf16.mxu0 0
        %1132 = vmatpush1.bf16.msra.mxu0 0
        %1133 = vmatprep.subr.bf16.mxu0 0
        %1134 = vmatpush1.bf16.msra.mxu0 0
        %1135 = vmatprep.subr.bf16.mxu0 0
        %1136 = vmatpush1.bf16.msra.mxu0 0
        %1137 = vmatprep.subr.bf16.mxu0 0
        %1138 = vmatpush1.bf16.msra.mxu0 0
        %1139 = vmatprep.subr.bf16.mxu0 0
        %1140 = vmatpush1.bf16.msra.mxu0 0
        %1141 = vmatprep.subr.bf16.mxu0 0
        %1142 = vmatpush1.bf16.msra.mxu0 0
        %1143 = vmatprep.mubr.bf16.mxu0 0
        %1144 = vmatmul.mubr.bf16.gmra.mrb[0].mxu0 %v1106
        %v1145 = vpop.f32.mrb[0].mxu0
        %v1146 = vadd.f32 0.0, %v1145
        %v1147 = vpop.f32.mrb[0].mxu0
        %v1148 = vpop.f32.mrb[0].mxu0
        %v1149 = vpop.f32.mrb[0].mxu0
        %1150 = vdwg.mxu0
        %1151 = vrot.lane.b32.xlu0 %v756, 64
        %v1152 = vpop.permute.xlu0 %1151
        %v1154 = vsel %vm760, %v1005, 0
        %v1157 = vsel %vm1011, %v1152, 0
        %1159 = vmatprep.subr.bf16.mxu0 0
        %1160 = vmatpush1.bf16.msra.mxu0 %v1157
        %1161 = vmatprep.subr.bf16.mxu0 0
        %1162 = vmatpush1.bf16.msra.mxu0 0
        %1163 = vmatprep.subr.bf16.mxu0 0
        %1164 = vmatpush1.bf16.msra.mxu0 0
        %1165 = vmatprep.subr.bf16.mxu0 0
        %1166 = vmatpush1.bf16.msra.mxu0 0
        %1167 = vmatprep.subr.bf16.mxu0 0
        %1168 = vmatpush1.bf16.msra.mxu0 0
        %1169 = vmatprep.subr.bf16.mxu0 0
        %1170 = vmatpush1.bf16.msra.mxu0 0
        %1171 = vmatprep.subr.bf16.mxu0 0
        %1172 = vmatpush1.bf16.msra.mxu0 0
        %1173 = vmatprep.subr.bf16.mxu0 0
        %1174 = vmatpush1.bf16.msra.mxu0 0
        %1175 = vmatprep.subr.bf16.mxu0 0
        %1176 = vmatpush1.bf16.msra.mxu0 0
        %1177 = vmatprep.subr.bf16.mxu0 0
        %1178 = vmatpush1.bf16.msra.mxu0 0
        %1179 = vmatprep.subr.bf16.mxu0 0
        %1180 = vmatpush1.bf16.msra.mxu0 0
        %1181 = vmatprep.subr.bf16.mxu0 0
        %1182 = vmatpush1.bf16.msra.mxu0 0
        %1183 = vmatprep.subr.bf16.mxu0 0
        %1184 = vmatpush1.bf16.msra.mxu0 0
        %1185 = vmatprep.subr.bf16.mxu0 0
        %1186 = vmatpush1.bf16.msra.mxu0 0
        %1187 = vmatprep.subr.bf16.mxu0 0
        %1188 = vmatpush1.bf16.msra.mxu0 0
        %1189 = vmatprep.subr.bf16.mxu0 0
        %1190 = vmatpush1.bf16.msra.mxu0 0
        %1191 = vmatprep.mubr.bf16.mxu0 0
        %1192 = vmatmul.mubr.bf16.gmra.mrb[0].mxu0 %v1154
        %v1193 = vpop.f32.mrb[0].mxu0
        %v1194 = vadd.f32 0.0, %v1193
        %v1195 = vpop.f32.mrb[0].mxu0
        %v1196 = vpop.f32.mrb[0].mxu0
        %v1197 = vpop.f32.mrb[0].mxu0
        %1198 = vdwg.mxu0
        %1200 = vrot.lane.b32.xlu0 %v1098, 8
        %v1201 = vpop.permute.xlu0 %1200
        %1204 = vrot.lane.b32.xlu0 %v1146, 16
        %v1205 = vpop.permute.xlu0 %1204
        %1208 = vrot.lane.b32.xlu0 %v1194, 24
        %v1209 = vpop.permute.xlu0 %1208
        %v1211 = vsel %vm760, %v1050, %v1201
        %vm1212 = vcmask 130048
        %v1213 = vsel %vm1212, %v1211, %v1205
        %vm1214 = vcmask 195584
        %v1215 = vsel %vm1214, %v1213, %v1209
        %v1216 = vpack.c.bf16 %v1215, %v1215
        %v1217 = vld [vmem:[%s4] sm:$0xf]
        %v1218 = vld [vmem:[%s4 + $0x4] sm:$0xf]
        %v1219 = vld [vmem:[%s4 + $0x8] sm:$0xf]
        %v1220 = vld [vmem:[%s4 + $0xc] sm:$0xf]
        %v1221 = vld [vmem:[#allocation5] sm:$0x1]
        %v1223 = vlaneseq
        %v1224 = vshrl.u32 %v1223, 7
        %v1225 = vsub.s32 0, %v1224
        %v1226 = vrot.slane %v1221, %v1225
        %v1232 = vunpack.c.l.b16 %v1217
        %v1233 = vunpack.c.l.b16 %v1218
        %v1234 = vunpack.c.l.b16 %v1219
        %v1235 = vunpack.c.l.b16 %v1220
        %v1236 = vpack.c.b16 %v1233, %v1232
        %v1237 = vpack.c.b16 %v1235, %v1234
        %v1241 = vsel %vm699, %v1216, 0
        %1243 = vmatprep.subr.bf16.mxu0 0
        %1244 = vmatpush1.bf16.msra.mxu0 %v1236
        %1245 = vmatprep.subr.bf16.mxu0 0
        %1246 = vmatpush1.bf16.msra.mxu0 %v1237
        %1247 = vmatprep.subr.bf16.mxu0 0
        %1248 = vmatpush1.bf16.msra.mxu0 0
        %1249 = vmatprep.subr.bf16.mxu0 0
        %1250 = vmatpush1.bf16.msra.mxu0 0
        %1251 = vmatprep.subr.bf16.mxu0 0
        %1252 = vmatpush1.bf16.msra.mxu0 0
        %1253 = vmatprep.subr.bf16.mxu0 0
        %1254 = vmatpush1.bf16.msra.mxu0 0
        %1255 = vmatprep.subr.bf16.mxu0 0
        %1256 = vmatpush1.bf16.msra.mxu0 0
        %1257 = vmatprep.subr.bf16.mxu0 0
        %1258 = vmatpush1.bf16.msra.mxu0 0
        %1259 = vmatprep.subr.bf16.mxu0 0
        %1260 = vmatpush1.bf16.msra.mxu0 0
        %1261 = vmatprep.subr.bf16.mxu0 0
        %1262 = vmatpush1.bf16.msra.mxu0 0
        %1263 = vmatprep.subr.bf16.mxu0 0
        %1264 = vmatpush1.bf16.msra.mxu0 0
        %1265 = vmatprep.subr.bf16.mxu0 0
        %1266 = vmatpush1.bf16.msra.mxu0 0
        %1267 = vmatprep.subr.bf16.mxu0 0
        %1268 = vmatpush1.bf16.msra.mxu0 0
        %1269 = vmatprep.subr.bf16.mxu0 0
        %1270 = vmatpush1.bf16.msra.mxu0 0
        %1271 = vmatprep.subr.bf16.mxu0 0
        %1272 = vmatpush1.bf16.msra.mxu0 0
        %1273 = vmatprep.subr.bf16.mxu0 0
        %1274 = vmatpush1.bf16.msra.mxu0 0
        %1275 = vmatprep.mubr.bf16.mxu0 0
        %1276 = vmatmul.mubr.bf16.gmra.mrb[0].mxu0 %v1241
        %v1277 = vpop.f32.mrb[0].mxu0
        %v1278 = vadd.f32 %v1226, %v1277
        %v1279 = vpop.f32.mrb[0].mxu0
        %v1280 = vpop.f32.mrb[0].mxu0
        %v1281 = vpop.f32.mrb[0].mxu0
        %1282 = vdwg.mxu0
        %v1283 = vadd.f32 %v674, %v1278
        %v1284 = vld [vmem:[#allocation10] sm:$0x1]
        %v1285 = vld [vmem:[#allocation11] sm:$0x1]
        %v1286 = vsel %vm699, %v1283, 0.0
        %1287 = vadd.xlane.f32.xlu0 %v1286
        %v1288 = vpop.xlane.xlu0 %1287
        %v1289 = vrcp.pop 32.0
        %v1290 = vmul.f32 %v1288, %v1289
        %v1291 = vsub.f32 %v1283, %v1290
        %v1292 = vmul.f32 %v1291, %v1291
        %v1293 = vsel %vm699, %v1292, 0.0
        %1294 = vadd.xlane.f32.xlu0 %v1293
        %v1295 = vpop.xlane.xlu0 %1294
        %v1296 = vmul.f32 %v1295, %v1289
        %v1297 = vadd.f32 %v1296, 1e-05
        %v1298 = vrsqrt.pop %v1297
        %v1299 = vmul.f32 %v1291, %v1298
        %v1301 = vlaneseq
        %v1302 = vshrl.u32 %v1301, 7
        %v1303 = vsub.s32 0, %v1302
        %v1304 = vrot.slane %v1284, %v1303
        %v1306 = vmul.f32 %v1299, %v1304
        %v1308 = vlaneseq
        %v1309 = vshrl.u32 %v1308, 7
        %v1310 = vsub.s32 0, %v1309
        %v1311 = vrot.slane %v1285, %v1310
        %v1313 = vadd.f32 %v1306, %v1311
        %v1314 = vpack.c.bf16 %v1313, %v1313
        %v1315 = vld [vmem:[%s6] sm:$0xf]
        %v1316 = vld [vmem:[%s6 + $0x4] sm:$0xf]
        %v1317 = vld [vmem:[%s6 + $0x8] sm:$0xf]
        %v1318 = vld [vmem:[%s6 + $0xc] sm:$0xf]
        %v1319 = vld [vmem:[#allocation7] sm:$0x1]
        %v1321 = vlaneseq
        %v1322 = vshrl.u32 %v1321, 7
        %v1323 = vsub.s32 0, %v1322
        %v1324 = vrot.slane %v1319, %v1323
        %v1330 = vunpack.c.l.b16 %v1315
        %v1331 = vunpack.c.l.b16 %v1316
        %v1332 = vunpack.c.l.b16 %v1317
        %v1333 = vunpack.c.l.b16 %v1318
        %v1334 = vpack.c.b16 %v1331, %v1330
        %v1335 = vpack.c.b16 %v1333, %v1332
        %v1339 = vsel %vm699, %v1314, 0
        %1341 = vmatprep.subr.bf16.mxu0 0
        %1342 = vmatpush1.bf16.msra.mxu0 %v1334
        %1343 = vmatprep.subr.bf16.mxu0 0
        %1344 = vmatpush1.bf16.msra.mxu0 %v1335
        %1345 = vmatprep.subr.bf16.mxu0 0
        %1346 = vmatpush1.bf16.msra.mxu0 0
        %1347 = vmatprep.subr.bf16.mxu0 0
        %1348 = vmatpush1.bf16.msra.mxu0 0
        %1349 = vmatprep.subr.bf16.mxu0 0
        %1350 = vmatpush1.bf16.msra.mxu0 0
        %1351 = vmatprep.subr.bf16.mxu0 0
        %1352 = vmatpush1.bf16.msra.mxu0 0
        %1353 = vmatprep.subr.bf16.mxu0 0
        %1354 = vmatpush1.bf16.msra.mxu0 0
        %1355 = vmatprep.subr.bf16.mxu0 0
        %1356 = vmatpush1.bf16.msra.mxu0 0
        %1357 = vmatprep.subr.bf16.mxu0 0
        %1358 = vmatpush1.bf16.msra.mxu0 0
        %1359 = vmatprep.subr.bf16.mxu0 0
        %1360 = vmatpush1.bf16.msra.mxu0 0
        %1361 = vmatprep.subr.bf16.mxu0 0
        %1362 = vmatpush1.bf16.msra.mxu0 0
        %1363 = vmatprep.subr.bf16.mxu0 0
        %1364 = vmatpush1.bf16.msra.mxu0 0
        %1365 = vmatprep.subr.bf16.mxu0 0
        %1366 = vmatpush1.bf16.msra.mxu0 0
        %1367 = vmatprep.subr.bf16.mxu0 0
        %1368 = vmatpush1.bf16.msra.mxu0 0
        %1369 = vmatprep.subr.bf16.mxu0 0
        %1370 = vmatpush1.bf16.msra.mxu0 0
        %1371 = vmatprep.subr.bf16.mxu0 0
        %1372 = vmatpush1.bf16.msra.mxu0 0
        %1373 = vmatprep.mubr.bf16.mxu0 0
        %1374 = vmatmul.mubr.bf16.gmra.mrb[0].mxu0 %v1339
        %v1375 = vpop.f32.mrb[0].mxu0
        %v1376 = vadd.f32 %v1324, %v1375
        %v1377 = vpop.f32.mrb[0].mxu0
        %v1378 = vpop.f32.mrb[0].mxu0
        %v1379 = vpop.f32.mrb[0].mxu0
        %1380 = vdwg.mxu0
        %v1381 = vmax.f32 %v1376, 0.0
        %v1382 = vpack.c.bf16 %v1381, %v1381
        %v1383 = vld [vmem:[%s8] sm:$0xf]
        %v1384 = vld [vmem:[%s8 + $0x4] sm:$0xf]
        %v1385 = vld [vmem:[%s8 + $0x8] sm:$0xf]
        %v1386 = vld [vmem:[%s8 + $0xc] sm:$0xf]
        %v1387 = vld [vmem:[%s8 + $0x10] sm:$0xf]
        %v1388 = vld [vmem:[%s8 + $0x14] sm:$0xf]
        %v1389 = vld [vmem:[%s8 + $0x18] sm:$0xf]
        %v1390 = vld [vmem:[%s8 + $0x1c] sm:$0xf]
        %v1391 = vld [vmem:[#allocation8] sm:$0x1]
        %v1393 = vlaneseq
        %v1394 = vshrl.u32 %v1393, 7
        %v1395 = vsub.s32 0, %v1394
        %v1396 = vrot.slane %v1391, %v1395
        %v1406 = vunpack.c.l.b16 %v1383
        %v1407 = vunpack.c.l.b16 %v1384
        %v1408 = vunpack.c.l.b16 %v1385
        %v1409 = vunpack.c.l.b16 %v1386
        %v1410 = vunpack.c.l.b16 %v1387
        %v1411 = vunpack.c.l.b16 %v1388
        %v1412 = vunpack.c.l.b16 %v1389
        %v1413 = vunpack.c.l.b16 %v1390
        %v1414 = vpack.c.b16 %v1407, %v1406
        %v1415 = vpack.c.b16 %v1409, %v1408
        %v1416 = vpack.c.b16 %v1411, %v1410
        %v1417 = vpack.c.b16 %v1413, %v1412
        %vm1422 = vcmask 523264
        %v1424 = vsel %vm1422, %v1382, 0
        %1426 = vmatprep.subr.bf16.mxu0 0
        %1427 = vmatpush1.bf16.msra.mxu0 %v1414
        %1428 = vmatprep.subr.bf16.mxu0 0
        %1429 = vmatpush1.bf16.msra.mxu0 %v1415
        %1430 = vmatprep.subr.bf16.mxu0 0
        %1431 = vmatpush1.bf16.msra.mxu0 %v1416
        %1432 = vmatprep.subr.bf16.mxu0 0
        %1433 = vmatpush1.bf16.msra.mxu0 %v1417
        %1434 = vmatprep.subr.bf16.mxu0 0
        %1435 = vmatpush1.bf16.msra.mxu0 0
        %1436 = vmatprep.subr.bf16.mxu0 0
        %1437 = vmatpush1.bf16.msra.mxu0 0
        %1438 = vmatprep.subr.bf16.mxu0 0
        %1439 = vmatpush1.bf16.msra.mxu0 0
        %1440 = vmatprep.subr.bf16.mxu0 0
        %1441 = vmatpush1.bf16.msra.mxu0 0
        %1442 = vmatprep.subr.bf16.mxu0 0
        %1443 = vmatpush1.bf16.msra.mxu0 0
        %1444 = vmatprep.subr.bf16.mxu0 0
        %1445 = vmatpush1.bf16.msra.mxu0 0
        %1446 = vmatprep.subr.bf16.mxu0 0
        %1447 = vmatpush1.bf16.msra.mxu0 0
        %1448 = vmatprep.subr.bf16.mxu0 0
        %1449 = vmatpush1.bf16.msra.mxu0 0
        %1450 = vmatprep.subr.bf16.mxu0 0
        %1451 = vmatpush1.bf16.msra.mxu0 0
        %1452 = vmatprep.subr.bf16.mxu0 0
        %1453 = vmatpush1.bf16.msra.mxu0 0
        %1454 = vmatprep.subr.bf16.mxu0 0
        %1455 = vmatpush1.bf16.msra.mxu0 0
        %1456 = vmatprep.subr.bf16.mxu0 0
        %1457 = vmatpush1.bf16.msra.mxu0 0
        %1458 = vmatprep.mubr.bf16.mxu0 0
        %1459 = vmatmul.mubr.bf16.gmra.mrb[0].mxu0 %v1424
        %v1460 = vpop.f32.mrb[0].mxu0
        %v1461 = vadd.f32 %v1396, %v1460
        %v1462 = vpop.f32.mrb[0].mxu0
        %v1463 = vpop.f32.mrb[0].mxu0
        %v1464 = vpop.f32.mrb[0].mxu0
        %1465 = vdwg.mxu0
        %v1466 = vadd.f32 %v1313, %v1461
        %v1467 = vld [vmem:[#allocation13] sm:$0x1]
        %v1468 = vld [vmem:[%s13] sm:$0x1]
        %v1469 = vsel %vm699, %v1466, 0.0
        %1470 = vadd.xlane.f32.xlu0 %v1469
        %v1471 = vpop.xlane.xlu0 %1470
        %v1472 = vmul.f32 %v1471, %v1289
        %v1473 = vsub.f32 %v1466, %v1472
        %v1474 = vmul.f32 %v1473, %v1473
        %v1475 = vsel %vm699, %v1474, 0.0
        %1476 = vadd.xlane.f32.xlu0 %v1475
        %v1477 = vpop.xlane.xlu0 %1476
        %v1478 = vmul.f32 %v1477, %v1289
        %v1479 = vadd.f32 %v1478, 1e-05
        %v1480 = vrsqrt.pop %v1479
        %v1481 = vmul.f32 %v1473, %v1480
        %v1483 = vlaneseq
        %v1484 = vshrl.u32 %v1483, 7
        %v1485 = vsub.s32 0, %v1484
        %v1486 = vrot.slane %v1467, %v1485
        %v1488 = vmul.f32 %v1481, %v1486
        %v1490 = vlaneseq
        %v1491 = vshrl.u32 %v1490, 7
        %v1492 = vsub.s32 0, %v1491
        %v1493 = vrot.slane %v1468, %v1492
        %v1495 = vadd.f32 %v1488, %v1493
        %v1496 = vpack.c.bf16 %v1495, %v1495
        %s1497 = scalar_lea.vmem %s2, 16
        %v1498 = vld [vmem:[%s1497] sm:$0xf]
        %v1499 = vld [vmem:[%s1497 + $0x4] sm:$0xf]
        %v1500 = vld [vmem:[%s1497 + $0x8] sm:$0xf]
        %v1501 = vld [vmem:[%s1497 + $0xc] sm:$0xf]
        %s1502 = scalar_lea.vmem %s3, 1
        %v1503 = vld [vmem:[%s1502] sm:$0x1]
        %v1505 = vlaneseq
        %v1506 = vshrl.u32 %v1505, 7
        %v1507 = vsub.s32 0, %v1506
        %v1508 = vrot.slane %v1503, %v1507
        %v1514 = vunpack.c.l.b16 %v1498
        %v1515 = vunpack.c.l.b16 %v1499
        %v1516 = vunpack.c.l.b16 %v1500
        %v1517 = vunpack.c.l.b16 %v1501
        %v1518 = vpack.c.b16 %v1515, %v1514
        %v1519 = vpack.c.b16 %v1517, %v1516
        %v1523 = vsel %vm699, %v1496, 0
        %1525 = vmatprep.subr.bf16.mxu0 0
        %1526 = vmatpush1.bf16.msra.mxu0 %v1518
        %1527 = vmatprep.subr.bf16.mxu0 0
        %1528 = vmatpush1.bf16.msra.mxu0 %v1519
        %1529 = vmatprep.subr.bf16.mxu0 0
        %1530 = vmatpush1.bf16.msra.mxu0 0
        %1531 = vmatprep.subr.bf16.mxu0 0
        %1532 = vmatpush1.bf16.msra.mxu0 0
        %1533 = vmatprep.subr.bf16.mxu0 0
        %1534 = vmatpush1.bf16.msra.mxu0 0
        %1535 = vmatprep.subr.bf16.mxu0 0
        %1536 = vmatpush1.bf16.msra.mxu0 0
        %1537 = vmatprep.subr.bf16.mxu0 0
        %1538 = vmatpush1.bf16.msra.mxu0 0
        %1539 = vmatprep.subr.bf16.mxu0 0
        %1540 = vmatpush1.bf16.msra.mxu0 0
        %1541 = vmatprep.subr.bf16.mxu0 0
        %1542 = vmatpush1.bf16.msra.mxu0 0
        %1543 = vmatprep.subr.bf16.mxu0 0
        %1544 = vmatpush1.bf16.msra.mxu0 0
        %1545 = vmatprep.subr.bf16.mxu0 0
        %1546 = vmatpush1.bf16.msra.mxu0 0
        %1547 = vmatprep.subr.bf16.mxu0 0
        %1548 = vmatpush1.bf16.msra.mxu0 0
        %1549 = vmatprep.subr.bf16.mxu0 0
        %1550 = vmatpush1.bf16.msra.mxu0 0
        %1551 = vmatprep.subr.bf16.mxu0 0
        %1552 = vmatpush1.bf16.msra.mxu0 0
        %1553 = vmatprep.subr.bf16.mxu0 0
        %1554 = vmatpush1.bf16.msra.mxu0 0
        %1555 = vmatprep.subr.bf16.mxu0 0
        %1556 = vmatpush1.bf16.msra.mxu0 0
        %1557 = vmatprep.mubr.bf16.mxu0 0
        %1558 = vmatmul.mubr.bf16.gmra.mrb[0].mxu0 %v1523
        %v1559 = vpop.f32.mrb[0].mxu0
        %v1560 = vadd.f32 %v1508, %v1559
        %v1561 = vpop.f32.mrb[0].mxu0
        %v1562 = vpop.f32.mrb[0].mxu0
        %v1563 = vpop.f32.mrb[0].mxu0
        %1564 = vdwg.mxu0
        %1566 = vrot.lane.b32.xlu0 %v1560, 120
        %v1567 = vpop.permute.xlu0 %1566
        %1569 = vrot.lane.b32.xlu0 %v1560, 112
        %v1570 = vpop.permute.xlu0 %1569
        %1572 = vrot.lane.b32.xlu0 %v1560, 104
        %v1573 = vpop.permute.xlu0 %1572
        %v1575 = vpack.c.bf16 %v1560, %v1560
        %v1576 = vpack.c.bf16 %v1567, %v1567
        %v1577 = vpack.c.bf16 %v1570, %v1570
        %v1578 = vpack.c.bf16 %v1573, %v1573
        %1580 = vrot.lane.b32.xlu0 %v1575, 96
        %v1581 = vpop.permute.xlu0 %1580
        %v1583 = vsel %vm760, %v1575, 0
        %v1586 = vsel %vm760, %v1581, 0
        %1588 = vmatprep.subr.bf16.mxu0 0
        %1589 = vmatpush1.bf16.xpose.msra.mxu0 %v1586
        %1590 = vmatprep.subr.bf16.mxu0 0
        %1591 = vmatpush1.bf16.xpose.msra.mxu0 0
        %1592 = vmatprep.subr.bf16.mxu0 0
        %1593 = vmatpush1.bf16.xpose.msra.mxu0 0
        %1594 = vmatprep.subr.bf16.mxu0 0
        %1595 = vmatpush1.bf16.xpose.msra.mxu0 0
        %1596 = vmatprep.subr.bf16.mxu0 0
        %1597 = vmatpush1.bf16.xpose.msra.mxu0 0
        %1598 = vmatprep.subr.bf16.mxu0 0
        %1599 = vmatpush1.bf16.xpose.msra.mxu0 0
        %1600 = vmatprep.subr.bf16.mxu0 0
        %1601 = vmatpush1.bf16.xpose.msra.mxu0 0
        %1602 = vmatprep.subr.bf16.mxu0 0
        %1603 = vmatpush1.bf16.xpose.msra.mxu0 0
        %1604 = vmatprep.subr.bf16.mxu0 0
        %1605 = vmatpush1.bf16.xpose.msra.mxu0 0
        %1606 = vmatprep.subr.bf16.mxu0 0
        %1607 = vmatpush1.bf16.xpose.msra.mxu0 0
        %1608 = vmatprep.subr.bf16.mxu0 0
        %1609 = vmatpush1.bf16.xpose.msra.mxu0 0
        %1610 = vmatprep.subr.bf16.mxu0 0
        %1611 = vmatpush1.bf16.xpose.msra.mxu0 0
        %1612 = vmatprep.subr.bf16.mxu0 0
        %1613 = vmatpush1.bf16.xpose.msra.mxu0 0
        %1614 = vmatprep.subr.bf16.mxu0 0
        %1615 = vmatpush1.bf16.xpose.msra.mxu0 0
        %1616 = vmatprep.subr.bf16.mxu0 0
        %1617 = vmatpush1.bf16.xpose.msra.mxu0 0
        %1618 = vmatprep.subr.bf16.mxu0 0
        %1619 = vmatpush1.bf16.xpose.msra.mxu0 0
        %1620 = vmatprep.mubr.bf16.mxu0 0
        %1621 = vmatmul.mubr.bf16.gmra.mrb[0].mxu0 %v1583
        %v1622 = vpop.f32.mrb[0].mxu0
        %v1623 = vadd.f32 0.0, %v1622
        %v1624 = vpop.f32.mrb[0].mxu0
        %v1625 = vpop.f32.mrb[0].mxu0
        %v1626 = vpop.f32.mrb[0].mxu0
        %1627 = vdwg.mxu0
        %1629 = vrot.lane.b32.xlu0 %v1576, 96
        %v1630 = vpop.permute.xlu0 %1629
        %v1632 = vsel %vm760, %v1576, 0
        %v1635 = vsel %vm760, %v1630, 0
        %1637 = vmatprep.subr.bf16.mxu0 0
        %1638 = vmatpush1.bf16.xpose.msra.mxu0 %v1635
        %1639 = vmatprep.subr.bf16.mxu0 0
        %1640 = vmatpush1.bf16.xpose.msra.mxu0 0
        %1641 = vmatprep.subr.bf16.mxu0 0
        %1642 = vmatpush1.bf16.xpose.msra.mxu0 0
        %1643 = vmatprep.subr.bf16.mxu0 0
        %1644 = vmatpush1.bf16.xpose.msra.mxu0 0
        %1645 = vmatprep.subr.bf16.mxu0 0
        %1646 = vmatpush1.bf16.xpose.msra.mxu0 0
        %1647 = vmatprep.subr.bf16.mxu0 0
        %1648 = vmatpush1.bf16.xpose.msra.mxu0 0
        %1649 = vmatprep.subr.bf16.mxu0 0
        %1650 = vmatpush1.bf16.xpose.msra.mxu0 0
        %1651 = vmatprep.subr.bf16.mxu0 0
        %1652 = vmatpush1.bf16.xpose.msra.mxu0 0
        %1653 = vmatprep.subr.bf16.mxu0 0
        %1654 = vmatpush1.bf16.xpose.msra.mxu0 0
        %1655 = vmatprep.subr.bf16.mxu0 0
        %1656 = vmatpush1.bf16.xpose.msra.mxu0 0
        %1657 = vmatprep.subr.bf16.mxu0 0
        %1658 = vmatpush1.bf16.xpose.msra.mxu0 0
        %1659 = vmatprep.subr.bf16.mxu0 0
        %1660 = vmatpush1.bf16.xpose.msra.mxu0 0
        %1661 = vmatprep.subr.bf16.mxu0 0
        %1662 = vmatpush1.bf16.xpose.msra.mxu0 0
        %1663 = vmatprep.subr.bf16.mxu0 0
        %1664 = vmatpush1.bf16.xpose.msra.mxu0 0
        %1665 = vmatprep.subr.bf16.mxu0 0
        %1666 = vmatpush1.bf16.xpose.msra.mxu0 0
        %1667 = vmatprep.subr.bf16.mxu0 0
        %1668 = vmatpush1.bf16.xpose.msra.mxu0 0
        %1669 = vmatprep.mubr.bf16.mxu0 0
        %1670 = vmatmul.mubr.bf16.gmra.mrb[0].mxu0 %v1632
        %v1671 = vpop.f32.mrb[0].mxu0
        %v1672 = vadd.f32 0.0, %v1671
        %v1673 = vpop.f32.mrb[0].mxu0
        %v1674 = vpop.f32.mrb[0].mxu0
        %v1675 = vpop.f32.mrb[0].mxu0
        %1676 = vdwg.mxu0
        %1678 = vrot.lane.b32.xlu0 %v1577, 96
        %v1679 = vpop.permute.xlu0 %1678
        %v1681 = vsel %vm760, %v1577, 0
        %v1684 = vsel %vm760, %v1679, 0
        %1686 = vmatprep.subr.bf16.mxu0 0
        %1687 = vmatpush1.bf16.xpose.msra.mxu0 %v1684
        %1688 = vmatprep.subr.bf16.mxu0 0
        %1689 = vmatpush1.bf16.xpose.msra.mxu0 0
        %1690 = vmatprep.subr.bf16.mxu0 0
        %1691 = vmatpush1.bf16.xpose.msra.mxu0 0
        %1692 = vmatprep.subr.bf16.mxu0 0
        %1693 = vmatpush1.bf16.xpose.msra.mxu0 0
        %1694 = vmatprep.subr.bf16.mxu0 0
        %1695 = vmatpush1.bf16.xpose.msra.mxu0 0
        %1696 = vmatprep.subr.bf16.mxu0 0
        %1697 = vmatpush1.bf16.xpose.msra.mxu0 0
        %1698 = vmatprep.subr.bf16.mxu0 0
        %1699 = vmatpush1.bf16.xpose.msra.mxu0 0
        %1700 = vmatprep.subr.bf16.mxu0 0
        %1701 = vmatpush1.bf16.xpose.msra.mxu0 0
        %1702 = vmatprep.subr.bf16.mxu0 0
        %1703 = vmatpush1.bf16.xpose.msra.mxu0 0
        %1704 = vmatprep.subr.bf16.mxu0 0
        %1705 = vmatpush1.bf16.xpose.msra.mxu0 0
        %1706 = vmatprep.subr.bf16.mxu0 0
        %1707 = vmatpush1.bf16.xpose.msra.mxu0 0
        %1708 = vmatprep.subr.bf16.mxu0 0
        %1709 = vmatpush1.bf16.xpose.msra.mxu0 0
        %1710 = vmatprep.subr.bf16.mxu0 0
        %1711 = vmatpush1.bf16.xpose.msra.mxu0 0
        %1712 = vmatprep.subr.bf16.mxu0 0
        %1713 = vmatpush1.bf16.xpose.msra.mxu0 0
        %1714 = vmatprep.subr.bf16.mxu0 0
        %1715 = vmatpush1.bf16.xpose.msra.mxu0 0
        %1716 = vmatprep.subr.bf16.mxu0 0
        %1717 = vmatpush1.bf16.xpose.msra.mxu0 0
        %1718 = vmatprep.mubr.bf16.mxu0 0
        %1719 = vmatmul.mubr.bf16.gmra.mrb[0].mxu0 %v1681
        %v1720 = vpop.f32.mrb[0].mxu0
        %v1721 = vadd.f32 0.0, %v1720
        %v1722 = vpop.f32.mrb[0].mxu0
        %v1723 = vpop.f32.mrb[0].mxu0
        %v1724 = vpop.f32.mrb[0].mxu0
        %1725 = vdwg.mxu0
        %1727 = vrot.lane.b32.xlu0 %v1578, 96
        %v1728 = vpop.permute.xlu0 %1727
        %v1730 = vsel %vm760, %v1578, 0
        %v1733 = vsel %vm760, %v1728, 0
        %1735 = vmatprep.subr.bf16.mxu0 0
        %1736 = vmatpush1.bf16.xpose.msra.mxu0 %v1733
        %1737 = vmatprep.subr.bf16.mxu0 0
        %1738 = vmatpush1.bf16.xpose.msra.mxu0 0
        %1739 = vmatprep.subr.bf16.mxu0 0
        %1740 = vmatpush1.bf16.xpose.msra.mxu0 0
        %1741 = vmatprep.subr.bf16.mxu0 0
        %1742 = vmatpush1.bf16.xpose.msra.mxu0 0
        %1743 = vmatprep.subr.bf16.mxu0 0
        %1744 = vmatpush1.bf16.xpose.msra.mxu0 0
        %1745 = vmatprep.subr.bf16.mxu0 0
        %1746 = vmatpush1.bf16.xpose.msra.mxu0 0
        %1747 = vmatprep.subr.bf16.mxu0 0
        %1748 = vmatpush1.bf16.xpose.msra.mxu0 0
        %1749 = vmatprep.subr.bf16.mxu0 0
        %1750 = vmatpush1.bf16.xpose.msra.mxu0 0
        %1751 = vmatprep.subr.bf16.mxu0 0
        %1752 = vmatpush1.bf16.xpose.msra.mxu0 0
        %1753 = vmatprep.subr.bf16.mxu0 0
        %1754 = vmatpush1.bf16.xpose.msra.mxu0 0
        %1755 = vmatprep.subr.bf16.mxu0 0
        %1756 = vmatpush1.bf16.xpose.msra.mxu0 0
        %1757 = vmatprep.subr.bf16.mxu0 0
        %1758 = vmatpush1.bf16.xpose.msra.mxu0 0
        %1759 = vmatprep.subr.bf16.mxu0 0
        %1760 = vmatpush1.bf16.xpose.msra.mxu0 0
        %1761 = vmatprep.subr.bf16.mxu0 0
        %1762 = vmatpush1.bf16.xpose.msra.mxu0 0
        %1763 = vmatprep.subr.bf16.mxu0 0
        %1764 = vmatpush1.bf16.xpose.msra.mxu0 0
        %1765 = vmatprep.subr.bf16.mxu0 0
        %1766 = vmatpush1.bf16.xpose.msra.mxu0 0
        %1767 = vmatprep.mubr.bf16.mxu0 0
        %1768 = vmatmul.mubr.bf16.gmra.mrb[0].mxu0 %v1730
        %v1769 = vpop.f32.mrb[0].mxu0
        %v1770 = vadd.f32 0.0, %v1769
        %v1771 = vpop.f32.mrb[0].mxu0
        %v1772 = vpop.f32.mrb[0].mxu0
        %v1773 = vpop.f32.mrb[0].mxu0
        %1774 = vdwg.mxu0
        %v1775 = vmul.f32 %v1623, 0.35355338
        %v1776 = vmul.f32 %v1672, 0.35355338
        %v1777 = vmul.f32 %v1721, 0.35355338
        %v1778 = vmul.f32 %v1770, 0.35355338
        %v1779 = vsel %vm760, %v1775, -inf
        %1780 = vmax.xlane.f32.xlu0 %v1779
        %v1781 = vpop.xlane.xlu0 %1780
        %v1782 = vsel %vm760, %v1776, -inf
        %1783 = vmax.xlane.f32.xlu0 %v1782
        %v1784 = vpop.xlane.xlu0 %1783
        %v1785 = vsel %vm760, %v1777, -inf
        %1786 = vmax.xlane.f32.xlu0 %v1785
        %v1787 = vpop.xlane.xlu0 %1786
        %v1788 = vsel %vm760, %v1778, -inf
        %1789 = vmax.xlane.f32.xlu0 %v1788
        %v1790 = vpop.xlane.xlu0 %1789
        %v1791 = vsub.f32 %v1775, %v1781
        %v1792 = vsub.f32 %v1776, %v1784
        %v1793 = vsub.f32 %v1777, %v1787
        %v1794 = vsub.f32 %v1778, %v1790
        %v1795 = vmul.f32 %v1791, 1.442695
        %v1796 = vpow.pop %v1795
        %v1797 = vmul.f32 %v1792, 1.442695
        %v1798 = vpow.pop %v1797
        %v1799 = vmul.f32 %v1793, 1.442695
        %v1800 = vpow.pop %v1799
        %v1801 = vmul.f32 %v1794, 1.442695
        %v1802 = vpow.pop %v1801
        %v1803 = vsel %vm760, %v1796, 0.0
        %1804 = vadd.xlane.f32.xlu0 %v1803
        %v1805 = vpop.xlane.xlu0 %1804
        %v1806 = vsel %vm760, %v1798, 0.0
        %1807 = vadd.xlane.f32.xlu0 %v1806
        %v1808 = vpop.xlane.xlu0 %1807
        %v1809 = vsel %vm760, %v1800, 0.0
        %1810 = vadd.xlane.f32.xlu0 %v1809
        %v1811 = vpop.xlane.xlu0 %1810
        %v1812 = vsel %vm760, %v1802, 0.0
        %1813 = vadd.xlane.f32.xlu0 %v1812
        %v1814 = vpop.xlane.xlu0 %1813
        %v1815 = vrcp.pop %v1805
        %v1816 = vrcp.pop %v1808
        %v1817 = vrcp.pop %v1811
        %v1818 = vrcp.pop %v1814
        %v1819 = vmul.f32 %v1796, %v1815
        %v1820 = vmul.f32 %v1798, %v1816
        %v1821 = vmul.f32 %v1800, %v1817
        %v1822 = vmul.f32 %v1802, %v1818
        %v1823 = vpack.c.bf16 %v1819, %v1819
        %v1824 = vpack.c.bf16 %v1820, %v1820
        %v1825 = vpack.c.bf16 %v1821, %v1821
        %v1826 = vpack.c.bf16 %v1822, %v1822
        %1827 = vrot.lane.b32.xlu0 %v1575, 64
        %v1828 = vpop.permute.xlu0 %1827
        %v1830 = vsel %vm760, %v1823, 0
        %v1833 = vsel %vm1011, %v1828, 0
        %1835 = vmatprep.subr.bf16.mxu0 0
        %1836 = vmatpush1.bf16.msra.mxu0 %v1833
        %1837 = vmatprep.subr.bf16.mxu0 0
        %1838 = vmatpush1.bf16.msra.mxu0 0
        %1839 = vmatprep.subr.bf16.mxu0 0
        %1840 = vmatpush1.bf16.msra.mxu0 0
        %1841 = vmatprep.subr.bf16.mxu0 0
        %1842 = vmatpush1.bf16.msra.mxu0 0
        %1843 = vmatprep.subr.bf16.mxu0 0
        %1844 = vmatpush1.bf16.msra.mxu0 0
        %1845 = vmatprep.subr.bf16.mxu0 0
        %1846 = vmatpush1.bf16.msra.mxu0 0
        %1847 = vmatprep.subr.bf16.mxu0 0
        %1848 = vmatpush1.bf16.msra.mxu0 0
        %1849 = vmatprep.subr.bf16.mxu0 0
        %1850 = vmatpush1.bf16.msra.mxu0 0
        %1851 = vmatprep.subr.bf16.mxu0 0
        %1852 = vmatpush1.bf16.msra.mxu0 0
        %1853 = vmatprep.subr.bf16.mxu0 0
        %1854 = vmatpush1.bf16.msra.mxu0 0
        %1855 = vmatprep.subr.bf16.mxu0 0
        %1856 = vmatpush1.bf16.msra.mxu0 0
        %1857 = vmatprep.subr.bf16.mxu0 0
        %1858 = vmatpush1.bf16.msra.mxu0 0
        %1859 = vmatprep.subr.bf16.mxu0 0
        %1860 = vmatpush1.bf16.msra.mxu0 0
        %1861 = vmatprep.subr.bf16.mxu0 0
        %1862 = vmatpush1.bf16.msra.mxu0 0
        %1863 = vmatprep.subr.bf16.mxu0 0
        %1864 = vmatpush1.bf16.msra.mxu0 0
        %1865 = vmatprep.subr.bf16.mxu0 0
        %1866 = vmatpush1.bf16.msra.mxu0 0
        %1867 = vmatprep.mubr.bf16.mxu0 0
        %1868 = vmatmul.mubr.bf16.gmra.mrb[0].mxu0 %v1830
        %v1869 = vpop.f32.mrb[0].mxu0
        %v1870 = vadd.f32 0.0, %v1869
        %v1871 = vpop.f32.mrb[0].mxu0
        %v1872 = vpop.f32.mrb[0].mxu0
        %v1873 = vpop.f32.mrb[0].mxu0
        %1874 = vdwg.mxu0
        %1875 = vrot.lane.b32.xlu0 %v1576, 64
        %v1876 = vpop.permute.xlu0 %1875
        %v1878 = vsel %vm760, %v1824, 0
        %v1881 = vsel %vm1011, %v1876, 0
        %1883 = vmatprep.subr.bf16.mxu0 0
        %1884 = vmatpush1.bf16.msra.mxu0 %v1881
        %1885 = vmatprep.subr.bf16.mxu0 0
        %1886 = vmatpush1.bf16.msra.mxu0 0
        %1887 = vmatprep.subr.bf16.mxu0 0
        %1888 = vmatpush1.bf16.msra.mxu0 0
        %1889 = vmatprep.subr.bf16.mxu0 0
        %1890 = vmatpush1.bf16.msra.mxu0 0
        %1891 = vmatprep.subr.bf16.mxu0 0
        %1892 = vmatpush1.bf16.msra.mxu0 0
        %1893 = vmatprep.subr.bf16.mxu0 0
        %1894 = vmatpush1.bf16.msra.mxu0 0
        %1895 = vmatprep.subr.bf16.mxu0 0
        %1896 = vmatpush1.bf16.msra.mxu0 0
        %1897 = vmatprep.subr.bf16.mxu0 0
        %1898 = vmatpush1.bf16.msra.mxu0 0
        %1899 = vmatprep.subr.bf16.mxu0 0
        %1900 = vmatpush1.bf16.msra.mxu0 0
        %1901 = vmatprep.subr.bf16.mxu0 0
        %1902 = vmatpush1.bf16.msra.mxu0 0
        %1903 = vmatprep.subr.bf16.mxu0 0
        %1904 = vmatpush1.bf16.msra.mxu0 0
        %1905 = vmatprep.subr.bf16.mxu0 0
        %1906 = vmatpush1.bf16.msra.mxu0 0
        %1907 = vmatprep.subr.bf16.mxu0 0
        %1908 = vmatpush1.bf16.msra.mxu0 0
        %1909 = vmatprep.subr.bf16.mxu0 0
        %1910 = vmatpush1.bf16.msra.mxu0 0
        %1911 = vmatprep.subr.bf16.mxu0 0
        %1912 = vmatpush1.bf16.msra.mxu0 0
        %1913 = vmatprep.subr.bf16.mxu0 0
        %1914 = vmatpush1.bf16.msra.mxu0 0
        %1915 = vmatprep.mubr.bf16.mxu0 0
        %1916 = vmatmul.mubr.bf16.gmra.mrb[0].mxu0 %v1878
        %v1917 = vpop.f32.mrb[0].mxu0
        %v1918 = vadd.f32 0.0, %v1917
        %v1919 = vpop.f32.mrb[0].mxu0
        %v1920 = vpop.f32.mrb[0].mxu0
        %v1921 = vpop.f32.mrb[0].mxu0
        %1922 = vdwg.mxu0
        %1923 = vrot.lane.b32.xlu0 %v1577, 64
        %v1924 = vpop.permute.xlu0 %1923
        %v1926 = vsel %vm760, %v1825, 0
        %v1929 = vsel %vm1011, %v1924, 0
        %1931 = vmatprep.subr.bf16.mxu0 0
        %1932 = vmatpush1.bf16.msra.mxu0 %v1929
        %1933 = vmatprep.subr.bf16.mxu0 0
        %1934 = vmatpush1.bf16.msra.mxu0 0
        %1935 = vmatprep.subr.bf16.mxu0 0
        %1936 = vmatpush1.bf16.msra.mxu0 0
        %1937 = vmatprep.subr.bf16.mxu0 0
        %1938 = vmatpush1.bf16.msra.mxu0 0
        %1939 = vmatprep.subr.bf16.mxu0 0
        %1940 = vmatpush1.bf16.msra.mxu0 0
        %1941 = vmatprep.subr.bf16.mxu0 0
        %1942 = vmatpush1.bf16.msra.mxu0 0
        %1943 = vmatprep.subr.bf16.mxu0 0
        %1944 = vmatpush1.bf16.msra.mxu0 0
        %1945 = vmatprep.subr.bf16.mxu0 0
        %1946 = vmatpush1.bf16.msra.mxu0 0
        %1947 = vmatprep.subr.bf16.mxu0 0
        %1948 = vmatpush1.bf16.msra.mxu0 0
        %1949 = vmatprep.subr.bf16.mxu0 0
        %1950 = vmatpush1.bf16.msra.mxu0 0
        %1951 = vmatprep.subr.bf16.mxu0 0
        %1952 = vmatpush1.bf16.msra.mxu0 0
        %1953 = vmatprep.subr.bf16.mxu0 0
        %1954 = vmatpush1.bf16.msra.mxu0 0
        %1955 = vmatprep.subr.bf16.mxu0 0
        %1956 = vmatpush1.bf16.msra.mxu0 0
        %1957 = vmatprep.subr.bf16.mxu0 0
        %1958 = vmatpush1.bf16.msra.mxu0 0
        %1959 = vmatprep.subr.bf16.mxu0 0
        %1960 = vmatpush1.bf16.msra.mxu0 0
        %1961 = vmatprep.subr.bf16.mxu0 0
        %1962 = vmatpush1.bf16.msra.mxu0 0
        %1963 = vmatprep.mubr.bf16.mxu0 0
        %1964 = vmatmul.mubr.bf16.gmra.mrb[0].mxu0 %v1926
        %v1965 = vpop.f32.mrb[0].mxu0
        %v1966 = vadd.f32 0.0, %v1965
        %v1967 = vpop.f32.mrb[0].mxu0
        %v1968 = vpop.f32.mrb[0].mxu0
        %v1969 = vpop.f32.mrb[0].mxu0
        %1970 = vdwg.mxu0
        %1971 = vrot.lane.b32.xlu0 %v1578, 64
        %v1972 = vpop.permute.xlu0 %1971
        %v1974 = vsel %vm760, %v1826, 0
        %v1977 = vsel %vm1011, %v1972, 0
        %1979 = vmatprep.subr.bf16.mxu0 0
        %1980 = vmatpush1.bf16.msra.mxu0 %v1977
        %1981 = vmatprep.subr.bf16.mxu0 0
        %1982 = vmatpush1.bf16.msra.mxu0 0
        %1983 = vmatprep.subr.bf16.mxu0 0
        %1984 = vmatpush1.bf16.msra.mxu0 0
        %1985 = vmatprep.subr.bf16.mxu0 0
        %1986 = vmatpush1.bf16.msra.mxu0 0
        %1987 = vmatprep.subr.bf16.mxu0 0
        %1988 = vmatpush1.bf16.msra.mxu0 0
        %1989 = vmatprep.subr.bf16.mxu0 0
        %1990 = vmatpush1.bf16.msra.mxu0 0
        %1991 = vmatprep.subr.bf16.mxu0 0
        %1992 = vmatpush1.bf16.msra.mxu0 0
        %1993 = vmatprep.subr.bf16.mxu0 0
        %1994 = vmatpush1.bf16.msra.mxu0 0
        %1995 = vmatprep.subr.bf16.mxu0 0
        %1996 = vmatpush1.bf16.msra.mxu0 0
        %1997 = vmatprep.subr.bf16.mxu0 0
        %1998 = vmatpush1.bf16.msra.mxu0 0
        %1999 = vmatprep.subr.bf16.mxu0 0
        %2000 = vmatpush1.bf16.msra.mxu0 0
        %2001 = vmatprep.subr.bf16.mxu0 0
        %2002 = vmatpush1.bf16.msra.mxu0 0
        %2003 = vmatprep.subr.bf16.mxu0 0
        %2004 = vmatpush1.bf16.msra.mxu0 0
        %2005 = vmatprep.subr.bf16.mxu0 0
        %2006 = vmatpush1.bf16.msra.mxu0 0
        %2007 = vmatprep.subr.bf16.mxu0 0
        %2008 = vmatpush1.bf16.msra.mxu0 0
        %2009 = vmatprep.subr.bf16.mxu0 0
        %2010 = vmatpush1.bf16.msra.mxu0 0
        %2011 = vmatprep.mubr.bf16.mxu0 0
        %2012 = vmatmul.mubr.bf16.gmra.mrb[0].mxu0 %v1974
        %v2013 = vpop.f32.mrb[0].mxu0
        %v2014 = vadd.f32 0.0, %v2013
        %v2015 = vpop.f32.mrb[0].mxu0
        %v2016 = vpop.f32.mrb[0].mxu0
        %v2017 = vpop.f32.mrb[0].mxu0
        %2018 = vdwg.mxu0
        %2020 = vrot.lane.b32.xlu0 %v1918, 8
        %v2021 = vpop.permute.xlu0 %2020
        %2024 = vrot.lane.b32.xlu0 %v1966, 16
        %v2025 = vpop.permute.xlu0 %2024
        %2028 = vrot.lane.b32.xlu0 %v2014, 24
        %v2029 = vpop.permute.xlu0 %2028
        %v2031 = vsel %vm760, %v1870, %v2021
        %v2032 = vsel %vm1212, %v2031, %v2025
        %v2033 = vsel %vm1214, %v2032, %v2029
        %v2034 = vpack.c.bf16 %v2033, %v2033
        %s2035 = scalar_lea.vmem %s4, 16
        %v2036 = vld [vmem:[%s2035] sm:$0xf]
        %v2037 = vld [vmem:[%s2035 + $0x4] sm:$0xf]
        %v2038 = vld [vmem:[%s2035 + $0x8] sm:$0xf]
        %v2039 = vld [vmem:[%s2035 + $0xc] sm:$0xf]
        %s2040 = scalar_lea.vmem [#allocation5], 1
        %v2041 = vld [vmem:[%s2040] sm:$0x1]
        %v2043 = vlaneseq
        %v2044 = vshrl.u32 %v2043, 7
        %v2045 = vsub.s32 0, %v2044
        %v2046 = vrot.slane %v2041, %v2045
        %v2052 = vunpack.c.l.b16 %v2036
        %v2053 = vunpack.c.l.b16 %v2037
        %v2054 = vunpack.c.l.b16 %v2038
        %v2055 = vunpack.c.l.b16 %v2039
        %v2056 = vpack.c.b16 %v2053, %v2052
        %v2057 = vpack.c.b16 %v2055, %v2054
        %v2061 = vsel %vm699, %v2034, 0
        %2063 = vmatprep.subr.bf16.mxu0 0
        %2064 = vmatpush1.bf16.msra.mxu0 %v2056
        %2065 = vmatprep.subr.bf16.mxu0 0
        %2066 = vmatpush1.bf16.msra.mxu0 %v2057
        %2067 = vmatprep.subr.bf16.mxu0 0
        %2068 = vmatpush1.bf16.msra.mxu0 0
        %2069 = vmatprep.subr.bf16.mxu0 0
        %2070 = vmatpush1.bf16.msra.mxu0 0
        %2071 = vmatprep.subr.bf16.mxu0 0
        %2072 = vmatpush1.bf16.msra.mxu0 0
        %2073 = vmatprep.subr.bf16.mxu0 0
        %2074 = vmatpush1.bf16.msra.mxu0 0
        %2075 = vmatprep.subr.bf16.mxu0 0
        %2076 = vmatpush1.bf16.msra.mxu0 0
        %2077 = vmatprep.subr.bf16.mxu0 0
        %2078 = vmatpush1.bf16.msra.mxu0 0
        %2079 = vmatprep.subr.bf16.mxu0 0
        %2080 = vmatpush1.bf16.msra.mxu0 0
        %2081 = vmatprep.subr.bf16.mxu0 0
        %2082 = vmatpush1.bf16.msra.mxu0 0
        %2083 = vmatprep.subr.bf16.mxu0 0
        %2084 = vmatpush1.bf16.msra.mxu0 0
        %2085 = vmatprep.subr.bf16.mxu0 0
        %2086 = vmatpush1.bf16.msra.mxu0 0
        %2087 = vmatprep.subr.bf16.mxu0 0
        %2088 = vmatpush1.bf16.msra.mxu0 0
        %2089 = vmatprep.subr.bf16.mxu0 0
        %2090 = vmatpush1.bf16.msra.mxu0 0
        %2091 = vmatprep.subr.bf16.mxu0 0
        %2092 = vmatpush1.bf16.msra.mxu0 0
        %2093 = vmatprep.subr.bf16.mxu0 0
        %2094 = vmatpush1.bf16.msra.mxu0 0
        %2095 = vmatprep.mubr.bf16.mxu0 0
        %2096 = vmatmul.mubr.bf16.gmra.mrb[0].mxu0 %v2061
        %v2097 = vpop.f32.mrb[0].mxu0
        %v2098 = vadd.f32 %v2046, %v2097
        %v2099 = vpop.f32.mrb[0].mxu0
        %v2100 = vpop.f32.mrb[0].mxu0
        %v2101 = vpop.f32.mrb[0].mxu0
        %2102 = vdwg.mxu0
        %v2103 = vadd.f32 %v1495, %v2098
        %s2104 = scalar_lea.vmem [#allocation10], 1
        %v2105 = vld [vmem:[%s2104] sm:$0x1]
        %s2106 = scalar_lea.vmem [#allocation11], 1
        %v2107 = vld [vmem:[%s2106] sm:$0x1]
        %v2108 = vsel %vm699, %v2103, 0.0
        %2109 = vadd.xlane.f32.xlu0 %v2108
        %v2110 = vpop.xlane.xlu0 %2109
        %v2111 = vmul.f32 %v2110, %v1289
        %v2112 = vsub.f32 %v2103, %v2111
        %v2113 = vmul.f32 %v2112, %v2112
        %v2114 = vsel %vm699, %v2113, 0.0
        %2115 = vadd.xlane.f32.xlu0 %v2114
        %v2116 = vpop.xlane.xlu0 %2115
        %v2117 = vmul.f32 %v2116, %v1289
        %v2118 = vadd.f32 %v2117, 1e-05
        %v2119 = vrsqrt.pop %v2118
        %v2120 = vmul.f32 %v2112, %v2119
        %v2122 = vlaneseq
        %v2123 = vshrl.u32 %v2122, 7
        %v2124 = vsub.s32 0, %v2123
        %v2125 = vrot.slane %v2105, %v2124
        %v2127 = vmul.f32 %v2120, %v2125
        %v2129 = vlaneseq
        %v2130 = vshrl.u32 %v2129, 7
        %v2131 = vsub.s32 0, %v2130
        %v2132 = vrot.slane %v2107, %v2131
        %v2134 = vadd.f32 %v2127, %v2132
        %v2135 = vpack.c.bf16 %v2134, %v2134
        %s2136 = scalar_lea.vmem %s6, 16
        %v2137 = vld [vmem:[%s2136] sm:$0xf]
        %v2138 = vld [vmem:[%s2136 + $0x4] sm:$0xf]
        %v2139 = vld [vmem:[%s2136 + $0x8] sm:$0xf]
        %v2140 = vld [vmem:[%s2136 + $0xc] sm:$0xf]
        %s2141 = scalar_lea.vmem [#allocation7], 1
        %v2142 = vld [vmem:[%s2141] sm:$0x1]
        %v2144 = vlaneseq
        %v2145 = vshrl.u32 %v2144, 7
        %v2146 = vsub.s32 0, %v2145
        %v2147 = vrot.slane %v2142, %v2146
        %v2153 = vunpack.c.l.b16 %v2137
        %v2154 = vunpack.c.l.b16 %v2138
        %v2155 = vunpack.c.l.b16 %v2139
        %v2156 = vunpack.c.l.b16 %v2140
        %v2157 = vpack.c.b16 %v2154, %v2153
        %v2158 = vpack.c.b16 %v2156, %v2155
        %v2162 = vsel %vm699, %v2135, 0
        %2164 = vmatprep.subr.bf16.mxu0 0
        %2165 = vmatpush1.bf16.msra.mxu0 %v2157
        %2166 = vmatprep.subr.bf16.mxu0 0
        %2167 = vmatpush1.bf16.msra.mxu0 %v2158
        %2168 = vmatprep.subr.bf16.mxu0 0
        %2169 = vmatpush1.bf16.msra.mxu0 0
        %2170 = vmatprep.subr.bf16.mxu0 0
        %2171 = vmatpush1.bf16.msra.mxu0 0
        %2172 = vmatprep.subr.bf16.mxu0 0
        %2173 = vmatpush1.bf16.msra.mxu0 0
        %2174 = vmatprep.subr.bf16.mxu0 0
        %2175 = vmatpush1.bf16.msra.mxu0 0
        %2176 = vmatprep.subr.bf16.mxu0 0
        %2177 = vmatpush1.bf16.msra.mxu0 0
        %2178 = vmatprep.subr.bf16.mxu0 0
        %2179 = vmatpush1.bf16.msra.mxu0 0
        %2180 = vmatprep.subr.bf16.mxu0 0
        %2181 = vmatpush1.bf16.msra.mxu0 0
        %2182 = vmatprep.subr.bf16.mxu0 0
        %2183 = vmatpush1.bf16.msra.mxu0 0
        %2184 = vmatprep.subr.bf16.mxu0 0
        %2185 = vmatpush1.bf16.msra.mxu0 0
        %2186 = vmatprep.subr.bf16.mxu0 0
        %2187 = vmatpush1.bf16.msra.mxu0 0
        %2188 = vmatprep.subr.bf16.mxu0 0
        %2189 = vmatpush1.bf16.msra.mxu0 0
        %2190 = vmatprep.subr.bf16.mxu0 0
        %2191 = vmatpush1.bf16.msra.mxu0 0
        %2192 = vmatprep.subr.bf16.mxu0 0
        %2193 = vmatpush1.bf16.msra.mxu0 0
        %2194 = vmatprep.subr.bf16.mxu0 0
        %2195 = vmatpush1.bf16.msra.mxu0 0
        %2196 = vmatprep.mubr.bf16.mxu0 0
        %2197 = vmatmul.mubr.bf16.gmra.mrb[0].mxu0 %v2162
        %v2198 = vpop.f32.mrb[0].mxu0
        %v2199 = vadd.f32 %v2147, %v2198
        %v2200 = vpop.f32.mrb[0].mxu0
        %v2201 = vpop.f32.mrb[0].mxu0
        %v2202 = vpop.f32.mrb[0].mxu0
        %2203 = vdwg.mxu0
        %v2204 = vmax.f32 %v2199, 0.0
        %v2205 = vpack.c.bf16 %v2204, %v2204
        %s2206 = scalar_lea.vmem %s8, 32
        %v2207 = vld [vmem:[%s2206] sm:$0xf]
        %v2208 = vld [vmem:[%s2206 + $0x4] sm:$0xf]
        %v2209 = vld [vmem:[%s2206 + $0x8] sm:$0xf]
        %v2210 = vld [vmem:[%s2206 + $0xc] sm:$0xf]
        %v2211 = vld [vmem:[%s2206 + $0x10] sm:$0xf]
        %v2212 = vld [vmem:[%s2206 + $0x14] sm:$0xf]
        %v2213 = vld [vmem:[%s2206 + $0x18] sm:$0xf]
        %v2214 = vld [vmem:[%s2206 + $0x1c] sm:$0xf]
        %s2215 = scalar_lea.vmem [#allocation8], 1
        %v2216 = vld [vmem:[%s2215] sm:$0x1]
        %v2218 = vlaneseq
        %v2219 = vshrl.u32 %v2218, 7
        %v2220 = vsub.s32 0, %v2219
        %v2221 = vrot.slane %v2216, %v2220
        %v2231 = vunpack.c.l.b16 %v2207
        %v2232 = vunpack.c.l.b16 %v2208
        %v2233 = vunpack.c.l.b16 %v2209
        %v2234 = vunpack.c.l.b16 %v2210
        %v2235 = vunpack.c.l.b16 %v2211
        %v2236 = vunpack.c.l.b16 %v2212
        %v2237 = vunpack.c.l.b16 %v2213
        %v2238 = vunpack.c.l.b16 %v2214
        %v2239 = vpack.c.b16 %v2232, %v2231
        %v2240 = vpack.c.b16 %v2234, %v2233
        %v2241 = vpack.c.b16 %v2236, %v2235
        %v2242 = vpack.c.b16 %v2238, %v2237
        %v2248 = vsel %vm1422, %v2205, 0
        %2250 = vmatprep.subr.bf16.mxu0 0
        %2251 = vmatpush1.bf16.msra.mxu0 %v2239
        %2252 = vmatprep.subr.bf16.mxu0 0
        %2253 = vmatpush1.bf16.msra.mxu0 %v2240
        %2254 = vmatprep.subr.bf16.mxu0 0
        %2255 = vmatpush1.bf16.msra.mxu0 %v2241
        %2256 = vmatprep.subr.bf16.mxu0 0
        %2257 = vmatpush1.bf16.msra.mxu0 %v2242
        %2258 = vmatprep.subr.bf16.mxu0 0
        %2259 = vmatpush1.bf16.msra.mxu0 0
        %2260 = vmatprep.subr.bf16.mxu0 0
        %2261 = vmatpush1.bf16.msra.mxu0 0
        %2262 = vmatprep.subr.bf16.mxu0 0
        %2263 = vmatpush1.bf16.msra.mxu0 0
        %2264 = vmatprep.subr.bf16.mxu0 0
        %2265 = vmatpush1.bf16.msra.mxu0 0
        %2266 = vmatprep.subr.bf16.mxu0 0
        %2267 = vmatpush1.bf16.msra.mxu0 0
        %2268 = vmatprep.subr.bf16.mxu0 0
        %2269 = vmatpush1.bf16.msra.mxu0 0
        %2270 = vmatprep.subr.bf16.mxu0 0
        %2271 = vmatpush1.bf16.msra.mxu0 0
        %2272 = vmatprep.subr.bf16.mxu0 0
        %2273 = vmatpush1.bf16.msra.mxu0 0
        %2274 = vmatprep.subr.bf16.mxu0 0
        %2275 = vmatpush1.bf16.msra.mxu0 0
        %2276 = vmatprep.subr.bf16.mxu0 0
        %2277 = vmatpush1.bf16.msra.mxu0 0
        %2278 = vmatprep.subr.bf16.mxu0 0
        %2279 = vmatpush1.bf16.msra.mxu0 0
        %2280 = vmatprep.subr.bf16.mxu0 0
        %2281 = vmatpush1.bf16.msra.mxu0 0
        %2282 = vmatprep.mubr.bf16.mxu0 0
        %2283 = vmatmul.mubr.bf16.gmra.mrb[0].mxu0 %v2248
        %v2284 = vpop.f32.mrb[0].mxu0
        %v2285 = vadd.f32 %v2221, %v2284
        %v2286 = vpop.f32.mrb[0].mxu0
        %v2287 = vpop.f32.mrb[0].mxu0
        %v2288 = vpop.f32.mrb[0].mxu0
        %2289 = vdwg.mxu0
        %v2290 = vadd.f32 %v2134, %v2285
        %s2291 = scalar_lea.vmem [#allocation13], 1
        %v2292 = vld [vmem:[%s2291] sm:$0x1]
        %s2293 = scalar_lea.vmem %s13, 1
        %v2294 = vld [vmem:[%s2293] sm:$0x1]
        %v2295 = vsel %vm699, %v2290, 0.0
        %2296 = vadd.xlane.f32.xlu0 %v2295
        %v2297 = vpop.xlane.xlu0 %2296
        %v2298 = vmul.f32 %v2297, %v1289
        %v2299 = vsub.f32 %v2290, %v2298
        %v2300 = vmul.f32 %v2299, %v2299
        %v2301 = vsel %vm699, %v2300, 0.0
        %2302 = vadd.xlane.f32.xlu0 %v2301
        %v2303 = vpop.xlane.xlu0 %2302
        %v2304 = vmul.f32 %v2303, %v1289
        %v2305 = vadd.f32 %v2304, 1e-05
        %v2306 = vrsqrt.pop %v2305
        %v2307 = vmul.f32 %v2299, %v2306
        %v2309 = vlaneseq
        %v2310 = vshrl.u32 %v2309, 7
        %v2311 = vsub.s32 0, %v2310
        %v2312 = vrot.slane %v2292, %v2311
        %v2314 = vmul.f32 %v2307, %v2312
        %v2316 = vlaneseq
        %v2317 = vshrl.u32 %v2316, 7
        %v2318 = vsub.s32 0, %v2317
        %v2319 = vrot.slane %v2294, %v2318
        %v2321 = vadd.f32 %v2314, %v2319
        %v2322 = vsel %vm699, %v2321, 0.0
        %v2323 = vrot.slane %v2322, 4
        %v2324 = vadd.f32 %v2322, %v2323
        %v2325 = vrot.slane %v2324, 2
        %v2326 = vadd.f32 %v2324, %v2325
        %v2327 = vrot.slane %v2326, 1
        %v2328 = vadd.f32 %v2326, %v2327
        %v2329 = vrcp.pop 8.0
        %v2330 = vmul.f32 %v2328, %v2329
        %v2331 = vpack.c.bf16 %v2330, %v2330
        %v2332 = vld [vmem:[%s14] sm:$0xf]
        %v2333 = vld [vmem:[%s14 + $0x4] sm:$0xf]
        %v2334 = vld [vmem:[%s14 + $0x8] sm:$0xf]
        %v2335 = vld [vmem:[%s14 + $0xc] sm:$0xf]
        %v2336 = vld [vmem:[%s15] sm:$0x1]
        %v2341 = vunpack.c.l.b16 %v2332
        %v2342 = vunpack.c.l.b16 %v2333
        %v2343 = vunpack.c.l.b16 %v2334
        %v2344 = vunpack.c.l.b16 %v2335
        %v2345 = vpack.c.b16 %v2342, %v2341
        %v2346 = vpack.c.b16 %v2344, %v2343
        %v2350 = vsel %vm699, %v2331, 0
        %2352 = vmatprep.subr.bf16.mxu0 0
        %2353 = vmatpush1.bf16.msra.mxu0 %v2345
        %2354 = vmatprep.subr.bf16.mxu0 0
        %2355 = vmatpush1.bf16.msra.mxu0 %v2346
        %2356 = vmatprep.subr.bf16.mxu0 0
        %2357 = vmatpush1.bf16.msra.mxu0 0
        %2358 = vmatprep.subr.bf16.mxu0 0
        %2359 = vmatpush1.bf16.msra.mxu0 0
        %2360 = vmatprep.subr.bf16.mxu0 0
        %2361 = vmatpush1.bf16.msra.mxu0 0
        %2362 = vmatprep.subr.bf16.mxu0 0
        %2363 = vmatpush1.bf16.msra.mxu0 0
        %2364 = vmatprep.subr.bf16.mxu0 0
        %2365 = vmatpush1.bf16.msra.mxu0 0
        %2366 = vmatprep.subr.bf16.mxu0 0
        %2367 = vmatpush1.bf16.msra.mxu0 0
        %2368 = vmatprep.subr.bf16.mxu0 0
        %2369 = vmatpush1.bf16.msra.mxu0 0
        %2370 = vmatprep.subr.bf16.mxu0 0
        %2371 = vmatpush1.bf16.msra.mxu0 0
        %2372 = vmatprep.subr.bf16.mxu0 0
        %2373 = vmatpush1.bf16.msra.mxu0 0
        %2374 = vmatprep.subr.bf16.mxu0 0
        %2375 = vmatpush1.bf16.msra.mxu0 0
        %2376 = vmatprep.subr.bf16.mxu0 0
        %2377 = vmatpush1.bf16.msra.mxu0 0
        %2378 = vmatprep.subr.bf16.mxu0 0
        %2379 = vmatpush1.bf16.msra.mxu0 0
        %2380 = vmatprep.subr.bf16.mxu0 0
        %2381 = vmatpush1.bf16.msra.mxu0 0
        %2382 = vmatprep.subr.bf16.mxu0 0
        %2383 = vmatpush1.bf16.msra.mxu0 0
        %2384 = vmatprep.mubr.bf16.mxu0 0
        %2385 = vmatmul.mubr.bf16.gmra.mrb[0].mxu0 %v2350
        %v2386 = vpop.f32.mrb[0].mxu0
        %v2387 = vadd.f32 %v2336, %v2386
        %v2388 = vpop.f32.mrb[0].mxu0
        %v2389 = vpop.f32.mrb[0].mxu0
        %v2390 = vpop.f32.mrb[0].mxu0
        %2391 = vdwg.mxu0
        %v2392 = vmax.f32 %v2387, 0.0
        %v2393 = vpack.c.bf16 %v2392, %v2392
        %v2394 = vld [vmem:[%s16] sm:$0xf]
        %v2395 = vld [vmem:[%s16 + $0x4] sm:$0xf]
        %v2396 = vld [vmem:[%s16 + $0x8] sm:$0xf]
        %v2397 = vld [vmem:[%s16 + $0xc] sm:$0xf]
        %v2398 = vld [vmem:[#allocation2] sm:$0x1]
        %v2403 = vunpack.c.l.b16 %v2394
        %v2404 = vunpack.c.l.b16 %v2395
        %v2405 = vunpack.c.l.b16 %v2396
        %v2406 = vunpack.c.l.b16 %v2397
        %v2407 = vpack.c.b16 %v2404, %v2403
        %v2408 = vpack.c.b16 %v2406, %v2405
        %v2412 = vsel %vm699, %v2393, 0
        %2414 = vmatprep.subr.bf16.mxu0 0
        %2415 = vmatpush1.bf16.msra.mxu0 %v2407
        %2416 = vmatprep.subr.bf16.mxu0 0
        %2417 = vmatpush1.bf16.msra.mxu0 %v2408
        %2418 = vmatprep.subr.bf16.mxu0 0
        %2419 = vmatpush1.bf16.msra.mxu0 0
        %2420 = vmatprep.subr.bf16.mxu0 0
        %2421 = vmatpush1.bf16.msra.mxu0 0
        %2422 = vmatprep.subr.bf16.mxu0 0
        %2423 = vmatpush1.bf16.msra.mxu0 0
        %2424 = vmatprep.subr.bf16.mxu0 0
        %2425 = vmatpush1.bf16.msra.mxu0 0
        %2426 = vmatprep.subr.bf16.mxu0 0
        %2427 = vmatpush1.bf16.msra.mxu0 0
        %2428 = vmatprep.subr.bf16.mxu0 0
        %2429 = vmatpush1.bf16.msra.mxu0 0
        %2430 = vmatprep.subr.bf16.mxu0 0
        %2431 = vmatpush1.bf16.msra.mxu0 0
        %2432 = vmatprep.subr.bf16.mxu0 0
        %2433 = vmatpush1.bf16.msra.mxu0 0
        %2434 = vmatprep.subr.bf16.mxu0 0
        %2435 = vmatpush1.bf16.msra.mxu0 0
        %2436 = vmatprep.subr.bf16.mxu0 0
        %2437 = vmatpush1.bf16.msra.mxu0 0
        %2438 = vmatprep.subr.bf16.mxu0 0
        %2439 = vmatpush1.bf16.msra.mxu0 0
        %2440 = vmatprep.subr.bf16.mxu0 0
        %2441 = vmatpush1.bf16.msra.mxu0 0
        %2442 = vmatprep.subr.bf16.mxu0 0
        %2443 = vmatpush1.bf16.msra.mxu0 0
        %2444 = vmatprep.subr.bf16.mxu0 0
        %2445 = vmatpush1.bf16.msra.mxu0 0
        %2446 = vmatprep.mubr.bf16.mxu0 0
        %2447 = vmatmul.mubr.bf16.gmra.mrb[0].mxu0 %v2412
        %v2448 = vpop.f32.mrb[0].mxu0
        %v2449 = vadd.f32 %v2398, %v2448
        %v2450 = vpop.f32.mrb[0].mxu0
        %v2451 = vpop.f32.mrb[0].mxu0
        %v2452 = vpop.f32.mrb[0].mxu0
        %2453 = vdwg.mxu0
        %v2454 = vxor.u32 %v2449, 2147483648
        %v2455 = vmul.f32 %v2454, 1.442695
        %v2456 = vpow.pop %v2455
        %v2457 = vadd.f32 %v2456, 1.0
        %v2458 = vrcp.pop %v2457
        %v2459 = vmul.f32 1.0, %v2458
        %vm2460 = vcmask 0
        %2461 = vst.msk [vmem:[%s670] sm:$0x1] %vm2460, %v2459
        %p2462 = scmp.lt.s32.totalorder %s35, 1
        %s2463 = scalar_select %p2462, %s35, 1
        %s2464 = scalar_lea.vmem %s18, %s2463
        // Predicated region
        $region121: #{tpu_custom_call.1} parent=91 // pred_check
          %p2465 = pneg %p436
        $region122: #{tpu_custom_call.1} parent=91 // pred_check_branch
          %2467 = sbr.rel (%p2465) target = $region124
        $region123: #{tpu_custom_call.1} parent=91 // pred_region
          _
        $region124: #{tpu_custom_call.1} parent=91 // pred_fallthru
          _
      $region92: #{tpu_custom_call.1} parent=5 // pred_fallthru
        _
      %p2468 = scmp.le.s32.totalorder 2, %s30
      // Predicated region
      $region125: #{tpu_custom_call.1} parent=5 // pred_check
        %p2469 = pneg %p2468
      $region126: #{tpu_custom_call.1} parent=5 // pred_check_branch
        %2471 = sbr.rel (%p2469) target = $region128
      $region127: #{tpu_custom_call.1} parent=5 // pred_region
        %s2472 = ssub.s32 %s30, 2
        // Predicated region
        $region129: #{tpu_custom_call.1} parent=127 // pred_check
          %p2473 = pneg %p442
        $region130: #{tpu_custom_call.1} parent=127 // pred_check_branch
          %2475 = sbr.rel (%p2473) target = $region132
        $region131: #{tpu_custom_call.1} parent=127 // pred_region
          %p2476 = scmp.lt.s32.totalorder %s36, 1
          %s2477 = scalar_select %p2476, %s36, 1
          %s2478 = scalar_lea.vmem %s18, %s2477
        $region132: #{tpu_custom_call.1} parent=127 // pred_fallthru
          _
      $region128: #{tpu_custom_call.1} parent=5 // pred_fallthru
        _
    $region6: #{tpu_custom_call.1} parent=1 // loop_footer
      %s34 = sadd.s32 1, %s30
    $region7: #{tpu_custom_call.1} parent=1 // loop_footer_branch
      %29 = sbr.rel target = $region3
    $region8: #{tpu_custom_call.1} parent=1 // loop_exit
      _
    %2479 = vsyncpa [#allocation4], 1
    %s2480 = scalar_lea.sflag [#allocation4], 1
    %2481 = vsyncpa %s2480, 1
    %2482 = vsyncpa [#allocation6], 1
    %2483 = vsyncpa [#allocation9], 1
    %2484 = vsyncpa [#allocation12], 1

</llo_original>
